<compile_context>
chip_gen: v7x
topology: tpu7x:2x2x1
jax: 0.10.0
libtpu: 0.0.40
codegen_flags: <defaults>
</compile_context>

<pallas_src>
import math

import jax
import jax.numpy as jnp
from jax.experimental import pallas as pl
from jax.experimental.pallas import tpu as pltpu

# -------------------- small config consistent with the module --------------------
IMG = 16          # img_size
PATCH = 4         # patch_size
IN_CH = 4         # in_channels
NUM_CLASSES = 2
EMBED = 32        # embed_dim
HEADS = 4         # num_heads
LAYERS = 2        # num_layers
EXPANSION = 4     # forward_expansion
LN_EPS = 1e-5     # nn.LayerNorm default

NUM_PATCHES = (IMG // PATCH) ** 2       # 16
SEQ = NUM_PATCHES + 1                   # 17 (cls token + patches)
HEAD_DIM = EMBED // HEADS               # 8
PATCH_DIM = IN_CH * PATCH * PATCH       # 64
FFN_DIM = EXPANSION * EMBED             # 128


# ============================== fused Pallas kernel ==============================

def _layernorm(v, g, b):
    # PyTorch LayerNorm semantics: biased variance, eps inside rsqrt.
    mean = jnp.mean(v, axis=-1, keepdims=True)
    c = v - mean
    var = jnp.mean(c * c, axis=-1, keepdims=True)
    return c * jax.lax.rsqrt(var + LN_EPS) * g + b


def _vit_kernel(patches_ref, cls_ref, pos_ref, pw_ref, pb_ref,
                wqkv_ref, bqkv_ref, wo_ref, bo_ref,
                ln1g_ref, ln1b_ref, w1_ref, b1_ref, w2_ref, b2_ref,
                ln2g_ref, ln2b_ref, lng_ref, lnb_ref, hw_ref, hb_ref,
                out_ref):
    """One grid step == one batch element. Everything stays in VMEM/vregs."""
    inv_scale = 1.0 / math.sqrt(HEAD_DIM)

    # ---- patch embedding (one MXU pass) + cls token + positional encoding ----
    p = patches_ref[0]                                                    # (NP, PD)
    emb = jnp.dot(p, pw_ref[...], preferred_element_type=jnp.float32) + pb_ref[...]
    x = jnp.concatenate([cls_ref[...], emb], axis=0) + pos_ref[...]       # (SEQ, E)

    # TODO(synk): nn.Dropout(p=0.01) is identity at inference; omitted.

    # ---- transformer blocks (static unroll, LAYERS is tiny) ----
    for l in range(LAYERS):
        # Fused QKV projection: (SEQ, E) @ (E, 3E) -> lane-dense N = 96.
        qkv = jnp.dot(x, wqkv_ref[l], preferred_element_type=jnp.float32) + bqkv_ref[l]
        q = qkv[:, :EMBED] * inv_scale          # fold 1/sqrt(head_dim) into q
        k = qkv[:, EMBED:2 * EMBED]
        v = qkv[:, 2 * EMBED:]

        # Multi-head attention: static per-head lane slices, no transposes.
        heads = []
        for h in range(HEADS):
            sl = slice(h * HEAD_DIM, (h + 1) * HEAD_DIM)
            qh, kh, vh = q[:, sl], k[:, sl], v[:, sl]
            s = jax.lax.dot_general(qh, kh, (((1,), (1,)), ((), ())),
                                    preferred_element_type=jnp.float32)   # (S, S)
            m = jnp.max(s, axis=-1, keepdims=True)
            e = jnp.exp(s - m)
            r = pl.reciprocal(jnp.sum(e, axis=-1, keepdims=True), approx=True)
            heads.append(jnp.dot(e * r, vh, preferred_element_type=jnp.float32))
        attn = jnp.concatenate(heads, axis=1)                             # (S, E)
        attn = jnp.dot(attn, wo_ref[l], preferred_element_type=jnp.float32) + bo_ref[l]

        # Residual + LayerNorm fused.
        x = _layernorm(x + attn, ln1g_ref[l], ln1b_ref[l])

        # Feed-forward (GELU) fused.
        # TODO(synk): PyTorch nn.GELU() default is exact erf; tanh approximation
        # is used here for portable Mosaic lowering (~1e-3 level difference).
        hmid = jnp.dot(x, w1_ref[l], preferred_element_type=jnp.float32) + b1_ref[l]
        hmid = jax.nn.gelu(hmid, approximate=True)
        ffn = jnp.dot(hmid, w2_ref[l], preferred_element_type=jnp.float32) + b2_ref[l]
        x = _layernorm(x + ffn, ln2g_ref[l], ln2b_ref[l])

    # ---- final LayerNorm on the cls row only + classifier head ----
    cls_out = _layernorm(x[0:1, :], lng_ref[...], lnb_ref[...])           # (1, E)
    out_ref[0] = (jnp.dot(cls_out, hw_ref[...], preferred_element_type=jnp.float32)
                  + hb_ref[...])                                          # (1, NUM_CLASSES)


# ============================== wrapper ==============================

def _replicated_spec(arr):
    """Full-array block, same block for every grid step (weights stay resident)."""
    nd = arr.ndim
    return pl.BlockSpec(arr.shape, lambda b, _nd=nd: (0,) * _nd)


def vit_forward(x, params):
    B = x.shape[0]
    p = PATCH
    # Patch extraction: x.unfold(2,p,p).unfold(3,p,p).permute(0,2,3,1,4,5).view(...)
    # Pure data movement -> plain JAX before the kernel.
    patches = x.reshape(B, IN_CH, IMG // p, p, IMG // p, p)
    patches = patches.transpose(0, 2, 4, 1, 3, 5).reshape(B, NUM_PATCHES, PATCH_DIM)

    weights = [
        params["cls_token"], params["pos"],
        params["patch_w"], params["patch_b"],
        params["wqkv"], params["bqkv"], params["wo"], params["bo"],
        params["ln1_g"], params["ln1_b"],
        params["w1"], params["b1"], params["w2"], params["b2"],
        params["ln2_g"], params["ln2_b"],
        params["ln_g"], params["ln_b"],
        params["head_w"], params["head_b"],
    ]
    in_specs = ([pl.BlockSpec((1, NUM_PATCHES, PATCH_DIM), lambda b: (b, 0, 0))]
                + [_replicated_spec(a) for a in weights])

    out = pl.pallas_call(
        _vit_kernel,
        out_shape=jax.ShapeDtypeStruct((B, 1, NUM_CLASSES), jnp.float32),
        grid=(B,),
        in_specs=in_specs,
        out_specs=pl.BlockSpec((1, 1, NUM_CLASSES), lambda b: (b, 0, 0)),
        compiler_params=pltpu.CompilerParams(
            dimension_semantics=("parallel",)),   # v7x: batch across both TCs
    )(patches, *weights)
    return out.reshape(B, NUM_CLASSES)


# ============================== deterministic parameter init ==============================

def init_params(key):
    keys = iter(jax.random.split(key, 2 + LAYERS * 4))

    def w(*shape):
        return jax.random.normal(next(keys), shape, jnp.float32) * 0.02

    params = {
        "patch_w": w(PATCH_DIM, EMBED),
        "patch_b": jnp.zeros((1, EMBED), jnp.float32),
        "cls_token": jnp.zeros((1, EMBED), jnp.float32),        # torch.zeros init
        "pos": jnp.zeros((SEQ, EMBED), jnp.float32),            # torch.zeros init
        "ln_g": jnp.ones((1, EMBED), jnp.float32),
        "ln_b": jnp.zeros((1, EMBED), jnp.float32),
        "head_w": w(EMBED, NUM_CLASSES),
        "head_b": jnp.zeros((1, NUM_CLASSES), jnp.float32),
    }
    # Per-layer weights stacked on a leading LAYERS axis (indexed statically in-kernel).
    params["wqkv"] = jnp.stack([w(EMBED, 3 * EMBED) for _ in range(LAYERS)])  # fused Q|K|V
    params["bqkv"] = jnp.zeros((LAYERS, 1, 3 * EMBED), jnp.float32)
    params["wo"] = jnp.stack([w(EMBED, EMBED) for _ in range(LAYERS)])
    params["bo"] = jnp.zeros((LAYERS, 1, EMBED), jnp.float32)
    params["ln1_g"] = jnp.ones((LAYERS, 1, EMBED), jnp.float32)
    params["ln1_b"] = jnp.zeros((LAYERS, 1, EMBED), jnp.float32)
    params["w1"] = jnp.stack([w(EMBED, FFN_DIM) for _ in range(LAYERS)])
    params["b1"] = jnp.zeros((LAYERS, 1, FFN_DIM), jnp.float32)
    params["w2"] = jnp.stack([w(FFN_DIM, EMBED) for _ in range(LAYERS)])
    params["b2"] = jnp.zeros((LAYERS, 1, EMBED), jnp.float32)
    params["ln2_g"] = jnp.ones((LAYERS, 1, EMBED), jnp.float32)
    params["ln2_b"] = jnp.zeros((LAYERS, 1, EMBED), jnp.float32)
    return params


# ============================== main ==============================

if __name__ == "__main__":
    key = jax.random.PRNGKey(0)
    pkey, xkey = jax.random.split(key)
    params = init_params(pkey)

    # x: (B=2, C=4, H=16, W=16), NCHW like PyTorch.
    x = jax.random.normal(xkey, (2, IN_CH, IMG, IMG), jnp.float32)

    logits = jax.jit(vit_forward)(x, params)
    logits = jax.block_until_ready(logits)
    assert logits.shape == (2, NUM_CLASSES)
    assert bool(jnp.all(jnp.isfinite(logits)))
    print("KERNEL_OK")
</pallas_src>

<mosaic_0001>
module attributes {stable_mosaic.version = 11 : i64} {
  func.func @_vit_kernel(%arg0: i32, %arg1: memref<1x16x64xf32, #tpu.memory_space<vmem>>, %arg2: memref<1x32xf32, #tpu.memory_space<vmem>>, %arg3: memref<17x32xf32, #tpu.memory_space<vmem>>, %arg4: memref<64x32xf32, #tpu.memory_space<vmem>>, %arg5: memref<1x32xf32, #tpu.memory_space<vmem>>, %arg6: memref<2x32x96xf32, #tpu.memory_space<vmem>>, %arg7: memref<2x1x96xf32, #tpu.memory_space<vmem>>, %arg8: memref<2x32x32xf32, #tpu.memory_space<vmem>>, %arg9: memref<2x1x32xf32, #tpu.memory_space<vmem>>, %arg10: memref<2x1x32xf32, #tpu.memory_space<vmem>>, %arg11: memref<2x1x32xf32, #tpu.memory_space<vmem>>, %arg12: memref<2x32x128xf32, #tpu.memory_space<vmem>>, %arg13: memref<2x1x128xf32, #tpu.memory_space<vmem>>, %arg14: memref<2x128x32xf32, #tpu.memory_space<vmem>>, %arg15: memref<2x1x32xf32, #tpu.memory_space<vmem>>, %arg16: memref<2x1x32xf32, #tpu.memory_space<vmem>>, %arg17: memref<2x1x32xf32, #tpu.memory_space<vmem>>, %arg18: memref<1x32xf32, #tpu.memory_space<vmem>>, %arg19: memref<1x32xf32, #tpu.memory_space<vmem>>, %arg20: memref<32x2xf32, #tpu.memory_space<vmem>>, %arg21: memref<1x2xf32, #tpu.memory_space<vmem>>, %arg22: memref<1x1x2xf32, #tpu.memory_space<vmem>>) attributes {dimension_semantics = [#tpu.dimension_semantics<parallel>], iteration_bounds = array<i64: 2>, scalar_prefetch = 0 : i64, scratch_operands = 0 : i64, tpu.core_type = #tpu.core_type<tc>, window_params = [{transform_indices = @transform_0, window_bounds = array<i64: 1, 16, 64>}, {pipeline_mode = #tpu.pipeline_mode<synchronous>, transform_indices = @transform_1, window_bounds = array<i64: 1, 32>}, {pipeline_mode = #tpu.pipeline_mode<synchronous>, transform_indices = @transform_2, window_bounds = array<i64: 17, 32>}, {pipeline_mode = #tpu.pipeline_mode<synchronous>, transform_indices = @transform_3, window_bounds = array<i64: 64, 32>}, {pipeline_mode = #tpu.pipeline_mode<synchronous>, transform_indices = @transform_4, window_bounds = array<i64: 1, 32>}, {pipeline_mode = #tpu.pipeline_mode<synchronous>, transform_indices = @transform_5, window_bounds = array<i64: 2, 32, 96>}, {pipeline_mode = #tpu.pipeline_mode<synchronous>, transform_indices = @transform_6, window_bounds = array<i64: 2, 1, 96>}, {pipeline_mode = #tpu.pipeline_mode<synchronous>, transform_indices = @transform_7, window_bounds = array<i64: 2, 32, 32>}, {pipeline_mode = #tpu.pipeline_mode<synchronous>, transform_indices = @transform_8, window_bounds = array<i64: 2, 1, 32>}, {pipeline_mode = #tpu.pipeline_mode<synchronous>, transform_indices = @transform_9, window_bounds = array<i64: 2, 1, 32>}, {pipeline_mode = #tpu.pipeline_mode<synchronous>, transform_indices = @transform_10, window_bounds = array<i64: 2, 1, 32>}, {pipeline_mode = #tpu.pipeline_mode<synchronous>, transform_indices = @transform_11, window_bounds = array<i64: 2, 32, 128>}, {pipeline_mode = #tpu.pipeline_mode<synchronous>, transform_indices = @transform_12, window_bounds = array<i64: 2, 1, 128>}, {pipeline_mode = #tpu.pipeline_mode<synchronous>, transform_indices = @transform_13, window_bounds = array<i64: 2, 128, 32>}, {pipeline_mode = #tpu.pipeline_mode<synchronous>, transform_indices = @transform_14, window_bounds = array<i64: 2, 1, 32>}, {pipeline_mode = #tpu.pipeline_mode<synchronous>, transform_indices = @transform_15, window_bounds = array<i64: 2, 1, 32>}, {pipeline_mode = #tpu.pipeline_mode<synchronous>, transform_indices = @transform_16, window_bounds = array<i64: 2, 1, 32>}, {pipeline_mode = #tpu.pipeline_mode<synchronous>, transform_indices = @transform_17, window_bounds = array<i64: 1, 32>}, {pipeline_mode = #tpu.pipeline_mode<synchronous>, transform_indices = @transform_18, window_bounds = array<i64: 1, 32>}, {pipeline_mode = #tpu.pipeline_mode<synchronous>, transform_indices = @transform_19, window_bounds = array<i64: 32, 2>}, {pipeline_mode = #tpu.pipeline_mode<synchronous>, transform_indices = @transform_20, window_bounds = array<i64: 1, 2>}, {transform_indices = @transform_21, window_bounds = array<i64: 1, 1, 2>}]} {
    %c0 = arith.constant 0 : index
    %c0_0 = arith.constant 0 : index
    %c0_1 = arith.constant 0 : index
    %0 = vector.load %arg1[%c0, %c0_0, %c0_1] : memref<1x16x64xf32, #tpu.memory_space<vmem>>, vector<1x16x64xf32>
    %1 = vector.shape_cast %0 : vector<1x16x64xf32> to vector<16x64xf32>
    %c0_2 = arith.constant 0 : index
    %c0_3 = arith.constant 0 : index
    %2 = vector.load %arg4[%c0_2, %c0_3] : memref<64x32xf32, #tpu.memory_space<vmem>>, vector<64x32xf32>
    %cst = arith.constant dense<0.000000e+00> : vector<16x32xf32>
    %3 = tpu.matmul %1, %2, %cst {dimension_numbers = #tpu.dot_dimension_numbers<[1], [0], [0], [1], [0, 0, 1, 1], [], []>} : vector<16x64xf32>, vector<64x32xf32>, vector<16x32xf32> -> vector<16x32xf32>
    %c0_4 = arith.constant 0 : index
    %c0_5 = arith.constant 0 : index
    %4 = vector.load %arg5[%c0_4, %c0_5] : memref<1x32xf32, #tpu.memory_space<vmem>>, vector<1x32xf32>
    %5 = vector.broadcast %4 : vector<1x32xf32> to vector<16x32xf32>
    %6 = arith.addf %3, %5 : vector<16x32xf32>
    %c0_6 = arith.constant 0 : index
    %c0_7 = arith.constant 0 : index
    %7 = vector.load %arg2[%c0_6, %c0_7] : memref<1x32xf32, #tpu.memory_space<vmem>>, vector<1x32xf32>
    %8 = tpu.concatenate %7, %6 in 0 : vector<1x32xf32>, vector<16x32xf32> -> vector<17x32xf32>
    %c0_8 = arith.constant 0 : index
    %c0_9 = arith.constant 0 : index
    %9 = vector.load %arg3[%c0_8, %c0_9] : memref<17x32xf32, #tpu.memory_space<vmem>>, vector<17x32xf32>
    %10 = arith.addf %8, %9 : vector<17x32xf32>
    %c0_10 = arith.constant 0 : index
    %c0_11 = arith.constant 0 : index
    %c0_12 = arith.constant 0 : index
    %11 = vector.load %arg6[%c0_10, %c0_11, %c0_12] : memref<2x32x96xf32, #tpu.memory_space<vmem>>, vector<1x32x96xf32>
    %12 = vector.shape_cast %11 : vector<1x32x96xf32> to vector<32x96xf32>
    %cst_13 = arith.constant dense<0.000000e+00> : vector<17x96xf32>
    %13 = tpu.matmul %10, %12, %cst_13 {dimension_numbers = #tpu.dot_dimension_numbers<[1], [0], [0], [1], [0, 0, 1, 1], [], []>} : vector<17x32xf32>, vector<32x96xf32>, vector<17x96xf32> -> vector<17x96xf32>
    %c0_14 = arith.constant 0 : index
    %c0_15 = arith.constant 0 : index
    %c0_16 = arith.constant 0 : index
    %14 = vector.load %arg7[%c0_14, %c0_15, %c0_16] : memref<2x1x96xf32, #tpu.memory_space<vmem>>, vector<1x1x96xf32>
    %15 = vector.shape_cast %14 : vector<1x1x96xf32> to vector<1x96xf32>
    %16 = vector.broadcast %15 : vector<1x96xf32> to vector<17x96xf32>
    %17 = arith.addf %13, %16 : vector<17x96xf32>
    %18 = vector.extract_strided_slice %17 {offsets = [0, 0], sizes = [17, 32], strides = [1, 1]} : vector<17x96xf32> to vector<17x32xf32>
    %cst_17 = arith.constant 0.353553385 : f32
    %19 = vector.broadcast %cst_17 : f32 to vector<17x32xf32>
    %20 = arith.mulf %18, %19 : vector<17x32xf32>
    %21 = vector.extract_strided_slice %17 {offsets = [0, 32], sizes = [17, 32], strides = [1, 1]} : vector<17x96xf32> to vector<17x32xf32>
    %22 = vector.extract_strided_slice %17 {offsets = [0, 64], sizes = [17, 32], strides = [1, 1]} : vector<17x96xf32> to vector<17x32xf32>
    %23 = vector.extract_strided_slice %20 {offsets = [0, 0], sizes = [17, 8], strides = [1, 1]} : vector<17x32xf32> to vector<17x8xf32>
    %24 = vector.extract_strided_slice %21 {offsets = [0, 0], sizes = [17, 8], strides = [1, 1]} : vector<17x32xf32> to vector<17x8xf32>
    %25 = vector.extract_strided_slice %22 {offsets = [0, 0], sizes = [17, 8], strides = [1, 1]} : vector<17x32xf32> to vector<17x8xf32>
    %cst_18 = arith.constant dense<0.000000e+00> : vector<17x17xf32>
    %26 = tpu.matmul %23, %24, %cst_18 {dimension_numbers = #tpu.dot_dimension_numbers<[1], [1], [0], [0], [0, 0, 1, 0], [], []>} : vector<17x8xf32>, vector<17x8xf32>, vector<17x17xf32> -> vector<17x17xf32>
    %cst_19 = arith.constant dense<0xFF800000> : vector<17xf32>
    %27 = vector.multi_reduction <maximumf>, %26, %cst_19 [1] : vector<17x17xf32> to vector<17xf32>
    %28 = vector.shape_cast %27 : vector<17xf32> to vector<17x1xf32>
    %29 = vector.broadcast %28 : vector<17x1xf32> to vector<17x17xf32>
    %30 = arith.subf %26, %29 : vector<17x17xf32>
    %31 = math.exp %30 : vector<17x17xf32>
    %cst_20 = arith.constant dense<0.000000e+00> : vector<17xf32>
    %32 = vector.multi_reduction <add>, %31, %cst_20 [1] : vector<17x17xf32> to vector<17xf32>
    %33 = vector.shape_cast %32 : vector<17xf32> to vector<17x1xf32>
    %34 = tpu.reciprocal %33 {approx = true} : vector<17x1xf32> -> vector<17x1xf32>
    %35 = vector.broadcast %34 : vector<17x1xf32> to vector<17x17xf32>
    %36 = arith.mulf %31, %35 : vector<17x17xf32>
    %cst_21 = arith.constant dense<0.000000e+00> : vector<17x8xf32>
    %37 = tpu.matmul %36, %25, %cst_21 {dimension_numbers = #tpu.dot_dimension_numbers<[1], [0], [0], [1], [0, 0, 1, 1], [], []>} : vector<17x17xf32>, vector<17x8xf32>, vector<17x8xf32> -> vector<17x8xf32>
    %38 = vector.extract_strided_slice %20 {offsets = [0, 8], sizes = [17, 8], strides = [1, 1]} : vector<17x32xf32> to vector<17x8xf32>
    %39 = vector.extract_strided_slice %21 {offsets = [0, 8], sizes = [17, 8], strides = [1, 1]} : vector<17x32xf32> to vector<17x8xf32>
    %40 = vector.extract_strided_slice %22 {offsets = [0, 8], sizes = [17, 8], strides = [1, 1]} : vector<17x32xf32> to vector<17x8xf32>
    %cst_22 = arith.constant dense<0.000000e+00> : vector<17x17xf32>
    %41 = tpu.matmul %38, %39, %cst_22 {dimension_numbers = #tpu.dot_dimension_numbers<[1], [1], [0], [0], [0, 0, 1, 0], [], []>} : vector<17x8xf32>, vector<17x8xf32>, vector<17x17xf32> -> vector<17x17xf32>
    %cst_23 = arith.constant dense<0xFF800000> : vector<17xf32>
    %42 = vector.multi_reduction <maximumf>, %41, %cst_23 [1] : vector<17x17xf32> to vector<17xf32>
    %43 = vector.shape_cast %42 : vector<17xf32> to vector<17x1xf32>
    %44 = vector.broadcast %43 : vector<17x1xf32> to vector<17x17xf32>
    %45 = arith.subf %41, %44 : vector<17x17xf32>
    %46 = math.exp %45 : vector<17x17xf32>
    %cst_24 = arith.constant dense<0.000000e+00> : vector<17xf32>
    %47 = vector.multi_reduction <add>, %46, %cst_24 [1] : vector<17x17xf32> to vector<17xf32>
    %48 = vector.shape_cast %47 : vector<17xf32> to vector<17x1xf32>
    %49 = tpu.reciprocal %48 {approx = true} : vector<17x1xf32> -> vector<17x1xf32>
    %50 = vector.broadcast %49 : vector<17x1xf32> to vector<17x17xf32>
    %51 = arith.mulf %46, %50 : vector<17x17xf32>
    %cst_25 = arith.constant dense<0.000000e+00> : vector<17x8xf32>
    %52 = tpu.matmul %51, %40, %cst_25 {dimension_numbers = #tpu.dot_dimension_numbers<[1], [0], [0], [1], [0, 0, 1, 1], [], []>} : vector<17x17xf32>, vector<17x8xf32>, vector<17x8xf32> -> vector<17x8xf32>
    %53 = vector.extract_strided_slice %20 {offsets = [0, 16], sizes = [17, 8], strides = [1, 1]} : vector<17x32xf32> to vector<17x8xf32>
    %54 = vector.extract_strided_slice %21 {offsets = [0, 16], sizes = [17, 8], strides = [1, 1]} : vector<17x32xf32> to vector<17x8xf32>
    %55 = vector.extract_strided_slice %22 {offsets = [0, 16], sizes = [17, 8], strides = [1, 1]} : vector<17x32xf32> to vector<17x8xf32>
    %cst_26 = arith.constant dense<0.000000e+00> : vector<17x17xf32>
    %56 = tpu.matmul %53, %54, %cst_26 {dimension_numbers = #tpu.dot_dimension_numbers<[1], [1], [0], [0], [0, 0, 1, 0], [], []>} : vector<17x8xf32>, vector<17x8xf32>, vector<17x17xf32> -> vector<17x17xf32>
    %cst_27 = arith.constant dense<0xFF800000> : vector<17xf32>
    %57 = vector.multi_reduction <maximumf>, %56, %cst_27 [1] : vector<17x17xf32> to vector<17xf32>
    %58 = vector.shape_cast %57 : vector<17xf32> to vector<17x1xf32>
    %59 = vector.broadcast %58 : vector<17x1xf32> to vector<17x17xf32>
    %60 = arith.subf %56, %59 : vector<17x17xf32>
    %61 = math.exp %60 : vector<17x17xf32>
    %cst_28 = arith.constant dense<0.000000e+00> : vector<17xf32>
    %62 = vector.multi_reduction <add>, %61, %cst_28 [1] : vector<17x17xf32> to vector<17xf32>
    %63 = vector.shape_cast %62 : vector<17xf32> to vector<17x1xf32>
    %64 = tpu.reciprocal %63 {approx = true} : vector<17x1xf32> -> vector<17x1xf32>
    %65 = vector.broadcast %64 : vector<17x1xf32> to vector<17x17xf32>
    %66 = arith.mulf %61, %65 : vector<17x17xf32>
    %cst_29 = arith.constant dense<0.000000e+00> : vector<17x8xf32>
    %67 = tpu.matmul %66, %55, %cst_29 {dimension_numbers = #tpu.dot_dimension_numbers<[1], [0], [0], [1], [0, 0, 1, 1], [], []>} : vector<17x17xf32>, vector<17x8xf32>, vector<17x8xf32> -> vector<17x8xf32>
    %68 = vector.extract_strided_slice %20 {offsets = [0, 24], sizes = [17, 8], strides = [1, 1]} : vector<17x32xf32> to vector<17x8xf32>
    %69 = vector.extract_strided_slice %21 {offsets = [0, 24], sizes = [17, 8], strides = [1, 1]} : vector<17x32xf32> to vector<17x8xf32>
    %70 = vector.extract_strided_slice %22 {offsets = [0, 24], sizes = [17, 8], strides = [1, 1]} : vector<17x32xf32> to vector<17x8xf32>
    %cst_30 = arith.constant dense<0.000000e+00> : vector<17x17xf32>
    %71 = tpu.matmul %68, %69, %cst_30 {dimension_numbers = #tpu.dot_dimension_numbers<[1], [1], [0], [0], [0, 0, 1, 0], [], []>} : vector<17x8xf32>, vector<17x8xf32>, vector<17x17xf32> -> vector<17x17xf32>
    %cst_31 = arith.constant dense<0xFF800000> : vector<17xf32>
    %72 = vector.multi_reduction <maximumf>, %71, %cst_31 [1] : vector<17x17xf32> to vector<17xf32>
    %73 = vector.shape_cast %72 : vector<17xf32> to vector<17x1xf32>
    %74 = vector.broadcast %73 : vector<17x1xf32> to vector<17x17xf32>
    %75 = arith.subf %71, %74 : vector<17x17xf32>
    %76 = math.exp %75 : vector<17x17xf32>
    %cst_32 = arith.constant dense<0.000000e+00> : vector<17xf32>
    %77 = vector.multi_reduction <add>, %76, %cst_32 [1] : vector<17x17xf32> to vector<17xf32>
    %78 = vector.shape_cast %77 : vector<17xf32> to vector<17x1xf32>
    %79 = tpu.reciprocal %78 {approx = true} : vector<17x1xf32> -> vector<17x1xf32>
    %80 = vector.broadcast %79 : vector<17x1xf32> to vector<17x17xf32>
    %81 = arith.mulf %76, %80 : vector<17x17xf32>
    %cst_33 = arith.constant dense<0.000000e+00> : vector<17x8xf32>
    %82 = tpu.matmul %81, %70, %cst_33 {dimension_numbers = #tpu.dot_dimension_numbers<[1], [0], [0], [1], [0, 0, 1, 1], [], []>} : vector<17x17xf32>, vector<17x8xf32>, vector<17x8xf32> -> vector<17x8xf32>
    %83 = tpu.concatenate %37, %52, %67, %82 in 1 : vector<17x8xf32>, vector<17x8xf32>, vector<17x8xf32>, vector<17x8xf32> -> vector<17x32xf32>
    %c0_34 = arith.constant 0 : index
    %c0_35 = arith.constant 0 : index
    %c0_36 = arith.constant 0 : index
    %84 = vector.load %arg8[%c0_34, %c0_35, %c0_36] : memref<2x32x32xf32, #tpu.memory_space<vmem>>, vector<1x32x32xf32>
    %85 = vector.shape_cast %84 : vector<1x32x32xf32> to vector<32x32xf32>
    %cst_37 = arith.constant dense<0.000000e+00> : vector<17x32xf32>
    %86 = tpu.matmul %83, %85, %cst_37 {dimension_numbers = #tpu.dot_dimension_numbers<[1], [0], [0], [1], [0, 0, 1, 1], [], []>} : vector<17x32xf32>, vector<32x32xf32>, vector<17x32xf32> -> vector<17x32xf32>
    %c0_38 = arith.constant 0 : index
    %c0_39 = arith.constant 0 : index
    %c0_40 = arith.constant 0 : index
    %87 = vector.load %arg9[%c0_38, %c0_39, %c0_40] : memref<2x1x32xf32, #tpu.memory_space<vmem>>, vector<1x1x32xf32>
    %88 = vector.shape_cast %87 : vector<1x1x32xf32> to vector<1x32xf32>
    %89 = vector.broadcast %88 : vector<1x32xf32> to vector<17x32xf32>
    %90 = arith.addf %86, %89 : vector<17x32xf32>
    %91 = arith.addf %10, %90 : vector<17x32xf32>
    %c0_41 = arith.constant 0 : index
    %c0_42 = arith.constant 0 : index
    %c0_43 = arith.constant 0 : index
    %92 = vector.load %arg10[%c0_41, %c0_42, %c0_43] : memref<2x1x32xf32, #tpu.memory_space<vmem>>, vector<1x1x32xf32>
    %93 = vector.shape_cast %92 : vector<1x1x32xf32> to vector<1x32xf32>
    %c0_44 = arith.constant 0 : index
    %c0_45 = arith.constant 0 : index
    %c0_46 = arith.constant 0 : index
    %94 = vector.load %arg11[%c0_44, %c0_45, %c0_46] : memref<2x1x32xf32, #tpu.memory_space<vmem>>, vector<1x1x32xf32>
    %95 = vector.shape_cast %94 : vector<1x1x32xf32> to vector<1x32xf32>
    %cst_47 = arith.constant dense<0.000000e+00> : vector<17xf32>
    %96 = vector.multi_reduction <add>, %91, %cst_47 [1] : vector<17x32xf32> to vector<17xf32>
    %97 = vector.shape_cast %96 : vector<17xf32> to vector<17x1xf32>
    %cst_48 = arith.constant 3.200000e+01 : f32
    %98 = vector.broadcast %cst_48 : f32 to vector<17x1xf32>
    %99 = arith.divf %97, %98 : vector<17x1xf32>
    %100 = vector.broadcast %99 : vector<17x1xf32> to vector<17x32xf32>
    %101 = arith.subf %91, %100 : vector<17x32xf32>
    %102 = arith.mulf %101, %101 : vector<17x32xf32>
    %cst_49 = arith.constant dense<0.000000e+00> : vector<17xf32>
    %103 = vector.multi_reduction <add>, %102, %cst_49 [1] : vector<17x32xf32> to vector<17xf32>
    %104 = vector.shape_cast %103 : vector<17xf32> to vector<17x1xf32>
    %cst_50 = arith.constant 3.200000e+01 : f32
    %105 = vector.broadcast %cst_50 : f32 to vector<17x1xf32>
    %106 = arith.divf %104, %105 : vector<17x1xf32>
    %cst_51 = arith.constant 9.99999974E-6 : f32
    %107 = vector.broadcast %cst_51 : f32 to vector<17x1xf32>
    %108 = arith.addf %106, %107 : vector<17x1xf32>
    %109 = math.rsqrt %108 : vector<17x1xf32>
    %110 = vector.broadcast %109 : vector<17x1xf32> to vector<17x32xf32>
    %111 = arith.mulf %101, %110 : vector<17x32xf32>
    %112 = vector.broadcast %93 : vector<1x32xf32> to vector<17x32xf32>
    %113 = arith.mulf %111, %112 : vector<17x32xf32>
    %114 = vector.broadcast %95 : vector<1x32xf32> to vector<17x32xf32>
    %115 = arith.addf %113, %114 : vector<17x32xf32>
    %c0_52 = arith.constant 0 : index
    %c0_53 = arith.constant 0 : index
    %c0_54 = arith.constant 0 : index
    %116 = vector.load %arg12[%c0_52, %c0_53, %c0_54] : memref<2x32x128xf32, #tpu.memory_space<vmem>>, vector<1x32x128xf32>
    %117 = vector.shape_cast %116 : vector<1x32x128xf32> to vector<32x128xf32>
    %cst_55 = arith.constant dense<0.000000e+00> : vector<17x128xf32>
    %118 = tpu.matmul %115, %117, %cst_55 {dimension_numbers = #tpu.dot_dimension_numbers<[1], [0], [0], [1], [0, 0, 1, 1], [], []>} : vector<17x32xf32>, vector<32x128xf32>, vector<17x128xf32> -> vector<17x128xf32>
    %c0_56 = arith.constant 0 : index
    %c0_57 = arith.constant 0 : index
    %c0_58 = arith.constant 0 : index
    %119 = vector.load %arg13[%c0_56, %c0_57, %c0_58] : memref<2x1x128xf32, #tpu.memory_space<vmem>>, vector<1x1x128xf32>
    %120 = vector.shape_cast %119 : vector<1x1x128xf32> to vector<1x128xf32>
    %121 = vector.broadcast %120 : vector<1x128xf32> to vector<17x128xf32>
    %122 = arith.addf %118, %121 : vector<17x128xf32>
    %123 = arith.mulf %122, %122 : vector<17x128xf32>
    %124 = arith.mulf %122, %123 : vector<17x128xf32>
    %cst_59 = arith.constant 4.471500e-02 : f32
    %125 = vector.broadcast %cst_59 : f32 to vector<17x128xf32>
    %126 = arith.mulf %125, %124 : vector<17x128xf32>
    %127 = arith.addf %122, %126 : vector<17x128xf32>
    %cst_60 = arith.constant 0.797884583 : f32
    %128 = vector.broadcast %cst_60 : f32 to vector<17x128xf32>
    %129 = arith.mulf %128, %127 : vector<17x128xf32>
    %130 = math.tanh %129 : vector<17x128xf32>
    %cst_61 = arith.constant 1.000000e+00 : f32
    %131 = vector.broadcast %cst_61 : f32 to vector<17x128xf32>
    %132 = arith.addf %131, %130 : vector<17x128xf32>
    %cst_62 = arith.constant 5.000000e-01 : f32
    %133 = vector.broadcast %cst_62 : f32 to vector<17x128xf32>
    %134 = arith.mulf %133, %132 : vector<17x128xf32>
    %135 = arith.mulf %122, %134 : vector<17x128xf32>
    %c0_63 = arith.constant 0 : index
    %c0_64 = arith.constant 0 : index
    %c0_65 = arith.constant 0 : index
    %136 = vector.load %arg14[%c0_63, %c0_64, %c0_65] : memref<2x128x32xf32, #tpu.memory_space<vmem>>, vector<1x128x32xf32>
    %137 = vector.shape_cast %136 : vector<1x128x32xf32> to vector<128x32xf32>
    %cst_66 = arith.constant dense<0.000000e+00> : vector<17x32xf32>
    %138 = tpu.matmul %135, %137, %cst_66 {dimension_numbers = #tpu.dot_dimension_numbers<[1], [0], [0], [1], [0, 0, 1, 1], [], []>} : vector<17x128xf32>, vector<128x32xf32>, vector<17x32xf32> -> vector<17x32xf32>
    %c0_67 = arith.constant 0 : index
    %c0_68 = arith.constant 0 : index
    %c0_69 = arith.constant 0 : index
    %139 = vector.load %arg15[%c0_67, %c0_68, %c0_69] : memref<2x1x32xf32, #tpu.memory_space<vmem>>, vector<1x1x32xf32>
    %140 = vector.shape_cast %139 : vector<1x1x32xf32> to vector<1x32xf32>
    %141 = vector.broadcast %140 : vector<1x32xf32> to vector<17x32xf32>
    %142 = arith.addf %138, %141 : vector<17x32xf32>
    %143 = arith.addf %115, %142 : vector<17x32xf32>
    %c0_70 = arith.constant 0 : index
    %c0_71 = arith.constant 0 : index
    %c0_72 = arith.constant 0 : index
    %144 = vector.load %arg16[%c0_70, %c0_71, %c0_72] : memref<2x1x32xf32, #tpu.memory_space<vmem>>, vector<1x1x32xf32>
    %145 = vector.shape_cast %144 : vector<1x1x32xf32> to vector<1x32xf32>
    %c0_73 = arith.constant 0 : index
    %c0_74 = arith.constant 0 : index
    %c0_75 = arith.constant 0 : index
    %146 = vector.load %arg17[%c0_73, %c0_74, %c0_75] : memref<2x1x32xf32, #tpu.memory_space<vmem>>, vector<1x1x32xf32>
    %147 = vector.shape_cast %146 : vector<1x1x32xf32> to vector<1x32xf32>
    %cst_76 = arith.constant dense<0.000000e+00> : vector<17xf32>
    %148 = vector.multi_reduction <add>, %143, %cst_76 [1] : vector<17x32xf32> to vector<17xf32>
    %149 = vector.shape_cast %148 : vector<17xf32> to vector<17x1xf32>
    %cst_77 = arith.constant 3.200000e+01 : f32
    %150 = vector.broadcast %cst_77 : f32 to vector<17x1xf32>
    %151 = arith.divf %149, %150 : vector<17x1xf32>
    %152 = vector.broadcast %151 : vector<17x1xf32> to vector<17x32xf32>
    %153 = arith.subf %143, %152 : vector<17x32xf32>
    %154 = arith.mulf %153, %153 : vector<17x32xf32>
    %cst_78 = arith.constant dense<0.000000e+00> : vector<17xf32>
    %155 = vector.multi_reduction <add>, %154, %cst_78 [1] : vector<17x32xf32> to vector<17xf32>
    %156 = vector.shape_cast %155 : vector<17xf32> to vector<17x1xf32>
    %cst_79 = arith.constant 3.200000e+01 : f32
    %157 = vector.broadcast %cst_79 : f32 to vector<17x1xf32>
    %158 = arith.divf %156, %157 : vector<17x1xf32>
    %cst_80 = arith.constant 9.99999974E-6 : f32
    %159 = vector.broadcast %cst_80 : f32 to vector<17x1xf32>
    %160 = arith.addf %158, %159 : vector<17x1xf32>
    %161 = math.rsqrt %160 : vector<17x1xf32>
    %162 = vector.broadcast %161 : vector<17x1xf32> to vector<17x32xf32>
    %163 = arith.mulf %153, %162 : vector<17x32xf32>
    %164 = vector.broadcast %145 : vector<1x32xf32> to vector<17x32xf32>
    %165 = arith.mulf %163, %164 : vector<17x32xf32>
    %166 = vector.broadcast %147 : vector<1x32xf32> to vector<17x32xf32>
    %167 = arith.addf %165, %166 : vector<17x32xf32>
    %c1 = arith.constant 1 : index
    %c0_81 = arith.constant 0 : index
    %c0_82 = arith.constant 0 : index
    %168 = vector.load %arg6[%c1, %c0_81, %c0_82] : memref<2x32x96xf32, #tpu.memory_space<vmem>>, vector<1x32x96xf32>
    %169 = vector.shape_cast %168 : vector<1x32x96xf32> to vector<32x96xf32>
    %cst_83 = arith.constant dense<0.000000e+00> : vector<17x96xf32>
    %170 = tpu.matmul %167, %169, %cst_83 {dimension_numbers = #tpu.dot_dimension_numbers<[1], [0], [0], [1], [0, 0, 1, 1], [], []>} : vector<17x32xf32>, vector<32x96xf32>, vector<17x96xf32> -> vector<17x96xf32>
    %c1_84 = arith.constant 1 : index
    %c0_85 = arith.constant 0 : index
    %c0_86 = arith.constant 0 : index
    %171 = vector.load %arg7[%c1_84, %c0_85, %c0_86] : memref<2x1x96xf32, #tpu.memory_space<vmem>>, vector<1x1x96xf32>
    %172 = vector.shape_cast %171 : vector<1x1x96xf32> to vector<1x96xf32>
    %173 = vector.broadcast %172 : vector<1x96xf32> to vector<17x96xf32>
    %174 = arith.addf %170, %173 : vector<17x96xf32>
    %175 = vector.extract_strided_slice %174 {offsets = [0, 0], sizes = [17, 32], strides = [1, 1]} : vector<17x96xf32> to vector<17x32xf32>
    %cst_87 = arith.constant 0.353553385 : f32
    %176 = vector.broadcast %cst_87 : f32 to vector<17x32xf32>
    %177 = arith.mulf %175, %176 : vector<17x32xf32>
    %178 = vector.extract_strided_slice %174 {offsets = [0, 32], sizes = [17, 32], strides = [1, 1]} : vector<17x96xf32> to vector<17x32xf32>
    %179 = vector.extract_strided_slice %174 {offsets = [0, 64], sizes = [17, 32], strides = [1, 1]} : vector<17x96xf32> to vector<17x32xf32>
    %180 = vector.extract_strided_slice %177 {offsets = [0, 0], sizes = [17, 8], strides = [1, 1]} : vector<17x32xf32> to vector<17x8xf32>
    %181 = vector.extract_strided_slice %178 {offsets = [0, 0], sizes = [17, 8], strides = [1, 1]} : vector<17x32xf32> to vector<17x8xf32>
    %182 = vector.extract_strided_slice %179 {offsets = [0, 0], sizes = [17, 8], strides = [1, 1]} : vector<17x32xf32> to vector<17x8xf32>
    %cst_88 = arith.constant dense<0.000000e+00> : vector<17x17xf32>
    %183 = tpu.matmul %180, %181, %cst_88 {dimension_numbers = #tpu.dot_dimension_numbers<[1], [1], [0], [0], [0, 0, 1, 0], [], []>} : vector<17x8xf32>, vector<17x8xf32>, vector<17x17xf32> -> vector<17x17xf32>
    %cst_89 = arith.constant dense<0xFF800000> : vector<17xf32>
    %184 = vector.multi_reduction <maximumf>, %183, %cst_89 [1] : vector<17x17xf32> to vector<17xf32>
    %185 = vector.shape_cast %184 : vector<17xf32> to vector<17x1xf32>
    %186 = vector.broadcast %185 : vector<17x1xf32> to vector<17x17xf32>
    %187 = arith.subf %183, %186 : vector<17x17xf32>
    %188 = math.exp %187 : vector<17x17xf32>
    %cst_90 = arith.constant dense<0.000000e+00> : vector<17xf32>
    %189 = vector.multi_reduction <add>, %188, %cst_90 [1] : vector<17x17xf32> to vector<17xf32>
    %190 = vector.shape_cast %189 : vector<17xf32> to vector<17x1xf32>
    %191 = tpu.reciprocal %190 {approx = true} : vector<17x1xf32> -> vector<17x1xf32>
    %192 = vector.broadcast %191 : vector<17x1xf32> to vector<17x17xf32>
    %193 = arith.mulf %188, %192 : vector<17x17xf32>
    %cst_91 = arith.constant dense<0.000000e+00> : vector<17x8xf32>
    %194 = tpu.matmul %193, %182, %cst_91 {dimension_numbers = #tpu.dot_dimension_numbers<[1], [0], [0], [1], [0, 0, 1, 1], [], []>} : vector<17x17xf32>, vector<17x8xf32>, vector<17x8xf32> -> vector<17x8xf32>
    %195 = vector.extract_strided_slice %177 {offsets = [0, 8], sizes = [17, 8], strides = [1, 1]} : vector<17x32xf32> to vector<17x8xf32>
    %196 = vector.extract_strided_slice %178 {offsets = [0, 8], sizes = [17, 8], strides = [1, 1]} : vector<17x32xf32> to vector<17x8xf32>
    %197 = vector.extract_strided_slice %179 {offsets = [0, 8], sizes = [17, 8], strides = [1, 1]} : vector<17x32xf32> to vector<17x8xf32>
    %cst_92 = arith.constant dense<0.000000e+00> : vector<17x17xf32>
    %198 = tpu.matmul %195, %196, %cst_92 {dimension_numbers = #tpu.dot_dimension_numbers<[1], [1], [0], [0], [0, 0, 1, 0], [], []>} : vector<17x8xf32>, vector<17x8xf32>, vector<17x17xf32> -> vector<17x17xf32>
    %cst_93 = arith.constant dense<0xFF800000> : vector<17xf32>
    %199 = vector.multi_reduction <maximumf>, %198, %cst_93 [1] : vector<17x17xf32> to vector<17xf32>
    %200 = vector.shape_cast %199 : vector<17xf32> to vector<17x1xf32>
    %201 = vector.broadcast %200 : vector<17x1xf32> to vector<17x17xf32>
    %202 = arith.subf %198, %201 : vector<17x17xf32>
    %203 = math.exp %202 : vector<17x17xf32>
    %cst_94 = arith.constant dense<0.000000e+00> : vector<17xf32>
    %204 = vector.multi_reduction <add>, %203, %cst_94 [1] : vector<17x17xf32> to vector<17xf32>
    %205 = vector.shape_cast %204 : vector<17xf32> to vector<17x1xf32>
    %206 = tpu.reciprocal %205 {approx = true} : vector<17x1xf32> -> vector<17x1xf32>
    %207 = vector.broadcast %206 : vector<17x1xf32> to vector<17x17xf32>
    %208 = arith.mulf %203, %207 : vector<17x17xf32>
    %cst_95 = arith.constant dense<0.000000e+00> : vector<17x8xf32>
    %209 = tpu.matmul %208, %197, %cst_95 {dimension_numbers = #tpu.dot_dimension_numbers<[1], [0], [0], [1], [0, 0, 1, 1], [], []>} : vector<17x17xf32>, vector<17x8xf32>, vector<17x8xf32> -> vector<17x8xf32>
    %210 = vector.extract_strided_slice %177 {offsets = [0, 16], sizes = [17, 8], strides = [1, 1]} : vector<17x32xf32> to vector<17x8xf32>
    %211 = vector.extract_strided_slice %178 {offsets = [0, 16], sizes = [17, 8], strides = [1, 1]} : vector<17x32xf32> to vector<17x8xf32>
    %212 = vector.extract_strided_slice %179 {offsets = [0, 16], sizes = [17, 8], strides = [1, 1]} : vector<17x32xf32> to vector<17x8xf32>
    %cst_96 = arith.constant dense<0.000000e+00> : vector<17x17xf32>
    %213 = tpu.matmul %210, %211, %cst_96 {dimension_numbers = #tpu.dot_dimension_numbers<[1], [1], [0], [0], [0, 0, 1, 0], [], []>} : vector<17x8xf32>, vector<17x8xf32>, vector<17x17xf32> -> vector<17x17xf32>
    %cst_97 = arith.constant dense<0xFF800000> : vector<17xf32>
    %214 = vector.multi_reduction <maximumf>, %213, %cst_97 [1] : vector<17x17xf32> to vector<17xf32>
    %215 = vector.shape_cast %214 : vector<17xf32> to vector<17x1xf32>
    %216 = vector.broadcast %215 : vector<17x1xf32> to vector<17x17xf32>
    %217 = arith.subf %213, %216 : vector<17x17xf32>
    %218 = math.exp %217 : vector<17x17xf32>
    %cst_98 = arith.constant dense<0.000000e+00> : vector<17xf32>
    %219 = vector.multi_reduction <add>, %218, %cst_98 [1] : vector<17x17xf32> to vector<17xf32>
    %220 = vector.shape_cast %219 : vector<17xf32> to vector<17x1xf32>
    %221 = tpu.reciprocal %220 {approx = true} : vector<17x1xf32> -> vector<17x1xf32>
    %222 = vector.broadcast %221 : vector<17x1xf32> to vector<17x17xf32>
    %223 = arith.mulf %218, %222 : vector<17x17xf32>
    %cst_99 = arith.constant dense<0.000000e+00> : vector<17x8xf32>
    %224 = tpu.matmul %223, %212, %cst_99 {dimension_numbers = #tpu.dot_dimension_numbers<[1], [0], [0], [1], [0, 0, 1, 1], [], []>} : vector<17x17xf32>, vector<17x8xf32>, vector<17x8xf32> -> vector<17x8xf32>
    %225 = vector.extract_strided_slice %177 {offsets = [0, 24], sizes = [17, 8], strides = [1, 1]} : vector<17x32xf32> to vector<17x8xf32>
    %226 = vector.extract_strided_slice %178 {offsets = [0, 24], sizes = [17, 8], strides = [1, 1]} : vector<17x32xf32> to vector<17x8xf32>
    %227 = vector.extract_strided_slice %179 {offsets = [0, 24], sizes = [17, 8], strides = [1, 1]} : vector<17x32xf32> to vector<17x8xf32>
    %cst_100 = arith.constant dense<0.000000e+00> : vector<17x17xf32>
    %228 = tpu.matmul %225, %226, %cst_100 {dimension_numbers = #tpu.dot_dimension_numbers<[1], [1], [0], [0], [0, 0, 1, 0], [], []>} : vector<17x8xf32>, vector<17x8xf32>, vector<17x17xf32> -> vector<17x17xf32>
    %cst_101 = arith.constant dense<0xFF800000> : vector<17xf32>
    %229 = vector.multi_reduction <maximumf>, %228, %cst_101 [1] : vector<17x17xf32> to vector<17xf32>
    %230 = vector.shape_cast %229 : vector<17xf32> to vector<17x1xf32>
    %231 = vector.broadcast %230 : vector<17x1xf32> to vector<17x17xf32>
    %232 = arith.subf %228, %231 : vector<17x17xf32>
    %233 = math.exp %232 : vector<17x17xf32>
    %cst_102 = arith.constant dense<0.000000e+00> : vector<17xf32>
    %234 = vector.multi_reduction <add>, %233, %cst_102 [1] : vector<17x17xf32> to vector<17xf32>
    %235 = vector.shape_cast %234 : vector<17xf32> to vector<17x1xf32>
    %236 = tpu.reciprocal %235 {approx = true} : vector<17x1xf32> -> vector<17x1xf32>
    %237 = vector.broadcast %236 : vector<17x1xf32> to vector<17x17xf32>
    %238 = arith.mulf %233, %237 : vector<17x17xf32>
    %cst_103 = arith.constant dense<0.000000e+00> : vector<17x8xf32>
    %239 = tpu.matmul %238, %227, %cst_103 {dimension_numbers = #tpu.dot_dimension_numbers<[1], [0], [0], [1], [0, 0, 1, 1], [], []>} : vector<17x17xf32>, vector<17x8xf32>, vector<17x8xf32> -> vector<17x8xf32>
    %240 = tpu.concatenate %194, %209, %224, %239 in 1 : vector<17x8xf32>, vector<17x8xf32>, vector<17x8xf32>, vector<17x8xf32> -> vector<17x32xf32>
    %c1_104 = arith.constant 1 : index
    %c0_105 = arith.constant 0 : index
    %c0_106 = arith.constant 0 : index
    %241 = vector.load %arg8[%c1_104, %c0_105, %c0_106] : memref<2x32x32xf32, #tpu.memory_space<vmem>>, vector<1x32x32xf32>
    %242 = vector.shape_cast %241 : vector<1x32x32xf32> to vector<32x32xf32>
    %cst_107 = arith.constant dense<0.000000e+00> : vector<17x32xf32>
    %243 = tpu.matmul %240, %242, %cst_107 {dimension_numbers = #tpu.dot_dimension_numbers<[1], [0], [0], [1], [0, 0, 1, 1], [], []>} : vector<17x32xf32>, vector<32x32xf32>, vector<17x32xf32> -> vector<17x32xf32>
    %c1_108 = arith.constant 1 : index
    %c0_109 = arith.constant 0 : index
    %c0_110 = arith.constant 0 : index
    %244 = vector.load %arg9[%c1_108, %c0_109, %c0_110] : memref<2x1x32xf32, #tpu.memory_space<vmem>>, vector<1x1x32xf32>
    %245 = vector.shape_cast %244 : vector<1x1x32xf32> to vector<1x32xf32>
    %246 = vector.broadcast %245 : vector<1x32xf32> to vector<17x32xf32>
    %247 = arith.addf %243, %246 : vector<17x32xf32>
    %248 = arith.addf %167, %247 : vector<17x32xf32>
    %c1_111 = arith.constant 1 : index
    %c0_112 = arith.constant 0 : index
    %c0_113 = arith.constant 0 : index
    %249 = vector.load %arg10[%c1_111, %c0_112, %c0_113] : memref<2x1x32xf32, #tpu.memory_space<vmem>>, vector<1x1x32xf32>
    %250 = vector.shape_cast %249 : vector<1x1x32xf32> to vector<1x32xf32>
    %c1_114 = arith.constant 1 : index
    %c0_115 = arith.constant 0 : index
    %c0_116 = arith.constant 0 : index
    %251 = vector.load %arg11[%c1_114, %c0_115, %c0_116] : memref<2x1x32xf32, #tpu.memory_space<vmem>>, vector<1x1x32xf32>
    %252 = vector.shape_cast %251 : vector<1x1x32xf32> to vector<1x32xf32>
    %cst_117 = arith.constant dense<0.000000e+00> : vector<17xf32>
    %253 = vector.multi_reduction <add>, %248, %cst_117 [1] : vector<17x32xf32> to vector<17xf32>
    %254 = vector.shape_cast %253 : vector<17xf32> to vector<17x1xf32>
    %cst_118 = arith.constant 3.200000e+01 : f32
    %255 = vector.broadcast %cst_118 : f32 to vector<17x1xf32>
    %256 = arith.divf %254, %255 : vector<17x1xf32>
    %257 = vector.broadcast %256 : vector<17x1xf32> to vector<17x32xf32>
    %258 = arith.subf %248, %257 : vector<17x32xf32>
    %259 = arith.mulf %258, %258 : vector<17x32xf32>
    %cst_119 = arith.constant dense<0.000000e+00> : vector<17xf32>
    %260 = vector.multi_reduction <add>, %259, %cst_119 [1] : vector<17x32xf32> to vector<17xf32>
    %261 = vector.shape_cast %260 : vector<17xf32> to vector<17x1xf32>
    %cst_120 = arith.constant 3.200000e+01 : f32
    %262 = vector.broadcast %cst_120 : f32 to vector<17x1xf32>
    %263 = arith.divf %261, %262 : vector<17x1xf32>
    %cst_121 = arith.constant 9.99999974E-6 : f32
    %264 = vector.broadcast %cst_121 : f32 to vector<17x1xf32>
    %265 = arith.addf %263, %264 : vector<17x1xf32>
    %266 = math.rsqrt %265 : vector<17x1xf32>
    %267 = vector.broadcast %266 : vector<17x1xf32> to vector<17x32xf32>
    %268 = arith.mulf %258, %267 : vector<17x32xf32>
    %269 = vector.broadcast %250 : vector<1x32xf32> to vector<17x32xf32>
    %270 = arith.mulf %268, %269 : vector<17x32xf32>
    %271 = vector.broadcast %252 : vector<1x32xf32> to vector<17x32xf32>
    %272 = arith.addf %270, %271 : vector<17x32xf32>
    %c1_122 = arith.constant 1 : index
    %c0_123 = arith.constant 0 : index
    %c0_124 = arith.constant 0 : index
    %273 = vector.load %arg12[%c1_122, %c0_123, %c0_124] : memref<2x32x128xf32, #tpu.memory_space<vmem>>, vector<1x32x128xf32>
    %274 = vector.shape_cast %273 : vector<1x32x128xf32> to vector<32x128xf32>
    %cst_125 = arith.constant dense<0.000000e+00> : vector<17x128xf32>
    %275 = tpu.matmul %272, %274, %cst_125 {dimension_numbers = #tpu.dot_dimension_numbers<[1], [0], [0], [1], [0, 0, 1, 1], [], []>} : vector<17x32xf32>, vector<32x128xf32>, vector<17x128xf32> -> vector<17x128xf32>
    %c1_126 = arith.constant 1 : index
    %c0_127 = arith.constant 0 : index
    %c0_128 = arith.constant 0 : index
    %276 = vector.load %arg13[%c1_126, %c0_127, %c0_128] : memref<2x1x128xf32, #tpu.memory_space<vmem>>, vector<1x1x128xf32>
    %277 = vector.shape_cast %276 : vector<1x1x128xf32> to vector<1x128xf32>
    %278 = vector.broadcast %277 : vector<1x128xf32> to vector<17x128xf32>
    %279 = arith.addf %275, %278 : vector<17x128xf32>
    %280 = arith.mulf %279, %279 : vector<17x128xf32>
    %281 = arith.mulf %279, %280 : vector<17x128xf32>
    %cst_129 = arith.constant 4.471500e-02 : f32
    %282 = vector.broadcast %cst_129 : f32 to vector<17x128xf32>
    %283 = arith.mulf %282, %281 : vector<17x128xf32>
    %284 = arith.addf %279, %283 : vector<17x128xf32>
    %cst_130 = arith.constant 0.797884583 : f32
    %285 = vector.broadcast %cst_130 : f32 to vector<17x128xf32>
    %286 = arith.mulf %285, %284 : vector<17x128xf32>
    %287 = math.tanh %286 : vector<17x128xf32>
    %cst_131 = arith.constant 1.000000e+00 : f32
    %288 = vector.broadcast %cst_131 : f32 to vector<17x128xf32>
    %289 = arith.addf %288, %287 : vector<17x128xf32>
    %cst_132 = arith.constant 5.000000e-01 : f32
    %290 = vector.broadcast %cst_132 : f32 to vector<17x128xf32>
    %291 = arith.mulf %290, %289 : vector<17x128xf32>
    %292 = arith.mulf %279, %291 : vector<17x128xf32>
    %c1_133 = arith.constant 1 : index
    %c0_134 = arith.constant 0 : index
    %c0_135 = arith.constant 0 : index
    %293 = vector.load %arg14[%c1_133, %c0_134, %c0_135] : memref<2x128x32xf32, #tpu.memory_space<vmem>>, vector<1x128x32xf32>
    %294 = vector.shape_cast %293 : vector<1x128x32xf32> to vector<128x32xf32>
    %cst_136 = arith.constant dense<0.000000e+00> : vector<17x32xf32>
    %295 = tpu.matmul %292, %294, %cst_136 {dimension_numbers = #tpu.dot_dimension_numbers<[1], [0], [0], [1], [0, 0, 1, 1], [], []>} : vector<17x128xf32>, vector<128x32xf32>, vector<17x32xf32> -> vector<17x32xf32>
    %c1_137 = arith.constant 1 : index
    %c0_138 = arith.constant 0 : index
    %c0_139 = arith.constant 0 : index
    %296 = vector.load %arg15[%c1_137, %c0_138, %c0_139] : memref<2x1x32xf32, #tpu.memory_space<vmem>>, vector<1x1x32xf32>
    %297 = vector.shape_cast %296 : vector<1x1x32xf32> to vector<1x32xf32>
    %298 = vector.broadcast %297 : vector<1x32xf32> to vector<17x32xf32>
    %299 = arith.addf %295, %298 : vector<17x32xf32>
    %300 = arith.addf %272, %299 : vector<17x32xf32>
    %c1_140 = arith.constant 1 : index
    %c0_141 = arith.constant 0 : index
    %c0_142 = arith.constant 0 : index
    %301 = vector.load %arg16[%c1_140, %c0_141, %c0_142] : memref<2x1x32xf32, #tpu.memory_space<vmem>>, vector<1x1x32xf32>
    %302 = vector.shape_cast %301 : vector<1x1x32xf32> to vector<1x32xf32>
    %c1_143 = arith.constant 1 : index
    %c0_144 = arith.constant 0 : index
    %c0_145 = arith.constant 0 : index
    %303 = vector.load %arg17[%c1_143, %c0_144, %c0_145] : memref<2x1x32xf32, #tpu.memory_space<vmem>>, vector<1x1x32xf32>
    %304 = vector.shape_cast %303 : vector<1x1x32xf32> to vector<1x32xf32>
    %cst_146 = arith.constant dense<0.000000e+00> : vector<17xf32>
    %305 = vector.multi_reduction <add>, %300, %cst_146 [1] : vector<17x32xf32> to vector<17xf32>
    %306 = vector.shape_cast %305 : vector<17xf32> to vector<17x1xf32>
    %cst_147 = arith.constant 3.200000e+01 : f32
    %307 = vector.broadcast %cst_147 : f32 to vector<17x1xf32>
    %308 = arith.divf %306, %307 : vector<17x1xf32>
    %309 = vector.broadcast %308 : vector<17x1xf32> to vector<17x32xf32>
    %310 = arith.subf %300, %309 : vector<17x32xf32>
    %311 = arith.mulf %310, %310 : vector<17x32xf32>
    %cst_148 = arith.constant dense<0.000000e+00> : vector<17xf32>
    %312 = vector.multi_reduction <add>, %311, %cst_148 [1] : vector<17x32xf32> to vector<17xf32>
    %313 = vector.shape_cast %312 : vector<17xf32> to vector<17x1xf32>
    %cst_149 = arith.constant 3.200000e+01 : f32
    %314 = vector.broadcast %cst_149 : f32 to vector<17x1xf32>
    %315 = arith.divf %313, %314 : vector<17x1xf32>
    %cst_150 = arith.constant 9.99999974E-6 : f32
    %316 = vector.broadcast %cst_150 : f32 to vector<17x1xf32>
    %317 = arith.addf %315, %316 : vector<17x1xf32>
    %318 = math.rsqrt %317 : vector<17x1xf32>
    %319 = vector.broadcast %318 : vector<17x1xf32> to vector<17x32xf32>
    %320 = arith.mulf %310, %319 : vector<17x32xf32>
    %321 = vector.broadcast %302 : vector<1x32xf32> to vector<17x32xf32>
    %322 = arith.mulf %320, %321 : vector<17x32xf32>
    %323 = vector.broadcast %304 : vector<1x32xf32> to vector<17x32xf32>
    %324 = arith.addf %322, %323 : vector<17x32xf32>
    %325 = vector.extract_strided_slice %324 {offsets = [0, 0], sizes = [1, 32], strides = [1, 1]} : vector<17x32xf32> to vector<1x32xf32>
    %c0_151 = arith.constant 0 : index
    %c0_152 = arith.constant 0 : index
    %326 = vector.load %arg18[%c0_151, %c0_152] : memref<1x32xf32, #tpu.memory_space<vmem>>, vector<1x32xf32>
    %c0_153 = arith.constant 0 : index
    %c0_154 = arith.constant 0 : index
    %327 = vector.load %arg19[%c0_153, %c0_154] : memref<1x32xf32, #tpu.memory_space<vmem>>, vector<1x32xf32>
    %cst_155 = arith.constant dense<0.000000e+00> : vector<1xf32>
    %328 = vector.multi_reduction <add>, %325, %cst_155 [1] : vector<1x32xf32> to vector<1xf32>
    %329 = vector.shape_cast %328 : vector<1xf32> to vector<1x1xf32>
    %cst_156 = arith.constant 3.200000e+01 : f32
    %330 = vector.broadcast %cst_156 : f32 to vector<1x1xf32>
    %331 = arith.divf %329, %330 : vector<1x1xf32>
    %332 = vector.broadcast %331 : vector<1x1xf32> to vector<1x32xf32>
    %333 = arith.subf %325, %332 : vector<1x32xf32>
    %334 = arith.mulf %333, %333 : vector<1x32xf32>
    %cst_157 = arith.constant dense<0.000000e+00> : vector<1xf32>
    %335 = vector.multi_reduction <add>, %334, %cst_157 [1] : vector<1x32xf32> to vector<1xf32>
    %336 = vector.shape_cast %335 : vector<1xf32> to vector<1x1xf32>
    %cst_158 = arith.constant 3.200000e+01 : f32
    %337 = vector.broadcast %cst_158 : f32 to vector<1x1xf32>
    %338 = arith.divf %336, %337 : vector<1x1xf32>
    %cst_159 = arith.constant 9.99999974E-6 : f32
    %339 = vector.broadcast %cst_159 : f32 to vector<1x1xf32>
    %340 = arith.addf %338, %339 : vector<1x1xf32>
    %341 = math.rsqrt %340 : vector<1x1xf32>
    %342 = vector.broadcast %341 : vector<1x1xf32> to vector<1x32xf32>
    %343 = arith.mulf %333, %342 : vector<1x32xf32>
    %344 = arith.mulf %343, %326 : vector<1x32xf32>
    %345 = arith.addf %344, %327 : vector<1x32xf32>
    %c0_160 = arith.constant 0 : index
    %c0_161 = arith.constant 0 : index
    %346 = vector.load %arg20[%c0_160, %c0_161] : memref<32x2xf32, #tpu.memory_space<vmem>>, vector<32x2xf32>
    %cst_162 = arith.constant dense<0.000000e+00> : vector<1x2xf32>
    %347 = tpu.matmul %345, %346, %cst_162 {dimension_numbers = #tpu.dot_dimension_numbers<[1], [0], [0], [1], [0, 0, 1, 1], [], []>} : vector<1x32xf32>, vector<32x2xf32>, vector<1x2xf32> -> vector<1x2xf32>
    %c0_163 = arith.constant 0 : index
    %c0_164 = arith.constant 0 : index
    %348 = vector.load %arg21[%c0_163, %c0_164] : memref<1x2xf32, #tpu.memory_space<vmem>>, vector<1x2xf32>
    %349 = arith.addf %347, %348 : vector<1x2xf32>
    %c0_165 = arith.constant 0 : index
    %c0_166 = arith.constant 0 : index
    %c0_167 = arith.constant 0 : index
    %350 = vector.load %arg22[%c0_165, %c0_166, %c0_167] : memref<1x1x2xf32, #tpu.memory_space<vmem>>, vector<1x1x2xf32>
    %351 = vector.shape_cast %350 : vector<1x1x2xf32> to vector<1x2xf32>
    %352 = vector.shape_cast %349 : vector<1x2xf32> to vector<1x1x2xf32>
    tpu.vector_store %arg22[%c0_165, %c0_166, %c0_167], %352 {strides = array<i32>} : memref<1x1x2xf32, #tpu.memory_space<vmem>>, vector<1x1x2xf32>,
    return
  }
  func.func @transform_0(%arg0: i32) -> (i32, i32, i32) {
    %c0_i32 = arith.constant 0 : i32
    %c0_i32_0 = arith.constant 0 : i32
    %c0_i32_1 = arith.constant 0 : i32
    return %arg0, %c0_i32, %c0_i32_0 : i32, i32, i32
  }
  func.func @transform_1(%arg0: i32) -> (i32, i32) {
    %c0_i32 = arith.constant 0 : i32
    %c0_i32_0 = arith.constant 0 : i32
    %c0_i32_1 = arith.constant 0 : i32
    return %c0_i32, %c0_i32_0 : i32, i32
  }
  func.func @transform_2(%arg0: i32) -> (i32, i32) {
    %c0_i32 = arith.constant 0 : i32
    %c0_i32_0 = arith.constant 0 : i32
    %c0_i32_1 = arith.constant 0 : i32
    return %c0_i32, %c0_i32_0 : i32, i32
  }
  func.func @transform_3(%arg0: i32) -> (i32, i32) {
    %c0_i32 = arith.constant 0 : i32
    %c0_i32_0 = arith.constant 0 : i32
    %c0_i32_1 = arith.constant 0 : i32
    return %c0_i32, %c0_i32_0 : i32, i32
  }
  func.func @transform_4(%arg0: i32) -> (i32, i32) {
    %c0_i32 = arith.constant 0 : i32
    %c0_i32_0 = arith.constant 0 : i32
    %c0_i32_1 = arith.constant 0 : i32
    return %c0_i32, %c0_i32_0 : i32, i32
  }
  func.func @transform_5(%arg0: i32) -> (i32, i32, i32) {
    %c0_i32 = arith.constant 0 : i32
    %c0_i32_0 = arith.constant 0 : i32
    %c0_i32_1 = arith.constant 0 : i32
    %c0_i32_2 = arith.constant 0 : i32
    return %c0_i32, %c0_i32_0, %c0_i32_1 : i32, i32, i32
  }
  func.func @transform_6(%arg0: i32) -> (i32, i32, i32) {
    %c0_i32 = arith.constant 0 : i32
    %c0_i32_0 = arith.constant 0 : i32
    %c0_i32_1 = arith.constant 0 : i32
    %c0_i32_2 = arith.constant 0 : i32
    return %c0_i32, %c0_i32_0, %c0_i32_1 : i32, i32, i32
  }
  func.func @transform_7(%arg0: i32) -> (i32, i32, i32) {
    %c0_i32 = arith.constant 0 : i32
    %c0_i32_0 = arith.constant 0 : i32
    %c0_i32_1 = arith.constant 0 : i32
    %c0_i32_2 = arith.constant 0 : i32
    return %c0_i32, %c0_i32_0, %c0_i32_1 : i32, i32, i32
  }
  func.func @transform_8(%arg0: i32) -> (i32, i32, i32) {
    %c0_i32 = arith.constant 0 : i32
    %c0_i32_0 = arith.constant 0 : i32
    %c0_i32_1 = arith.constant 0 : i32
    %c0_i32_2 = arith.constant 0 : i32
    return %c0_i32, %c0_i32_0, %c0_i32_1 : i32, i32, i32
  }
  func.func @transform_9(%arg0: i32) -> (i32, i32, i32) {
    %c0_i32 = arith.constant 0 : i32
    %c0_i32_0 = arith.constant 0 : i32
    %c0_i32_1 = arith.constant 0 : i32
    %c0_i32_2 = arith.constant 0 : i32
    return %c0_i32, %c0_i32_0, %c0_i32_1 : i32, i32, i32
  }
  func.func @transform_10(%arg0: i32) -> (i32, i32, i32) {
    %c0_i32 = arith.constant 0 : i32
    %c0_i32_0 = arith.constant 0 : i32
    %c0_i32_1 = arith.constant 0 : i32
    %c0_i32_2 = arith.constant 0 : i32
    return %c0_i32, %c0_i32_0, %c0_i32_1 : i32, i32, i32
  }
  func.func @transform_11(%arg0: i32) -> (i32, i32, i32) {
    %c0_i32 = arith.constant 0 : i32
    %c0_i32_0 = arith.constant 0 : i32
    %c0_i32_1 = arith.constant 0 : i32
    %c0_i32_2 = arith.constant 0 : i32
    return %c0_i32, %c0_i32_0, %c0_i32_1 : i32, i32, i32
  }
  func.func @transform_12(%arg0: i32) -> (i32, i32, i32) {
    %c0_i32 = arith.constant 0 : i32
    %c0_i32_0 = arith.constant 0 : i32
    %c0_i32_1 = arith.constant 0 : i32
    %c0_i32_2 = arith.constant 0 : i32
    return %c0_i32, %c0_i32_0, %c0_i32_1 : i32, i32, i32
  }
  func.func @transform_13(%arg0: i32) -> (i32, i32, i32) {
    %c0_i32 = arith.constant 0 : i32
    %c0_i32_0 = arith.constant 0 : i32
    %c0_i32_1 = arith.constant 0 : i32
    %c0_i32_2 = arith.constant 0 : i32
    return %c0_i32, %c0_i32_0, %c0_i32_1 : i32, i32, i32
  }
  func.func @transform_14(%arg0: i32) -> (i32, i32, i32) {
    %c0_i32 = arith.constant 0 : i32
    %c0_i32_0 = arith.constant 0 : i32
    %c0_i32_1 = arith.constant 0 : i32
    %c0_i32_2 = arith.constant 0 : i32
    return %c0_i32, %c0_i32_0, %c0_i32_1 : i32, i32, i32
  }
  func.func @transform_15(%arg0: i32) -> (i32, i32, i32) {
    %c0_i32 = arith.constant 0 : i32
    %c0_i32_0 = arith.constant 0 : i32
    %c0_i32_1 = arith.constant 0 : i32
    %c0_i32_2 = arith.constant 0 : i32
    return %c0_i32, %c0_i32_0, %c0_i32_1 : i32, i32, i32
  }
  func.func @transform_16(%arg0: i32) -> (i32, i32, i32) {
    %c0_i32 = arith.constant 0 : i32
    %c0_i32_0 = arith.constant 0 : i32
    %c0_i32_1 = arith.constant 0 : i32
    %c0_i32_2 = arith.constant 0 : i32
    return %c0_i32, %c0_i32_0, %c0_i32_1 : i32, i32, i32
  }
  func.func @transform_17(%arg0: i32) -> (i32, i32) {
    %c0_i32 = arith.constant 0 : i32
    %c0_i32_0 = arith.constant 0 : i32
    %c0_i32_1 = arith.constant 0 : i32
    return %c0_i32, %c0_i32_0 : i32, i32
  }
  func.func @transform_18(%arg0: i32) -> (i32, i32) {
    %c0_i32 = arith.constant 0 : i32
    %c0_i32_0 = arith.constant 0 : i32
    %c0_i32_1 = arith.constant 0 : i32
    return %c0_i32, %c0_i32_0 : i32, i32
  }
  func.func @transform_19(%arg0: i32) -> (i32, i32) {
    %c0_i32 = arith.constant 0 : i32
    %c0_i32_0 = arith.constant 0 : i32
    %c0_i32_1 = arith.constant 0 : i32
    return %c0_i32, %c0_i32_0 : i32, i32
  }
  func.func @transform_20(%arg0: i32) -> (i32, i32) {
    %c0_i32 = arith.constant 0 : i32
    %c0_i32_0 = arith.constant 0 : i32
    %c0_i32_1 = arith.constant 0 : i32
    return %c0_i32, %c0_i32_0 : i32, i32
  }
  func.func @transform_21(%arg0: i32) -> (i32, i32, i32) {
    %c0_i32 = arith.constant 0 : i32
    %c0_i32_0 = arith.constant 0 : i32
    %c0_i32_1 = arith.constant 0 : i32
    return %arg0, %c0_i32, %c0_i32_0 : i32, i32, i32
  }
}

</mosaic_0001>

<llo_original>
// kernel: vit_forward.1
$region0: #{vit_forward.1}
  #allocation0 [shape = 'u32[]', space=smem, size = 0x4, offset = 0x4, fixed_abs, tag = 'smem constant byte address 0x4 - core index']
  #allocation1 [shape = 'u32[144,128]{1,0:T(1,128)}', space=vmem, size = 0x12000, scoped, tag = 'internal scratch']
  %s0 = inlined_call_operand.vmem [shape: f32[2,16,64], index: 0, kind: input, shape index: {}]
  %s1 = inlined_call_operand.vmem [shape: f32[1,32], index: 1, kind: input, shape index: {}]
  %s2 = inlined_call_operand.vmem [shape: f32[17,32], index: 2, kind: input, shape index: {}]
  %s3 = inlined_call_operand.vmem [shape: f32[64,32], index: 3, kind: input, shape index: {}]
  %s4 = inlined_call_operand.vmem [shape: f32[1,32], index: 4, kind: input, shape index: {}]
  %s5 = inlined_call_operand.vmem [shape: f32[2,32,96], index: 5, kind: input, shape index: {}]
  %s6 = inlined_call_operand.vmem [shape: f32[2,1,96], index: 6, kind: input, shape index: {}]
  %s7 = inlined_call_operand.vmem [shape: f32[2,32,32], index: 7, kind: input, shape index: {}]
  %s8 = inlined_call_operand.vmem [shape: f32[2,1,32], index: 8, kind: input, shape index: {}]
  %s9 = inlined_call_operand.vmem [shape: f32[2,1,32], index: 9, kind: input, shape index: {}]
  %s10 = inlined_call_operand.vmem [shape: f32[2,1,32], index: 10, kind: input, shape index: {}]
  %s11 = inlined_call_operand.vmem [shape: f32[2,32,128], index: 11, kind: input, shape index: {}]
  %s12 = inlined_call_operand.vmem [shape: f32[2,1,128], index: 12, kind: input, shape index: {}]
  %s13 = inlined_call_operand.vmem [shape: f32[2,128,32], index: 13, kind: input, shape index: {}]
  %s14 = inlined_call_operand.vmem [shape: f32[2,1,32], index: 14, kind: input, shape index: {}]
  %s15 = inlined_call_operand.vmem [shape: f32[2,1,32], index: 15, kind: input, shape index: {}]
  %s16 = inlined_call_operand.vmem [shape: f32[2,1,32], index: 16, kind: input, shape index: {}]
  %s17 = inlined_call_operand.vmem [shape: f32[1,32], index: 17, kind: input, shape index: {}]
  %s18 = inlined_call_operand.vmem [shape: f32[1,32], index: 18, kind: input, shape index: {}]
  %s19 = inlined_call_operand.vmem [shape: f32[32,2], index: 19, kind: input, shape index: {}]
  %s20 = inlined_call_operand.vmem [shape: f32[1,2], index: 20, kind: input, shape index: {}]
  %s21 = inlined_call_operand.hbm [shape: f32[2,1,2], index: 21, kind: output, shape index: {}]
  %s22 = sld [smem:[#allocation0]]
  $region117: #{vit_forward.1} parent=0
    _
  %s24 = ssub.s32 1, %s22
  %s25 = scalar_select 0, %s24, %s22
  $region1: #{vit_forward.1} parent=0
    #allocation2 [shape = 'u8[1024]{0}', space=vmem, size = 0x400, scoped, tag = 'output window, operand 0']
    #allocation3 [shape = 's32[2]{0}', space=sflag, size = 0x8, scoped, tag = 'scoped memory for vit_forward.1']
    %26 = vsyncpa [#allocation3], 0
    %s27 = scalar_lea.sflag [#allocation3], 1
    %28 = vsyncpa %s27, 0
    loop: start=0, step=1, limit=4
    $region2: #{vit_forward.1} parent=1 // loop_pre_header
      _
    $region3: #{vit_forward.1} parent=1 // loop_header
      %s30 = sphi 0, %s34
      %p31 = scmp.ge.s32.totalorder %s30, 4
      %s40 = sphi 0, %s42
      %s43 = sphi 0, %s40
      %s44 = sphi 0, %s43
      %s60 = sphi 0, %s44
      %s64 = sphi 0, %s64
      %s66 = sphi 0, %s64
      %s67 = sphi 0, %s66
      %s81 = sphi 0, %s67
      %s85 = sphi 0, %s85
      %s87 = sphi 0, %s85
      %s88 = sphi 0, %s87
      %s102 = sphi 0, %s88
      %s106 = sphi 0, %s106
      %s108 = sphi 0, %s106
      %s109 = sphi 0, %s108
      %s123 = sphi 0, %s109
      %s127 = sphi 0, %s127
      %s129 = sphi 0, %s127
      %s130 = sphi 0, %s129
      %s144 = sphi 0, %s130
      %s148 = sphi 0, %s148
      %s150 = sphi 0, %s148
      %s151 = sphi 0, %s150
      %s165 = sphi 0, %s151
      %s169 = sphi 0, %s169
      %s171 = sphi 0, %s169
      %s172 = sphi 0, %s171
      %s186 = sphi 0, %s172
      %s190 = sphi 0, %s190
      %s192 = sphi 0, %s190
      %s193 = sphi 0, %s192
      %s207 = sphi 0, %s193
      %s211 = sphi 0, %s211
      %s213 = sphi 0, %s211
      %s214 = sphi 0, %s213
      %s228 = sphi 0, %s214
      %s232 = sphi 0, %s232
      %s234 = sphi 0, %s232
      %s235 = sphi 0, %s234
      %s249 = sphi 0, %s235
      %s253 = sphi 0, %s253
      %s255 = sphi 0, %s253
      %s256 = sphi 0, %s255
      %s270 = sphi 0, %s256
      %s274 = sphi 0, %s274
      %s276 = sphi 0, %s274
      %s277 = sphi 0, %s276
      %s291 = sphi 0, %s277
      %s295 = sphi 0, %s295
      %s297 = sphi 0, %s295
      %s298 = sphi 0, %s297
      %s312 = sphi 0, %s298
      %s316 = sphi 0, %s316
      %s318 = sphi 0, %s316
      %s319 = sphi 0, %s318
      %s333 = sphi 0, %s319
      %s337 = sphi 0, %s337
      %s339 = sphi 0, %s337
      %s340 = sphi 0, %s339
      %s354 = sphi 0, %s340
      %s358 = sphi 0, %s358
      %s360 = sphi 0, %s358
      %s361 = sphi 0, %s360
      %s375 = sphi 0, %s361
      %s379 = sphi 0, %s379
      %s381 = sphi 0, %s379
      %s382 = sphi 0, %s381
      %s396 = sphi 0, %s382
      %s400 = sphi 0, %s400
      %s402 = sphi 0, %s400
      %s403 = sphi 0, %s402
      %s417 = sphi 0, %s403
      %s421 = sphi 0, %s421
      %s423 = sphi 0, %s421
      %s424 = sphi 0, %s423
      %s438 = sphi 0, %s424
      %s442 = sphi 0, %s442
      %s444 = sphi 0, %s442
      %s445 = sphi 0, %s444
      %s459 = sphi 0, %s445
      %s463 = sphi 0, %s463
      %s465 = sphi 0, %s463
      %s466 = sphi 0, %s465
      %s480 = sphi 0, %s466
      %s486 = sphi 0, %s488
      %s489 = sphi 0, %s486
      %s490 = sphi 0, %s489
      %s506 = sphi 0, %s490
    $region4: #{vit_forward.1} parent=1 // loop_header_branch
      %33 = sbr.rel (%p31) target = $region8
    $region5: #{vit_forward.1} parent=1 // loop_body
      %s35 = ssub.s32 %s30, 1
      %s36 = ssub.s32 %s30, 2
      %s37 = sadd.s32 %s30, 1
      %s38 = ssub.s32 %s30, %s37
      %p39 = scmp.eq.s32.totalorder %s38, 0
      %s41 = sadd.s32 %s40, 1
      %s42 = scalar_select %p39, %s40, %s41
      %p45 = pneg %p39
      %p46 = scmp.eq.s32.totalorder %s30, 1
      %p47 = por %p45, %p46
      %p48 = scmp.ne.s32.totalorder %s40, %s43
      %p49 = scmp.eq.s32.totalorder %s30, 0
      %p50 = por %p48, %p49
      %p51 = scmp.ne.s32.totalorder %s40, %s43
      %p52 = scmp.eq.s32.totalorder %s35, 1
      %p53 = por %p51, %p52
      %p54 = scmp.ne.s32.totalorder %s43, %s44
      %p55 = scmp.eq.s32.totalorder %s35, 0
      %p56 = por %p54, %p55
      %p57 = scmp.ne.s32.totalorder %s43, %s44
      %p58 = scmp.eq.s32.totalorder %s36, 1
      %p59 = por %p57, %p58
      %p61 = scmp.ne.s32.totalorder %s44, %s60
      %p62 = scmp.eq.s32.totalorder %s36, 0
      %p63 = por %p61, %p62
      %s65 = sadd.s32 %s64, 1
      %p68 = scmp.eq.s32.totalorder %s30, 1
      %p69 = scmp.ne.s32.totalorder %s64, %s66
      %p70 = scmp.eq.s32.totalorder %s30, 0
      %p71 = por %p69, %p70
      %p72 = scmp.ne.s32.totalorder %s64, %s66
      %p73 = scmp.eq.s32.totalorder %s35, 1
      %p74 = por %p72, %p73
      %p75 = scmp.ne.s32.totalorder %s66, %s67
      %p76 = scmp.eq.s32.totalorder %s35, 0
      %p77 = por %p75, %p76
      %p78 = scmp.ne.s32.totalorder %s66, %s67
      %p79 = scmp.eq.s32.totalorder %s36, 1
      %p80 = por %p78, %p79
      %p82 = scmp.ne.s32.totalorder %s67, %s81
      %p83 = scmp.eq.s32.totalorder %s36, 0
      %p84 = por %p82, %p83
      %s86 = sadd.s32 %s85, 1
      %p89 = scmp.eq.s32.totalorder %s30, 1
      %p90 = scmp.ne.s32.totalorder %s85, %s87
      %p91 = scmp.eq.s32.totalorder %s30, 0
      %p92 = por %p90, %p91
      %p93 = scmp.ne.s32.totalorder %s85, %s87
      %p94 = scmp.eq.s32.totalorder %s35, 1
      %p95 = por %p93, %p94
      %p96 = scmp.ne.s32.totalorder %s87, %s88
      %p97 = scmp.eq.s32.totalorder %s35, 0
      %p98 = por %p96, %p97
      %p99 = scmp.ne.s32.totalorder %s87, %s88
      %p100 = scmp.eq.s32.totalorder %s36, 1
      %p101 = por %p99, %p100
      %p103 = scmp.ne.s32.totalorder %s88, %s102
      %p104 = scmp.eq.s32.totalorder %s36, 0
      %p105 = por %p103, %p104
      %s107 = sadd.s32 %s106, 1
      %p110 = scmp.eq.s32.totalorder %s30, 1
      %p111 = scmp.ne.s32.totalorder %s106, %s108
      %p112 = scmp.eq.s32.totalorder %s30, 0
      %p113 = por %p111, %p112
      %p114 = scmp.ne.s32.totalorder %s106, %s108
      %p115 = scmp.eq.s32.totalorder %s35, 1
      %p116 = por %p114, %p115
      %p117 = scmp.ne.s32.totalorder %s108, %s109
      %p118 = scmp.eq.s32.totalorder %s35, 0
      %p119 = por %p117, %p118
      %p120 = scmp.ne.s32.totalorder %s108, %s109
      %p121 = scmp.eq.s32.totalorder %s36, 1
      %p122 = por %p120, %p121
      %p124 = scmp.ne.s32.totalorder %s109, %s123
      %p125 = scmp.eq.s32.totalorder %s36, 0
      %p126 = por %p124, %p125
      %s128 = sadd.s32 %s127, 1
      %p131 = scmp.eq.s32.totalorder %s30, 1
      %p132 = scmp.ne.s32.totalorder %s127, %s129
      %p133 = scmp.eq.s32.totalorder %s30, 0
      %p134 = por %p132, %p133
      %p135 = scmp.ne.s32.totalorder %s127, %s129
      %p136 = scmp.eq.s32.totalorder %s35, 1
      %p137 = por %p135, %p136
      %p138 = scmp.ne.s32.totalorder %s129, %s130
      %p139 = scmp.eq.s32.totalorder %s35, 0
      %p140 = por %p138, %p139
      %p141 = scmp.ne.s32.totalorder %s129, %s130
      %p142 = scmp.eq.s32.totalorder %s36, 1
      %p143 = por %p141, %p142
      %p145 = scmp.ne.s32.totalorder %s130, %s144
      %p146 = scmp.eq.s32.totalorder %s36, 0
      %p147 = por %p145, %p146
      %s149 = sadd.s32 %s148, 1
      %p152 = scmp.eq.s32.totalorder %s30, 1
      %p153 = scmp.ne.s32.totalorder %s148, %s150
      %p154 = scmp.eq.s32.totalorder %s30, 0
      %p155 = por %p153, %p154
      %p156 = scmp.ne.s32.totalorder %s148, %s150
      %p157 = scmp.eq.s32.totalorder %s35, 1
      %p158 = por %p156, %p157
      %p159 = scmp.ne.s32.totalorder %s150, %s151
      %p160 = scmp.eq.s32.totalorder %s35, 0
      %p161 = por %p159, %p160
      %p162 = scmp.ne.s32.totalorder %s150, %s151
      %p163 = scmp.eq.s32.totalorder %s36, 1
      %p164 = por %p162, %p163
      %p166 = scmp.ne.s32.totalorder %s151, %s165
      %p167 = scmp.eq.s32.totalorder %s36, 0
      %p168 = por %p166, %p167
      %s170 = sadd.s32 %s169, 1
      %p173 = scmp.eq.s32.totalorder %s30, 1
      %p174 = scmp.ne.s32.totalorder %s169, %s171
      %p175 = scmp.eq.s32.totalorder %s30, 0
      %p176 = por %p174, %p175
      %p177 = scmp.ne.s32.totalorder %s169, %s171
      %p178 = scmp.eq.s32.totalorder %s35, 1
      %p179 = por %p177, %p178
      %p180 = scmp.ne.s32.totalorder %s171, %s172
      %p181 = scmp.eq.s32.totalorder %s35, 0
      %p182 = por %p180, %p181
      %p183 = scmp.ne.s32.totalorder %s171, %s172
      %p184 = scmp.eq.s32.totalorder %s36, 1
      %p185 = por %p183, %p184
      %p187 = scmp.ne.s32.totalorder %s172, %s186
      %p188 = scmp.eq.s32.totalorder %s36, 0
      %p189 = por %p187, %p188
      %s191 = sadd.s32 %s190, 1
      %p194 = scmp.eq.s32.totalorder %s30, 1
      %p195 = scmp.ne.s32.totalorder %s190, %s192
      %p196 = scmp.eq.s32.totalorder %s30, 0
      %p197 = por %p195, %p196
      %p198 = scmp.ne.s32.totalorder %s190, %s192
      %p199 = scmp.eq.s32.totalorder %s35, 1
      %p200 = por %p198, %p199
      %p201 = scmp.ne.s32.totalorder %s192, %s193
      %p202 = scmp.eq.s32.totalorder %s35, 0
      %p203 = por %p201, %p202
      %p204 = scmp.ne.s32.totalorder %s192, %s193
      %p205 = scmp.eq.s32.totalorder %s36, 1
      %p206 = por %p204, %p205
      %p208 = scmp.ne.s32.totalorder %s193, %s207
      %p209 = scmp.eq.s32.totalorder %s36, 0
      %p210 = por %p208, %p209
      %s212 = sadd.s32 %s211, 1
      %p215 = scmp.eq.s32.totalorder %s30, 1
      %p216 = scmp.ne.s32.totalorder %s211, %s213
      %p217 = scmp.eq.s32.totalorder %s30, 0
      %p218 = por %p216, %p217
      %p219 = scmp.ne.s32.totalorder %s211, %s213
      %p220 = scmp.eq.s32.totalorder %s35, 1
      %p221 = por %p219, %p220
      %p222 = scmp.ne.s32.totalorder %s213, %s214
      %p223 = scmp.eq.s32.totalorder %s35, 0
      %p224 = por %p222, %p223
      %p225 = scmp.ne.s32.totalorder %s213, %s214
      %p226 = scmp.eq.s32.totalorder %s36, 1
      %p227 = por %p225, %p226
      %p229 = scmp.ne.s32.totalorder %s214, %s228
      %p230 = scmp.eq.s32.totalorder %s36, 0
      %p231 = por %p229, %p230
      %s233 = sadd.s32 %s232, 1
      %p236 = scmp.eq.s32.totalorder %s30, 1
      %p237 = scmp.ne.s32.totalorder %s232, %s234
      %p238 = scmp.eq.s32.totalorder %s30, 0
      %p239 = por %p237, %p238
      %p240 = scmp.ne.s32.totalorder %s232, %s234
      %p241 = scmp.eq.s32.totalorder %s35, 1
      %p242 = por %p240, %p241
      %p243 = scmp.ne.s32.totalorder %s234, %s235
      %p244 = scmp.eq.s32.totalorder %s35, 0
      %p245 = por %p243, %p244
      %p246 = scmp.ne.s32.totalorder %s234, %s235
      %p247 = scmp.eq.s32.totalorder %s36, 1
      %p248 = por %p246, %p247
      %p250 = scmp.ne.s32.totalorder %s235, %s249
      %p251 = scmp.eq.s32.totalorder %s36, 0
      %p252 = por %p250, %p251
      %s254 = sadd.s32 %s253, 1
      %p257 = scmp.eq.s32.totalorder %s30, 1
      %p258 = scmp.ne.s32.totalorder %s253, %s255
      %p259 = scmp.eq.s32.totalorder %s30, 0
      %p260 = por %p258, %p259
      %p261 = scmp.ne.s32.totalorder %s253, %s255
      %p262 = scmp.eq.s32.totalorder %s35, 1
      %p263 = por %p261, %p262
      %p264 = scmp.ne.s32.totalorder %s255, %s256
      %p265 = scmp.eq.s32.totalorder %s35, 0
      %p266 = por %p264, %p265
      %p267 = scmp.ne.s32.totalorder %s255, %s256
      %p268 = scmp.eq.s32.totalorder %s36, 1
      %p269 = por %p267, %p268
      %p271 = scmp.ne.s32.totalorder %s256, %s270
      %p272 = scmp.eq.s32.totalorder %s36, 0
      %p273 = por %p271, %p272
      %s275 = sadd.s32 %s274, 1
      %p278 = scmp.eq.s32.totalorder %s30, 1
      %p279 = scmp.ne.s32.totalorder %s274, %s276
      %p280 = scmp.eq.s32.totalorder %s30, 0
      %p281 = por %p279, %p280
      %p282 = scmp.ne.s32.totalorder %s274, %s276
      %p283 = scmp.eq.s32.totalorder %s35, 1
      %p284 = por %p282, %p283
      %p285 = scmp.ne.s32.totalorder %s276, %s277
      %p286 = scmp.eq.s32.totalorder %s35, 0
      %p287 = por %p285, %p286
      %p288 = scmp.ne.s32.totalorder %s276, %s277
      %p289 = scmp.eq.s32.totalorder %s36, 1
      %p290 = por %p288, %p289
      %p292 = scmp.ne.s32.totalorder %s277, %s291
      %p293 = scmp.eq.s32.totalorder %s36, 0
      %p294 = por %p292, %p293
      %s296 = sadd.s32 %s295, 1
      %p299 = scmp.eq.s32.totalorder %s30, 1
      %p300 = scmp.ne.s32.totalorder %s295, %s297
      %p301 = scmp.eq.s32.totalorder %s30, 0
      %p302 = por %p300, %p301
      %p303 = scmp.ne.s32.totalorder %s295, %s297
      %p304 = scmp.eq.s32.totalorder %s35, 1
      %p305 = por %p303, %p304
      %p306 = scmp.ne.s32.totalorder %s297, %s298
      %p307 = scmp.eq.s32.totalorder %s35, 0
      %p308 = por %p306, %p307
      %p309 = scmp.ne.s32.totalorder %s297, %s298
      %p310 = scmp.eq.s32.totalorder %s36, 1
      %p311 = por %p309, %p310
      %p313 = scmp.ne.s32.totalorder %s298, %s312
      %p314 = scmp.eq.s32.totalorder %s36, 0
      %p315 = por %p313, %p314
      %s317 = sadd.s32 %s316, 1
      %p320 = scmp.eq.s32.totalorder %s30, 1
      %p321 = scmp.ne.s32.totalorder %s316, %s318
      %p322 = scmp.eq.s32.totalorder %s30, 0
      %p323 = por %p321, %p322
      %p324 = scmp.ne.s32.totalorder %s316, %s318
      %p325 = scmp.eq.s32.totalorder %s35, 1
      %p326 = por %p324, %p325
      %p327 = scmp.ne.s32.totalorder %s318, %s319
      %p328 = scmp.eq.s32.totalorder %s35, 0
      %p329 = por %p327, %p328
      %p330 = scmp.ne.s32.totalorder %s318, %s319
      %p331 = scmp.eq.s32.totalorder %s36, 1
      %p332 = por %p330, %p331
      %p334 = scmp.ne.s32.totalorder %s319, %s333
      %p335 = scmp.eq.s32.totalorder %s36, 0
      %p336 = por %p334, %p335
      %s338 = sadd.s32 %s337, 1
      %p341 = scmp.eq.s32.totalorder %s30, 1
      %p342 = scmp.ne.s32.totalorder %s337, %s339
      %p343 = scmp.eq.s32.totalorder %s30, 0
      %p344 = por %p342, %p343
      %p345 = scmp.ne.s32.totalorder %s337, %s339
      %p346 = scmp.eq.s32.totalorder %s35, 1
      %p347 = por %p345, %p346
      %p348 = scmp.ne.s32.totalorder %s339, %s340
      %p349 = scmp.eq.s32.totalorder %s35, 0
      %p350 = por %p348, %p349
      %p351 = scmp.ne.s32.totalorder %s339, %s340
      %p352 = scmp.eq.s32.totalorder %s36, 1
      %p353 = por %p351, %p352
      %p355 = scmp.ne.s32.totalorder %s340, %s354
      %p356 = scmp.eq.s32.totalorder %s36, 0
      %p357 = por %p355, %p356
      %s359 = sadd.s32 %s358, 1
      %p362 = scmp.eq.s32.totalorder %s30, 1
      %p363 = scmp.ne.s32.totalorder %s358, %s360
      %p364 = scmp.eq.s32.totalorder %s30, 0
      %p365 = por %p363, %p364
      %p366 = scmp.ne.s32.totalorder %s358, %s360
      %p367 = scmp.eq.s32.totalorder %s35, 1
      %p368 = por %p366, %p367
      %p369 = scmp.ne.s32.totalorder %s360, %s361
      %p370 = scmp.eq.s32.totalorder %s35, 0
      %p371 = por %p369, %p370
      %p372 = scmp.ne.s32.totalorder %s360, %s361
      %p373 = scmp.eq.s32.totalorder %s36, 1
      %p374 = por %p372, %p373
      %p376 = scmp.ne.s32.totalorder %s361, %s375
      %p377 = scmp.eq.s32.totalorder %s36, 0
      %p378 = por %p376, %p377
      %s380 = sadd.s32 %s379, 1
      %p383 = scmp.eq.s32.totalorder %s30, 1
      %p384 = scmp.ne.s32.totalorder %s379, %s381
      %p385 = scmp.eq.s32.totalorder %s30, 0
      %p386 = por %p384, %p385
      %p387 = scmp.ne.s32.totalorder %s379, %s381
      %p388 = scmp.eq.s32.totalorder %s35, 1
      %p389 = por %p387, %p388
      %p390 = scmp.ne.s32.totalorder %s381, %s382
      %p391 = scmp.eq.s32.totalorder %s35, 0
      %p392 = por %p390, %p391
      %p393 = scmp.ne.s32.totalorder %s381, %s382
      %p394 = scmp.eq.s32.totalorder %s36, 1
      %p395 = por %p393, %p394
      %p397 = scmp.ne.s32.totalorder %s382, %s396
      %p398 = scmp.eq.s32.totalorder %s36, 0
      %p399 = por %p397, %p398
      %s401 = sadd.s32 %s400, 1
      %p404 = scmp.eq.s32.totalorder %s30, 1
      %p405 = scmp.ne.s32.totalorder %s400, %s402
      %p406 = scmp.eq.s32.totalorder %s30, 0
      %p407 = por %p405, %p406
      %p408 = scmp.ne.s32.totalorder %s400, %s402
      %p409 = scmp.eq.s32.totalorder %s35, 1
      %p410 = por %p408, %p409
      %p411 = scmp.ne.s32.totalorder %s402, %s403
      %p412 = scmp.eq.s32.totalorder %s35, 0
      %p413 = por %p411, %p412
      %p414 = scmp.ne.s32.totalorder %s402, %s403
      %p415 = scmp.eq.s32.totalorder %s36, 1
      %p416 = por %p414, %p415
      %p418 = scmp.ne.s32.totalorder %s403, %s417
      %p419 = scmp.eq.s32.totalorder %s36, 0
      %p420 = por %p418, %p419
      %s422 = sadd.s32 %s421, 1
      %p425 = scmp.eq.s32.totalorder %s30, 1
      %p426 = scmp.ne.s32.totalorder %s421, %s423
      %p427 = scmp.eq.s32.totalorder %s30, 0
      %p428 = por %p426, %p427
      %p429 = scmp.ne.s32.totalorder %s421, %s423
      %p430 = scmp.eq.s32.totalorder %s35, 1
      %p431 = por %p429, %p430
      %p432 = scmp.ne.s32.totalorder %s423, %s424
      %p433 = scmp.eq.s32.totalorder %s35, 0
      %p434 = por %p432, %p433
      %p435 = scmp.ne.s32.totalorder %s423, %s424
      %p436 = scmp.eq.s32.totalorder %s36, 1
      %p437 = por %p435, %p436
      %p439 = scmp.ne.s32.totalorder %s424, %s438
      %p440 = scmp.eq.s32.totalorder %s36, 0
      %p441 = por %p439, %p440
      %s443 = sadd.s32 %s442, 1
      %p446 = scmp.eq.s32.totalorder %s30, 1
      %p447 = scmp.ne.s32.totalorder %s442, %s444
      %p448 = scmp.eq.s32.totalorder %s30, 0
      %p449 = por %p447, %p448
      %p450 = scmp.ne.s32.totalorder %s442, %s444
      %p451 = scmp.eq.s32.totalorder %s35, 1
      %p452 = por %p450, %p451
      %p453 = scmp.ne.s32.totalorder %s444, %s445
      %p454 = scmp.eq.s32.totalorder %s35, 0
      %p455 = por %p453, %p454
      %p456 = scmp.ne.s32.totalorder %s444, %s445
      %p457 = scmp.eq.s32.totalorder %s36, 1
      %p458 = por %p456, %p457
      %p460 = scmp.ne.s32.totalorder %s445, %s459
      %p461 = scmp.eq.s32.totalorder %s36, 0
      %p462 = por %p460, %p461
      %s464 = sadd.s32 %s463, 1
      %p467 = scmp.eq.s32.totalorder %s30, 1
      %p468 = scmp.ne.s32.totalorder %s463, %s465
      %p469 = scmp.eq.s32.totalorder %s30, 0
      %p470 = por %p468, %p469
      %p471 = scmp.ne.s32.totalorder %s463, %s465
      %p472 = scmp.eq.s32.totalorder %s35, 1
      %p473 = por %p471, %p472
      %p474 = scmp.ne.s32.totalorder %s465, %s466
      %p475 = scmp.eq.s32.totalorder %s35, 0
      %p476 = por %p474, %p475
      %p477 = scmp.ne.s32.totalorder %s465, %s466
      %p478 = scmp.eq.s32.totalorder %s36, 1
      %p479 = por %p477, %p478
      %p481 = scmp.ne.s32.totalorder %s466, %s480
      %p482 = scmp.eq.s32.totalorder %s36, 0
      %p483 = por %p481, %p482
      %s484 = ssub.s32 %s30, %s37
      %p485 = scmp.eq.s32.totalorder %s484, 0
      %s487 = sadd.s32 %s486, 1
      %s488 = scalar_select %p485, %s486, %s487
      %p491 = pneg %p485
      %p492 = scmp.eq.s32.totalorder %s30, 1
      %p493 = por %p491, %p492
      %p494 = scmp.ne.s32.totalorder %s486, %s489
      %p495 = scmp.eq.s32.totalorder %s30, 0
      %p496 = por %p494, %p495
      %p497 = scmp.ne.s32.totalorder %s486, %s489
      %p498 = scmp.eq.s32.totalorder %s35, 1
      %p499 = por %p497, %p498
      %p500 = scmp.ne.s32.totalorder %s489, %s490
      %p501 = scmp.eq.s32.totalorder %s35, 0
      %p502 = por %p500, %p501
      %p503 = scmp.ne.s32.totalorder %s489, %s490
      %p504 = scmp.eq.s32.totalorder %s36, 1
      %p505 = por %p503, %p504
      %p507 = scmp.ne.s32.totalorder %s490, %s506
      %p508 = scmp.eq.s32.totalorder %s36, 0
      %p509 = por %p507, %p508
      %p510 = scmp.le.s32.totalorder 1, %s30
      %p511 = scmp.lt.s32.totalorder %s30, 3
      %p512 = pnand %p510, %p511
      %p513 = pneg %p512
      // Predicated region
      $region9: #{vit_forward.1} parent=5 // pred_check
        _
      $region10: #{vit_forward.1} parent=5 // pred_check_branch
        %515 = sbr.rel (%p512) target = $region12
      $region11: #{vit_forward.1} parent=5 // pred_region
        %s516 = ssub.s32 %s30, 1
        // Predicated region
        $region13: #{vit_forward.1} parent=11 // pred_check
          %p517 = pneg %p77
        $region14: #{vit_forward.1} parent=11 // pred_check_branch
          %519 = sbr.rel (%p517) target = $region16
        $region15: #{vit_forward.1} parent=11 // pred_region
          _
        $region16: #{vit_forward.1} parent=11 // pred_fallthru
          _
        // Predicated region
        $region17: #{vit_forward.1} parent=11 // pred_check
          %p520 = pneg %p98
        $region18: #{vit_forward.1} parent=11 // pred_check_branch
          %522 = sbr.rel (%p520) target = $region20
        $region19: #{vit_forward.1} parent=11 // pred_region
          _
        $region20: #{vit_forward.1} parent=11 // pred_fallthru
          _
        // Predicated region
        $region21: #{vit_forward.1} parent=11 // pred_check
          %p523 = pneg %p119
        $region22: #{vit_forward.1} parent=11 // pred_check_branch
          %525 = sbr.rel (%p523) target = $region24
        $region23: #{vit_forward.1} parent=11 // pred_region
          _
        $region24: #{vit_forward.1} parent=11 // pred_fallthru
          _
        // Predicated region
        $region25: #{vit_forward.1} parent=11 // pred_check
          %p526 = pneg %p140
        $region26: #{vit_forward.1} parent=11 // pred_check_branch
          %528 = sbr.rel (%p526) target = $region28
        $region27: #{vit_forward.1} parent=11 // pred_region
          _
        $region28: #{vit_forward.1} parent=11 // pred_fallthru
          _
        // Predicated region
        $region29: #{vit_forward.1} parent=11 // pred_check
          %p529 = pneg %p161
        $region30: #{vit_forward.1} parent=11 // pred_check_branch
          %531 = sbr.rel (%p529) target = $region32
        $region31: #{vit_forward.1} parent=11 // pred_region
          _
        $region32: #{vit_forward.1} parent=11 // pred_fallthru
          _
        // Predicated region
        $region33: #{vit_forward.1} parent=11 // pred_check
          %p532 = pneg %p182
        $region34: #{vit_forward.1} parent=11 // pred_check_branch
          %534 = sbr.rel (%p532) target = $region36
        $region35: #{vit_forward.1} parent=11 // pred_region
          _
        $region36: #{vit_forward.1} parent=11 // pred_fallthru
          _
        // Predicated region
        $region37: #{vit_forward.1} parent=11 // pred_check
          %p535 = pneg %p203
        $region38: #{vit_forward.1} parent=11 // pred_check_branch
          %537 = sbr.rel (%p535) target = $region40
        $region39: #{vit_forward.1} parent=11 // pred_region
          _
        $region40: #{vit_forward.1} parent=11 // pred_fallthru
          _
        // Predicated region
        $region41: #{vit_forward.1} parent=11 // pred_check
          %p538 = pneg %p224
        $region42: #{vit_forward.1} parent=11 // pred_check_branch
          %540 = sbr.rel (%p538) target = $region44
        $region43: #{vit_forward.1} parent=11 // pred_region
          _
        $region44: #{vit_forward.1} parent=11 // pred_fallthru
          _
        // Predicated region
        $region45: #{vit_forward.1} parent=11 // pred_check
          %p541 = pneg %p245
        $region46: #{vit_forward.1} parent=11 // pred_check_branch
          %543 = sbr.rel (%p541) target = $region48
        $region47: #{vit_forward.1} parent=11 // pred_region
          _
        $region48: #{vit_forward.1} parent=11 // pred_fallthru
          _
        // Predicated region
        $region49: #{vit_forward.1} parent=11 // pred_check
          %p544 = pneg %p266
        $region50: #{vit_forward.1} parent=11 // pred_check_branch
          %546 = sbr.rel (%p544) target = $region52
        $region51: #{vit_forward.1} parent=11 // pred_region
          _
        $region52: #{vit_forward.1} parent=11 // pred_fallthru
          _
        // Predicated region
        $region53: #{vit_forward.1} parent=11 // pred_check
          %p547 = pneg %p287
        $region54: #{vit_forward.1} parent=11 // pred_check_branch
          %549 = sbr.rel (%p547) target = $region56
        $region55: #{vit_forward.1} parent=11 // pred_region
          _
        $region56: #{vit_forward.1} parent=11 // pred_fallthru
          _
        // Predicated region
        $region57: #{vit_forward.1} parent=11 // pred_check
          %p550 = pneg %p308
        $region58: #{vit_forward.1} parent=11 // pred_check_branch
          %552 = sbr.rel (%p550) target = $region60
        $region59: #{vit_forward.1} parent=11 // pred_region
          _
        $region60: #{vit_forward.1} parent=11 // pred_fallthru
          _
        // Predicated region
        $region61: #{vit_forward.1} parent=11 // pred_check
          %p553 = pneg %p329
        $region62: #{vit_forward.1} parent=11 // pred_check_branch
          %555 = sbr.rel (%p553) target = $region64
        $region63: #{vit_forward.1} parent=11 // pred_region
          _
        $region64: #{vit_forward.1} parent=11 // pred_fallthru
          _
        // Predicated region
        $region65: #{vit_forward.1} parent=11 // pred_check
          %p556 = pneg %p350
        $region66: #{vit_forward.1} parent=11 // pred_check_branch
          %558 = sbr.rel (%p556) target = $region68
        $region67: #{vit_forward.1} parent=11 // pred_region
          _
        $region68: #{vit_forward.1} parent=11 // pred_fallthru
          _
        // Predicated region
        $region69: #{vit_forward.1} parent=11 // pred_check
          %p559 = pneg %p371
        $region70: #{vit_forward.1} parent=11 // pred_check_branch
          %561 = sbr.rel (%p559) target = $region72
        $region71: #{vit_forward.1} parent=11 // pred_region
          _
        $region72: #{vit_forward.1} parent=11 // pred_fallthru
          _
        // Predicated region
        $region73: #{vit_forward.1} parent=11 // pred_check
          %p562 = pneg %p392
        $region74: #{vit_forward.1} parent=11 // pred_check_branch
          %564 = sbr.rel (%p562) target = $region76
        $region75: #{vit_forward.1} parent=11 // pred_region
          _
        $region76: #{vit_forward.1} parent=11 // pred_fallthru
          _
        // Predicated region
        $region77: #{vit_forward.1} parent=11 // pred_check
          %p565 = pneg %p413
        $region78: #{vit_forward.1} parent=11 // pred_check_branch
          %567 = sbr.rel (%p565) target = $region80
        $region79: #{vit_forward.1} parent=11 // pred_region
          _
        $region80: #{vit_forward.1} parent=11 // pred_fallthru
          _
        // Predicated region
        $region81: #{vit_forward.1} parent=11 // pred_check
          %p568 = pneg %p434
        $region82: #{vit_forward.1} parent=11 // pred_check_branch
          %570 = sbr.rel (%p568) target = $region84
        $region83: #{vit_forward.1} parent=11 // pred_region
          _
        $region84: #{vit_forward.1} parent=11 // pred_fallthru
          _
        // Predicated region
        $region85: #{vit_forward.1} parent=11 // pred_check
          %p571 = pneg %p455
        $region86: #{vit_forward.1} parent=11 // pred_check_branch
          %573 = sbr.rel (%p571) target = $region88
        $region87: #{vit_forward.1} parent=11 // pred_region
          _
        $region88: #{vit_forward.1} parent=11 // pred_fallthru
          _
        // Predicated region
        $region89: #{vit_forward.1} parent=11 // pred_check
          %p574 = pneg %p476
        $region90: #{vit_forward.1} parent=11 // pred_check_branch
          %576 = sbr.rel (%p574) target = $region92
        $region91: #{vit_forward.1} parent=11 // pred_region
          _
        $region92: #{vit_forward.1} parent=11 // pred_fallthru
          _
      $region12: #{vit_forward.1} parent=5 // pred_fallthru
        _
      %p577 = scmp.lt.s32.totalorder %s30, 2
      // Predicated region
      $region93: #{vit_forward.1} parent=5 // pred_check
        %p578 = pneg %p577
      $region94: #{vit_forward.1} parent=5 // pred_check_branch
        %580 = sbr.rel (%p578) target = $region96
      $region95: #{vit_forward.1} parent=5 // pred_region
        // Predicated region
        $region97: #{vit_forward.1} parent=95 // pred_check
          %p581 = pneg %p50
        $region98: #{vit_forward.1} parent=95 // pred_check_branch
          %583 = sbr.rel (%p581) target = $region100
        $region99: #{vit_forward.1} parent=95 // pred_region
          %p584 = scmp.lt.s32.totalorder %s30, 1
          %s585 = scalar_select %p584, %s30, 1
          %s586 = smul.addr %s585, 2
          %s587 = smul.addr %s586, 8
          %s588 = scalar_lea.vmem %s0, %s587
        $region100: #{vit_forward.1} parent=95 // pred_fallthru
          _
      $region96: #{vit_forward.1} parent=5 // pred_fallthru
        _
      %p589 = scmp.le.s32.totalorder 1, %s30
      %p590 = scmp.lt.s32.totalorder %s30, 3
      %p591 = pnand %p589, %p590
      %p592 = pneg %p591
      // Predicated region
      $region101: #{vit_forward.1} parent=5 // pred_check
        _
      $region102: #{vit_forward.1} parent=5 // pred_check_branch
        %594 = sbr.rel (%p591) target = $region104
      $region103: #{vit_forward.1} parent=5 // pred_region
        %s595 = ssub.s32 %s30, 1
        %p596 = scmp.lt.s32.totalorder %s35, 1
        %s597 = scalar_select %p596, %s35, 1
        %s598 = smul.addr %s597, 2
        %s599 = smul.addr %s598, 8
        %s600 = scalar_lea.vmem %s0, %s599
        %p601 = pneg %p56
        %p602 = pneg %p53
        %p603 = pneg %p77
        %p604 = pneg %p74
        %p605 = pneg %p98
        %p606 = pneg %p95
        %p607 = pneg %p119
        %p608 = pneg %p116
        %p609 = pneg %p140
        %p610 = pneg %p137
        %p611 = pneg %p161
        %p612 = pneg %p158
        %p613 = pneg %p182
        %p614 = pneg %p179
        %p615 = pneg %p203
        %p616 = pneg %p200
        %p617 = pneg %p224
        %p618 = pneg %p221
        %p619 = pneg %p245
        %p620 = pneg %p242
        %p621 = pneg %p266
        %p622 = pneg %p263
        %p623 = pneg %p287
        %p624 = pneg %p284
        %p625 = pneg %p308
        %p626 = pneg %p305
        %p627 = pneg %p329
        %p628 = pneg %p326
        %p629 = pneg %p350
        %p630 = pneg %p347
        %p631 = pneg %p371
        %p632 = pneg %p368
        %p633 = pneg %p392
        %p634 = pneg %p389
        %p635 = pneg %p413
        %p636 = pneg %p410
        %p637 = pneg %p434
        %p638 = pneg %p431
        %p639 = pneg %p455
        %p640 = pneg %p452
        %p641 = pneg %p476
        %p642 = pneg %p473
        %p643 = pneg %p502
        %p644 = pneg %p499
        %s645 = sand.u32 %s489, 1
        %s646 = scalar_lea.sflag [#allocation3], %s645
        %s647 = sand.u32 %s489, 1
        %s648 = scalar_lea.vmem [#allocation2], %s647
        %p649 = scmp.lt.s32.totalorder %s35, 1
        %s650 = scalar_select %p649, %s35, 1
        %s651 = smul.addr %s650, 2
        %s652 = smul.addr %s651, 8
        %s653 = scalar_lea.vmem %s0, %s652
        %v654 = vld [vmem:[%s653] sm:$0xff]
        %v655 = vld [vmem:[%s653 + $0x8] sm:$0xff]
        %v656 = vld [vmem:[%s3] sm:$0xff]
        %v657 = vld [vmem:[%s3 + $0x8] sm:$0xff]
        %v658 = vld [vmem:[%s3 + $0x10] sm:$0xff]
        %v659 = vld [vmem:[%s3 + $0x18] sm:$0xff]
        %v660 = vld [vmem:[%s3 + $0x20] sm:$0xff]
        %v661 = vld [vmem:[%s3 + $0x28] sm:$0xff]
        %v662 = vld [vmem:[%s3 + $0x30] sm:$0xff]
        %v663 = vld [vmem:[%s3 + $0x38] sm:$0xff]
        %v664 = vld [vmem:[%s4] sm:$0x1]
        %v666 = vlaneseq
        %v667 = vshrl.u32 %v666, 7
        %v668 = vsub.s32 0, %v667
        %v669 = vrot.slane %v664, %v668
        %vm671 = vcmask 523264
        %v673 = vsel %vm671, %v654, 0
        %v676 = vsel %vm671, %v655, 0
        %678 = vmatprep.subr.mxu0 0.0
        %679 = vmatpush1.msra.mxu0 %v656
        %680 = vmatprep.subr.mxu0 0.0
        %681 = vmatpush1.msra.mxu0 %v657
        %682 = vmatprep.subr.mxu0 0.0
        %683 = vmatpush1.msra.mxu0 %v658
        %684 = vmatprep.subr.mxu0 0.0
        %685 = vmatpush1.msra.mxu0 %v659
        %686 = vmatprep.subr.mxu0 0.0
        %687 = vmatpush1.msra.mxu0 %v660
        %688 = vmatprep.subr.mxu0 0.0
        %689 = vmatpush1.msra.mxu0 %v661
        %690 = vmatprep.subr.mxu0 0.0
        %691 = vmatpush1.msra.mxu0 %v662
        %692 = vmatprep.subr.mxu0 0.0
        %693 = vmatpush1.msra.mxu0 %v663
        %694 = vmatprep.subr.mxu0 0.0
        %695 = vmatpush1.msra.mxu0 0.0
        %696 = vmatprep.subr.mxu0 0.0
        %697 = vmatpush1.msra.mxu0 0.0
        %698 = vmatprep.subr.mxu0 0.0
        %699 = vmatpush1.msra.mxu0 0.0
        %700 = vmatprep.subr.mxu0 0.0
        %701 = vmatpush1.msra.mxu0 0.0
        %702 = vmatprep.subr.mxu0 0.0
        %703 = vmatpush1.msra.mxu0 0.0
        %704 = vmatprep.subr.mxu0 0.0
        %705 = vmatpush1.msra.mxu0 0.0
        %706 = vmatprep.subr.mxu0 0.0
        %707 = vmatpush1.msra.mxu0 0.0
        %708 = vmatprep.subr.mxu0 0.0
        %709 = vmatpush1.msra.mxu0 0.0
        %710 = vmatprep.subr.mxu0 0.0
        %711 = vmatpush1.msra.mxu0 0.0
        %712 = vmatprep.subr.mxu0 0.0
        %713 = vmatpush1.msra.mxu0 0.0
        %714 = vmatprep.subr.mxu0 0.0
        %715 = vmatpush1.msra.mxu0 0.0
        %716 = vmatprep.subr.mxu0 0.0
        %717 = vmatpush1.msra.mxu0 0.0
        %718 = vmatprep.subr.mxu0 0.0
        %719 = vmatpush1.msra.mxu0 0.0
        %720 = vmatprep.subr.mxu0 0.0
        %721 = vmatpush1.msra.mxu0 0.0
        %722 = vmatprep.subr.mxu0 0.0
        %723 = vmatpush1.msra.mxu0 0.0
        %724 = vmatprep.subr.mxu0 0.0
        %725 = vmatpush1.msra.mxu0 0.0
        %726 = vmatprep.subr.mxu0 0.0
        %727 = vmatpush1.msra.mxu0 0.0
        %728 = vmatprep.subr.mxu0 0.0
        %729 = vmatpush1.msra.mxu0 0.0
        %730 = vmatprep.subr.mxu0 0.0
        %731 = vmatpush1.msra.mxu0 0.0
        %732 = vmatprep.subr.mxu0 0.0
        %733 = vmatpush1.msra.mxu0 0.0
        %734 = vmatprep.subr.mxu0 0.0
        %735 = vmatpush1.msra.mxu0 0.0
        %736 = vmatprep.subr.mxu0 0.0
        %737 = vmatpush1.msra.mxu0 0.0
        %738 = vmatprep.subr.mxu0 0.0
        %739 = vmatpush1.msra.mxu0 0.0
        %740 = vmatprep.subr.mxu0 0.0
        %741 = vmatpush1.msra.mxu0 0.0
        %742 = vmatprep.mubr.f32.mxu0 0.0
        %743 = vmatmul.mubr.f32.gmra.mrb[0].mxu0 %v673
        %v744 = vpop.f32.mrb[0].mxu0
        %v745 = vadd.f32 %v669, %v744
        %v746 = vpop.f32.mrb[0].mxu0
        %747 = vmatprep.mubr.f32.mxu0 0.0
        %748 = vmatmul.mubr.f32.gmra.mrb[0].mxu0 %v676
        %v749 = vpop.f32.mrb[0].mxu0
        %v750 = vadd.f32 %v669, %v749
        %v751 = vpop.f32.mrb[0].mxu0
        %752 = vdwg.mxu0
        %v753 = vld [vmem:[%s1] sm:$0x1]
        %vm756 = vcmask 1040384
        %v757 = vrot.slane %v745, 7
        %v758 = vrot.slane %v750, 7
        %v759 = vsel %vm756, %v757, %v758
        %v763 = vsel %vm756, %v753, %v757
        %v764 = vld [vmem:[%s2] sm:$0xff]
        %v765 = vld [vmem:[%s2 + $0x8] sm:$0xff]
        %v766 = vld [vmem:[%s2 + $0x10] sm:$0x1]
        %v767 = vadd.f32 %v763, %v764
        %v768 = vadd.f32 %v759, %v765
        %v769 = vadd.f32 %v758, %v766
        %v770 = vld [vmem:[%s5] sm:$0xff]
        %v771 = vld [vmem:[%s5 + $0x8] sm:$0xff]
        %v772 = vld [vmem:[%s5 + $0x10] sm:$0xff]
        %v773 = vld [vmem:[%s5 + $0x18] sm:$0xff]
        %v774 = vld [vmem:[%s6] sm:$0x1]
        %v776 = vlaneseq
        %v777 = vshrl.u32 %v776, 7
        %v778 = vsub.s32 0, %v777
        %v779 = vrot.slane %v774, %v778
        %vm781 = vcmask 261120
        %v783 = vsel %vm781, %v767, 0
        %v786 = vsel %vm781, %v768, 0
        %v789 = vsel %vm781, %v769, 0
        %791 = vmatprep.subr.mxu0 0.0
        %792 = vmatpush1.msra.mxu0 %v770
        %793 = vmatprep.subr.mxu0 0.0
        %794 = vmatpush1.msra.mxu0 %v771
        %795 = vmatprep.subr.mxu0 0.0
        %796 = vmatpush1.msra.mxu0 %v772
        %797 = vmatprep.subr.mxu0 0.0
        %798 = vmatpush1.msra.mxu0 %v773
        %799 = vmatprep.subr.mxu0 0.0
        %800 = vmatpush1.msra.mxu0 0.0
        %801 = vmatprep.subr.mxu0 0.0
        %802 = vmatpush1.msra.mxu0 0.0
        %803 = vmatprep.subr.mxu0 0.0
        %804 = vmatpush1.msra.mxu0 0.0
        %805 = vmatprep.subr.mxu0 0.0
        %806 = vmatpush1.msra.mxu0 0.0
        %807 = vmatprep.subr.mxu0 0.0
        %808 = vmatpush1.msra.mxu0 0.0
        %809 = vmatprep.subr.mxu0 0.0
        %810 = vmatpush1.msra.mxu0 0.0
        %811 = vmatprep.subr.mxu0 0.0
        %812 = vmatpush1.msra.mxu0 0.0
        %813 = vmatprep.subr.mxu0 0.0
        %814 = vmatpush1.msra.mxu0 0.0
        %815 = vmatprep.subr.mxu0 0.0
        %816 = vmatpush1.msra.mxu0 0.0
        %817 = vmatprep.subr.mxu0 0.0
        %818 = vmatpush1.msra.mxu0 0.0
        %819 = vmatprep.subr.mxu0 0.0
        %820 = vmatpush1.msra.mxu0 0.0
        %821 = vmatprep.subr.mxu0 0.0
        %822 = vmatpush1.msra.mxu0 0.0
        %823 = vmatprep.subr.mxu0 0.0
        %824 = vmatpush1.msra.mxu0 0.0
        %825 = vmatprep.subr.mxu0 0.0
        %826 = vmatpush1.msra.mxu0 0.0
        %827 = vmatprep.subr.mxu0 0.0
        %828 = vmatpush1.msra.mxu0 0.0
        %829 = vmatprep.subr.mxu0 0.0
        %830 = vmatpush1.msra.mxu0 0.0
        %831 = vmatprep.subr.mxu0 0.0
        %832 = vmatpush1.msra.mxu0 0.0
        %833 = vmatprep.subr.mxu0 0.0
        %834 = vmatpush1.msra.mxu0 0.0
        %835 = vmatprep.subr.mxu0 0.0
        %836 = vmatpush1.msra.mxu0 0.0
        %837 = vmatprep.subr.mxu0 0.0
        %838 = vmatpush1.msra.mxu0 0.0
        %839 = vmatprep.subr.mxu0 0.0
        %840 = vmatpush1.msra.mxu0 0.0
        %841 = vmatprep.subr.mxu0 0.0
        %842 = vmatpush1.msra.mxu0 0.0
        %843 = vmatprep.subr.mxu0 0.0
        %844 = vmatpush1.msra.mxu0 0.0
        %845 = vmatprep.subr.mxu0 0.0
        %846 = vmatpush1.msra.mxu0 0.0
        %847 = vmatprep.subr.mxu0 0.0
        %848 = vmatpush1.msra.mxu0 0.0
        %849 = vmatprep.subr.mxu0 0.0
        %850 = vmatpush1.msra.mxu0 0.0
        %851 = vmatprep.subr.mxu0 0.0
        %852 = vmatpush1.msra.mxu0 0.0
        %853 = vmatprep.subr.mxu0 0.0
        %854 = vmatpush1.msra.mxu0 0.0
        %855 = vmatprep.mubr.f32.mxu0 0.0
        %856 = vmatmul.mubr.f32.gmra.mrb[0].mxu0 %v783
        %v857 = vpop.f32.mrb[0].mxu0
        %v858 = vadd.f32 %v779, %v857
        %v859 = vpop.f32.mrb[0].mxu0
        %860 = vmatprep.mubr.f32.mxu0 0.0
        %861 = vmatmul.mubr.f32.gmra.mrb[0].mxu0 %v786
        %v862 = vpop.f32.mrb[0].mxu0
        %v863 = vadd.f32 %v779, %v862
        %v864 = vpop.f32.mrb[0].mxu0
        %865 = vmatprep.mubr.f32.mxu0 0.0
        %866 = vmatmul.mubr.f32.gmra.mrb[0].mxu0 %v789
        %v867 = vpop.f32.mrb[0].mxu0
        %v868 = vadd.f32 %v779, %v867
        %v869 = vpop.f32.mrb[0].mxu0
        %870 = vdwg.mxu0
        %v871 = vmul.f32 %v858, 0.35355338
        %v872 = vmul.f32 %v863, 0.35355338
        %v873 = vmul.f32 %v868, 0.35355338
        %877 = vrot.lane.b32.xlu0 %v858, 96
        %v878 = vpop.permute.xlu0 %877
        %879 = vrot.lane.b32.xlu0 %v863, 96
        %v880 = vpop.permute.xlu0 %879
        %881 = vrot.lane.b32.xlu0 %v868, 96
        %v882 = vpop.permute.xlu0 %881
        %vm883 = vcmask 64512
        %v885 = vsel %vm883, %v871, 0
        %v888 = vsel %vm883, %v872, 0
        %v891 = vsel %vm883, %v873, 0
        %v893 = vsel %vm883, %v878, 0
        %v895 = vsel %vm883, %v880, 0
        %v897 = vsel %vm883, %v882, 0
        %899 = vmatprep.subr.mxu0 0.0
        %900 = vmatpush1.xpose.msra.mxu0 %v893
        %901 = vmatprep.subr.mxu0 0.0
        %902 = vmatpush1.xpose.msra.mxu0 %v895
        %903 = vmatprep.subr.mxu0 0.0
        %904 = vmatpush1.xpose.msra.mxu0 %v897
        %905 = vmatprep.subr.mxu0 0.0
        %906 = vmatpush1.xpose.msra.mxu0 0.0
        %907 = vmatprep.subr.mxu0 0.0
        %908 = vmatpush1.xpose.msra.mxu0 0.0
        %909 = vmatprep.subr.mxu0 0.0
        %910 = vmatpush1.xpose.msra.mxu0 0.0
        %911 = vmatprep.subr.mxu0 0.0
        %912 = vmatpush1.xpose.msra.mxu0 0.0
        %913 = vmatprep.subr.mxu0 0.0
        %914 = vmatpush1.xpose.msra.mxu0 0.0
        %915 = vmatprep.subr.mxu0 0.0
        %916 = vmatpush1.xpose.msra.mxu0 0.0
        %917 = vmatprep.subr.mxu0 0.0
        %918 = vmatpush1.xpose.msra.mxu0 0.0
        %919 = vmatprep.subr.mxu0 0.0
        %920 = vmatpush1.xpose.msra.mxu0 0.0
        %921 = vmatprep.subr.mxu0 0.0
        %922 = vmatpush1.xpose.msra.mxu0 0.0
        %923 = vmatprep.subr.mxu0 0.0
        %924 = vmatpush1.xpose.msra.mxu0 0.0
        %925 = vmatprep.subr.mxu0 0.0
        %926 = vmatpush1.xpose.msra.mxu0 0.0
        %927 = vmatprep.subr.mxu0 0.0
        %928 = vmatpush1.xpose.msra.mxu0 0.0
        %929 = vmatprep.subr.mxu0 0.0
        %930 = vmatpush1.xpose.msra.mxu0 0.0
        %931 = vmatprep.subr.mxu0 0.0
        %932 = vmatpush1.xpose.msra.mxu0 0.0
        %933 = vmatprep.subr.mxu0 0.0
        %934 = vmatpush1.xpose.msra.mxu0 0.0
        %935 = vmatprep.subr.mxu0 0.0
        %936 = vmatpush1.xpose.msra.mxu0 0.0
        %937 = vmatprep.subr.mxu0 0.0
        %938 = vmatpush1.xpose.msra.mxu0 0.0
        %939 = vmatprep.subr.mxu0 0.0
        %940 = vmatpush1.xpose.msra.mxu0 0.0
        %941 = vmatprep.subr.mxu0 0.0
        %942 = vmatpush1.xpose.msra.mxu0 0.0
        %943 = vmatprep.subr.mxu0 0.0
        %944 = vmatpush1.xpose.msra.mxu0 0.0
        %945 = vmatprep.subr.mxu0 0.0
        %946 = vmatpush1.xpose.msra.mxu0 0.0
        %947 = vmatprep.subr.mxu0 0.0
        %948 = vmatpush1.xpose.msra.mxu0 0.0
        %949 = vmatprep.subr.mxu0 0.0
        %950 = vmatpush1.xpose.msra.mxu0 0.0
        %951 = vmatprep.subr.mxu0 0.0
        %952 = vmatpush1.xpose.msra.mxu0 0.0
        %953 = vmatprep.subr.mxu0 0.0
        %954 = vmatpush1.xpose.msra.mxu0 0.0
        %955 = vmatprep.subr.mxu0 0.0
        %956 = vmatpush1.xpose.msra.mxu0 0.0
        %957 = vmatprep.subr.mxu0 0.0
        %958 = vmatpush1.xpose.msra.mxu0 0.0
        %959 = vmatprep.subr.mxu0 0.0
        %960 = vmatpush1.xpose.msra.mxu0 0.0
        %961 = vmatprep.subr.mxu0 0.0
        %962 = vmatpush1.xpose.msra.mxu0 0.0
        %963 = vmatprep.mubr.f32.mxu0 0.0
        %964 = vmatmul.mubr.f32.gmra.mrb[0].mxu0 %v885
        %v965 = vpop.f32.mrb[0].mxu0
        %v966 = vadd.f32 0.0, %v965
        %v967 = vpop.f32.mrb[0].mxu0
        %968 = vmatprep.mubr.f32.mxu0 0.0
        %969 = vmatmul.mubr.f32.gmra.mrb[0].mxu0 %v888
        %v970 = vpop.f32.mrb[0].mxu0
        %v971 = vadd.f32 0.0, %v970
        %v972 = vpop.f32.mrb[0].mxu0
        %973 = vmatprep.mubr.f32.mxu0 0.0
        %974 = vmatmul.mubr.f32.gmra.mrb[0].mxu0 %v891
        %v975 = vpop.f32.mrb[0].mxu0
        %v976 = vadd.f32 0.0, %v975
        %v977 = vpop.f32.mrb[0].mxu0
        %978 = vdwg.mxu0
        %vm979 = vcmask 138240
        %v980 = vsel %vm979, %v966, -inf
        %981 = vmax.xlane.f32.xlu0 %v980
        %v982 = vpop.xlane.xlu0 %981
        %v983 = vsel %vm979, %v971, -inf
        %984 = vmax.xlane.f32.xlu0 %v983
        %v985 = vpop.xlane.xlu0 %984
        %vm986 = vcmask 131072
        %v987 = vsel %vm986, %v976, -inf
        %988 = vmax.xlane.f32.xlu0 %v987
        %v989 = vpop.xlane.xlu0 %988
        %v990 = vsub.f32 %v966, %v982
        %v991 = vsub.f32 %v971, %v985
        %v992 = vsub.f32 %v976, %v989
        %v993 = vmul.f32 %v990, 1.442695
        %v994 = vpow.pop %v993
        %v995 = vmul.f32 %v991, 1.442695
        %v996 = vpow.pop %v995
        %v997 = vmul.f32 %v992, 1.442695
        %v998 = vpow.pop %v997
        %v999 = vsel %vm979, %v994, 0.0
        %1000 = vadd.xlane.f32.xlu0 %v999
        %v1001 = vpop.xlane.xlu0 %1000
        %v1002 = vsel %vm979, %v996, 0.0
        %1003 = vadd.xlane.f32.xlu0 %v1002
        %v1004 = vpop.xlane.xlu0 %1003
        %v1005 = vsel %vm986, %v998, 0.0
        %1006 = vadd.xlane.f32.xlu0 %v1005
        %v1007 = vpop.xlane.xlu0 %1006
        %v1008 = vrcp.pop %v1001
        %v1009 = vrcp.pop %v1004
        %v1010 = vrcp.pop %v1007
        %v1011 = vmul.f32 %v994, %v1008
        %v1012 = vmul.f32 %v996, %v1009
        %v1013 = vmul.f32 %v998, %v1010
        %1014 = vrot.lane.b32.xlu0 %v858, 64
        %v1015 = vpop.permute.xlu0 %1014
        %1016 = vrot.lane.b32.xlu0 %v863, 64
        %v1017 = vpop.permute.xlu0 %1016
        %1018 = vrot.lane.b32.xlu0 %v868, 64
        %v1019 = vpop.permute.xlu0 %1018
        %v1023 = vsel %vm979, %v1011, 0
        %v1026 = vsel %vm979, %v1012, 0
        %v1029 = vsel %vm979, %v1013, 0
        %v1031 = vsel %vm756, %v1019, 0
        %1033 = vmatprep.subr.mxu0 0.0
        %1034 = vmatpush1.msra.mxu0 %v1015
        %1035 = vmatprep.subr.mxu0 0.0
        %1036 = vmatpush1.msra.mxu0 %v1017
        %1037 = vmatprep.subr.mxu0 0.0
        %1038 = vmatpush1.msra.mxu0 %v1031
        %1039 = vmatprep.subr.mxu0 0.0
        %1040 = vmatpush1.msra.mxu0 0.0
        %1041 = vmatprep.subr.mxu0 0.0
        %1042 = vmatpush1.msra.mxu0 0.0
        %1043 = vmatprep.subr.mxu0 0.0
        %1044 = vmatpush1.msra.mxu0 0.0
        %1045 = vmatprep.subr.mxu0 0.0
        %1046 = vmatpush1.msra.mxu0 0.0
        %1047 = vmatprep.subr.mxu0 0.0
        %1048 = vmatpush1.msra.mxu0 0.0
        %1049 = vmatprep.subr.mxu0 0.0
        %1050 = vmatpush1.msra.mxu0 0.0
        %1051 = vmatprep.subr.mxu0 0.0
        %1052 = vmatpush1.msra.mxu0 0.0
        %1053 = vmatprep.subr.mxu0 0.0
        %1054 = vmatpush1.msra.mxu0 0.0
        %1055 = vmatprep.subr.mxu0 0.0
        %1056 = vmatpush1.msra.mxu0 0.0
        %1057 = vmatprep.subr.mxu0 0.0
        %1058 = vmatpush1.msra.mxu0 0.0
        %1059 = vmatprep.subr.mxu0 0.0
        %1060 = vmatpush1.msra.mxu0 0.0
        %1061 = vmatprep.subr.mxu0 0.0
        %1062 = vmatpush1.msra.mxu0 0.0
        %1063 = vmatprep.subr.mxu0 0.0
        %1064 = vmatpush1.msra.mxu0 0.0
        %1065 = vmatprep.subr.mxu0 0.0
        %1066 = vmatpush1.msra.mxu0 0.0
        %1067 = vmatprep.subr.mxu0 0.0
        %1068 = vmatpush1.msra.mxu0 0.0
        %1069 = vmatprep.subr.mxu0 0.0
        %1070 = vmatpush1.msra.mxu0 0.0
        %1071 = vmatprep.subr.mxu0 0.0
        %1072 = vmatpush1.msra.mxu0 0.0
        %1073 = vmatprep.subr.mxu0 0.0
        %1074 = vmatpush1.msra.mxu0 0.0
        %1075 = vmatprep.subr.mxu0 0.0
        %1076 = vmatpush1.msra.mxu0 0.0
        %1077 = vmatprep.subr.mxu0 0.0
        %1078 = vmatpush1.msra.mxu0 0.0
        %1079 = vmatprep.subr.mxu0 0.0
        %1080 = vmatpush1.msra.mxu0 0.0
        %1081 = vmatprep.subr.mxu0 0.0
        %1082 = vmatpush1.msra.mxu0 0.0
        %1083 = vmatprep.subr.mxu0 0.0
        %1084 = vmatpush1.msra.mxu0 0.0
        %1085 = vmatprep.subr.mxu0 0.0
        %1086 = vmatpush1.msra.mxu0 0.0
        %1087 = vmatprep.subr.mxu0 0.0
        %1088 = vmatpush1.msra.mxu0 0.0
        %1089 = vmatprep.subr.mxu0 0.0
        %1090 = vmatpush1.msra.mxu0 0.0
        %1091 = vmatprep.subr.mxu0 0.0
        %1092 = vmatpush1.msra.mxu0 0.0
        %1093 = vmatprep.subr.mxu0 0.0
        %1094 = vmatpush1.msra.mxu0 0.0
        %1095 = vmatprep.subr.mxu0 0.0
        %1096 = vmatpush1.msra.mxu0 0.0
        %1097 = vmatprep.mubr.f32.mxu0 0.0
        %1098 = vmatmul.mubr.f32.gmra.mrb[0].mxu0 %v1023
        %v1099 = vpop.f32.mrb[0].mxu0
        %v1100 = vadd.f32 0.0, %v1099
        %v1101 = vpop.f32.mrb[0].mxu0
        %1102 = vmatprep.mubr.f32.mxu0 0.0
        %1103 = vmatmul.mubr.f32.gmra.mrb[0].mxu0 %v1026
        %v1104 = vpop.f32.mrb[0].mxu0
        %v1105 = vadd.f32 0.0, %v1104
        %v1106 = vpop.f32.mrb[0].mxu0
        %1107 = vmatprep.mubr.f32.mxu0 0.0
        %1108 = vmatmul.mubr.f32.gmra.mrb[0].mxu0 %v1029
        %v1109 = vpop.f32.mrb[0].mxu0
        %v1110 = vadd.f32 0.0, %v1109
        %v1111 = vpop.f32.mrb[0].mxu0
        %1112 = vdwg.mxu0
        %1113 = vrot.lane.b32.xlu0 %v871, 120
        %v1114 = vpop.permute.xlu0 %1113
        %1115 = vrot.lane.b32.xlu0 %v872, 120
        %v1116 = vpop.permute.xlu0 %1115
        %1117 = vrot.lane.b32.xlu0 %v873, 120
        %v1118 = vpop.permute.xlu0 %1117
        %1119 = vrot.lane.b32.xlu0 %v858, 88
        %v1120 = vpop.permute.xlu0 %1119
        %1121 = vrot.lane.b32.xlu0 %v863, 88
        %v1122 = vpop.permute.xlu0 %1121
        %1123 = vrot.lane.b32.xlu0 %v868, 88
        %v1124 = vpop.permute.xlu0 %1123
        %v1125 = vsel %vm883, %v1114, 0
        %v1127 = vsel %vm883, %v1116, 0
        %v1129 = vsel %vm883, %v1118, 0
        %v1131 = vsel %vm883, %v1120, 0
        %v1133 = vsel %vm883, %v1122, 0
        %v1135 = vsel %vm883, %v1124, 0
        %1137 = vmatprep.subr.mxu0 0.0
        %1138 = vmatpush1.xpose.msra.mxu0 %v1131
        %1139 = vmatprep.subr.mxu0 0.0
        %1140 = vmatpush1.xpose.msra.mxu0 %v1133
        %1141 = vmatprep.subr.mxu0 0.0
        %1142 = vmatpush1.xpose.msra.mxu0 %v1135
        %1143 = vmatprep.subr.mxu0 0.0
        %1144 = vmatpush1.xpose.msra.mxu0 0.0
        %1145 = vmatprep.subr.mxu0 0.0
        %1146 = vmatpush1.xpose.msra.mxu0 0.0
        %1147 = vmatprep.subr.mxu0 0.0
        %1148 = vmatpush1.xpose.msra.mxu0 0.0
        %1149 = vmatprep.subr.mxu0 0.0
        %1150 = vmatpush1.xpose.msra.mxu0 0.0
        %1151 = vmatprep.subr.mxu0 0.0
        %1152 = vmatpush1.xpose.msra.mxu0 0.0
        %1153 = vmatprep.subr.mxu0 0.0
        %1154 = vmatpush1.xpose.msra.mxu0 0.0
        %1155 = vmatprep.subr.mxu0 0.0
        %1156 = vmatpush1.xpose.msra.mxu0 0.0
        %1157 = vmatprep.subr.mxu0 0.0
        %1158 = vmatpush1.xpose.msra.mxu0 0.0
        %1159 = vmatprep.subr.mxu0 0.0
        %1160 = vmatpush1.xpose.msra.mxu0 0.0
        %1161 = vmatprep.subr.mxu0 0.0
        %1162 = vmatpush1.xpose.msra.mxu0 0.0
        %1163 = vmatprep.subr.mxu0 0.0
        %1164 = vmatpush1.xpose.msra.mxu0 0.0
        %1165 = vmatprep.subr.mxu0 0.0
        %1166 = vmatpush1.xpose.msra.mxu0 0.0
        %1167 = vmatprep.subr.mxu0 0.0
        %1168 = vmatpush1.xpose.msra.mxu0 0.0
        %1169 = vmatprep.subr.mxu0 0.0
        %1170 = vmatpush1.xpose.msra.mxu0 0.0
        %1171 = vmatprep.subr.mxu0 0.0
        %1172 = vmatpush1.xpose.msra.mxu0 0.0
        %1173 = vmatprep.subr.mxu0 0.0
        %1174 = vmatpush1.xpose.msra.mxu0 0.0
        %1175 = vmatprep.subr.mxu0 0.0
        %1176 = vmatpush1.xpose.msra.mxu0 0.0
        %1177 = vmatprep.subr.mxu0 0.0
        %1178 = vmatpush1.xpose.msra.mxu0 0.0
        %1179 = vmatprep.subr.mxu0 0.0
        %1180 = vmatpush1.xpose.msra.mxu0 0.0
        %1181 = vmatprep.subr.mxu0 0.0
        %1182 = vmatpush1.xpose.msra.mxu0 0.0
        %1183 = vmatprep.subr.mxu0 0.0
        %1184 = vmatpush1.xpose.msra.mxu0 0.0
        %1185 = vmatprep.subr.mxu0 0.0
        %1186 = vmatpush1.xpose.msra.mxu0 0.0
        %1187 = vmatprep.subr.mxu0 0.0
        %1188 = vmatpush1.xpose.msra.mxu0 0.0
        %1189 = vmatprep.subr.mxu0 0.0
        %1190 = vmatpush1.xpose.msra.mxu0 0.0
        %1191 = vmatprep.subr.mxu0 0.0
        %1192 = vmatpush1.xpose.msra.mxu0 0.0
        %1193 = vmatprep.subr.mxu0 0.0
        %1194 = vmatpush1.xpose.msra.mxu0 0.0
        %1195 = vmatprep.subr.mxu0 0.0
        %1196 = vmatpush1.xpose.msra.mxu0 0.0
        %1197 = vmatprep.subr.mxu0 0.0
        %1198 = vmatpush1.xpose.msra.mxu0 0.0
        %1199 = vmatprep.subr.mxu0 0.0
        %1200 = vmatpush1.xpose.msra.mxu0 0.0
        %1201 = vmatprep.mubr.f32.mxu0 0.0
        %1202 = vmatmul.mubr.f32.gmra.mrb[0].mxu0 %v1125
        %v1203 = vpop.f32.mrb[0].mxu0
        %v1204 = vadd.f32 0.0, %v1203
        %v1205 = vpop.f32.mrb[0].mxu0
        %1206 = vmatprep.mubr.f32.mxu0 0.0
        %1207 = vmatmul.mubr.f32.gmra.mrb[0].mxu0 %v1127
        %v1208 = vpop.f32.mrb[0].mxu0
        %v1209 = vadd.f32 0.0, %v1208
        %v1210 = vpop.f32.mrb[0].mxu0
        %1211 = vmatprep.mubr.f32.mxu0 0.0
        %1212 = vmatmul.mubr.f32.gmra.mrb[0].mxu0 %v1129
        %v1213 = vpop.f32.mrb[0].mxu0
        %v1214 = vadd.f32 0.0, %v1213
        %v1215 = vpop.f32.mrb[0].mxu0
        %1216 = vdwg.mxu0
        %v1217 = vsel %vm979, %v1204, -inf
        %1218 = vmax.xlane.f32.xlu0 %v1217
        %v1219 = vpop.xlane.xlu0 %1218
        %v1220 = vsel %vm979, %v1209, -inf
        %1221 = vmax.xlane.f32.xlu0 %v1220
        %v1222 = vpop.xlane.xlu0 %1221
        %v1223 = vsel %vm986, %v1214, -inf
        %1224 = vmax.xlane.f32.xlu0 %v1223
        %v1225 = vpop.xlane.xlu0 %1224
        %v1226 = vsub.f32 %v1204, %v1219
        %v1227 = vsub.f32 %v1209, %v1222
        %v1228 = vsub.f32 %v1214, %v1225
        %v1229 = vmul.f32 %v1226, 1.442695
        %v1230 = vpow.pop %v1229
        %v1231 = vmul.f32 %v1227, 1.442695
        %v1232 = vpow.pop %v1231
        %v1233 = vmul.f32 %v1228, 1.442695
        %v1234 = vpow.pop %v1233
        %v1235 = vsel %vm979, %v1230, 0.0
        %1236 = vadd.xlane.f32.xlu0 %v1235
        %v1237 = vpop.xlane.xlu0 %1236
        %v1238 = vsel %vm979, %v1232, 0.0
        %1239 = vadd.xlane.f32.xlu0 %v1238
        %v1240 = vpop.xlane.xlu0 %1239
        %v1241 = vsel %vm986, %v1234, 0.0
        %1242 = vadd.xlane.f32.xlu0 %v1241
        %v1243 = vpop.xlane.xlu0 %1242
        %v1244 = vrcp.pop %v1237
        %v1245 = vrcp.pop %v1240
        %v1246 = vrcp.pop %v1243
        %v1247 = vmul.f32 %v1230, %v1244
        %v1248 = vmul.f32 %v1232, %v1245
        %v1249 = vmul.f32 %v1234, %v1246
        %1250 = vrot.lane.b32.xlu0 %v858, 56
        %v1251 = vpop.permute.xlu0 %1250
        %1252 = vrot.lane.b32.xlu0 %v863, 56
        %v1253 = vpop.permute.xlu0 %1252
        %1254 = vrot.lane.b32.xlu0 %v868, 56
        %v1255 = vpop.permute.xlu0 %1254
        %v1259 = vsel %vm979, %v1247, 0
        %v1262 = vsel %vm979, %v1248, 0
        %v1265 = vsel %vm979, %v1249, 0
        %v1267 = vsel %vm756, %v1255, 0
        %1269 = vmatprep.subr.mxu0 0.0
        %1270 = vmatpush1.msra.mxu0 %v1251
        %1271 = vmatprep.subr.mxu0 0.0
        %1272 = vmatpush1.msra.mxu0 %v1253
        %1273 = vmatprep.subr.mxu0 0.0
        %1274 = vmatpush1.msra.mxu0 %v1267
        %1275 = vmatprep.subr.mxu0 0.0
        %1276 = vmatpush1.msra.mxu0 0.0
        %1277 = vmatprep.subr.mxu0 0.0
        %1278 = vmatpush1.msra.mxu0 0.0
        %1279 = vmatprep.subr.mxu0 0.0
        %1280 = vmatpush1.msra.mxu0 0.0
        %1281 = vmatprep.subr.mxu0 0.0
        %1282 = vmatpush1.msra.mxu0 0.0
        %1283 = vmatprep.subr.mxu0 0.0
        %1284 = vmatpush1.msra.mxu0 0.0
        %1285 = vmatprep.subr.mxu0 0.0
        %1286 = vmatpush1.msra.mxu0 0.0
        %1287 = vmatprep.subr.mxu0 0.0
        %1288 = vmatpush1.msra.mxu0 0.0
        %1289 = vmatprep.subr.mxu0 0.0
        %1290 = vmatpush1.msra.mxu0 0.0
        %1291 = vmatprep.subr.mxu0 0.0
        %1292 = vmatpush1.msra.mxu0 0.0
        %1293 = vmatprep.subr.mxu0 0.0
        %1294 = vmatpush1.msra.mxu0 0.0
        %1295 = vmatprep.subr.mxu0 0.0
        %1296 = vmatpush1.msra.mxu0 0.0
        %1297 = vmatprep.subr.mxu0 0.0
        %1298 = vmatpush1.msra.mxu0 0.0
        %1299 = vmatprep.subr.mxu0 0.0
        %1300 = vmatpush1.msra.mxu0 0.0
        %1301 = vmatprep.subr.mxu0 0.0
        %1302 = vmatpush1.msra.mxu0 0.0
        %1303 = vmatprep.subr.mxu0 0.0
        %1304 = vmatpush1.msra.mxu0 0.0
        %1305 = vmatprep.subr.mxu0 0.0
        %1306 = vmatpush1.msra.mxu0 0.0
        %1307 = vmatprep.subr.mxu0 0.0
        %1308 = vmatpush1.msra.mxu0 0.0
        %1309 = vmatprep.subr.mxu0 0.0
        %1310 = vmatpush1.msra.mxu0 0.0
        %1311 = vmatprep.subr.mxu0 0.0
        %1312 = vmatpush1.msra.mxu0 0.0
        %1313 = vmatprep.subr.mxu0 0.0
        %1314 = vmatpush1.msra.mxu0 0.0
        %1315 = vmatprep.subr.mxu0 0.0
        %1316 = vmatpush1.msra.mxu0 0.0
        %1317 = vmatprep.subr.mxu0 0.0
        %1318 = vmatpush1.msra.mxu0 0.0
        %1319 = vmatprep.subr.mxu0 0.0
        %1320 = vmatpush1.msra.mxu0 0.0
        %1321 = vmatprep.subr.mxu0 0.0
        %1322 = vmatpush1.msra.mxu0 0.0
        %1323 = vmatprep.subr.mxu0 0.0
        %1324 = vmatpush1.msra.mxu0 0.0
        %1325 = vmatprep.subr.mxu0 0.0
        %1326 = vmatpush1.msra.mxu0 0.0
        %1327 = vmatprep.subr.mxu0 0.0
        %1328 = vmatpush1.msra.mxu0 0.0
        %1329 = vmatprep.subr.mxu0 0.0
        %1330 = vmatpush1.msra.mxu0 0.0
        %1331 = vmatprep.subr.mxu0 0.0
        %1332 = vmatpush1.msra.mxu0 0.0
        %1333 = vmatprep.mubr.f32.mxu0 0.0
        %1334 = vmatmul.mubr.f32.gmra.mrb[0].mxu0 %v1259
        %v1335 = vpop.f32.mrb[0].mxu0
        %v1336 = vadd.f32 0.0, %v1335
        %v1337 = vpop.f32.mrb[0].mxu0
        %1338 = vmatprep.mubr.f32.mxu0 0.0
        %1339 = vmatmul.mubr.f32.gmra.mrb[0].mxu0 %v1262
        %v1340 = vpop.f32.mrb[0].mxu0
        %v1341 = vadd.f32 0.0, %v1340
        %v1342 = vpop.f32.mrb[0].mxu0
        %1343 = vmatprep.mubr.f32.mxu0 0.0
        %1344 = vmatmul.mubr.f32.gmra.mrb[0].mxu0 %v1265
        %v1345 = vpop.f32.mrb[0].mxu0
        %v1346 = vadd.f32 0.0, %v1345
        %v1347 = vpop.f32.mrb[0].mxu0
        %1348 = vdwg.mxu0
        %1349 = vrot.lane.b32.xlu0 %v871, 112
        %v1350 = vpop.permute.xlu0 %1349
        %1351 = vrot.lane.b32.xlu0 %v872, 112
        %v1352 = vpop.permute.xlu0 %1351
        %1353 = vrot.lane.b32.xlu0 %v873, 112
        %v1354 = vpop.permute.xlu0 %1353
        %1355 = vrot.lane.b32.xlu0 %v858, 80
        %v1356 = vpop.permute.xlu0 %1355
        %1357 = vrot.lane.b32.xlu0 %v863, 80
        %v1358 = vpop.permute.xlu0 %1357
        %1359 = vrot.lane.b32.xlu0 %v868, 80
        %v1360 = vpop.permute.xlu0 %1359
        %v1361 = vsel %vm883, %v1350, 0
        %v1363 = vsel %vm883, %v1352, 0
        %v1365 = vsel %vm883, %v1354, 0
        %v1367 = vsel %vm883, %v1356, 0
        %v1369 = vsel %vm883, %v1358, 0
        %v1371 = vsel %vm883, %v1360, 0
        %1373 = vmatprep.subr.mxu0 0.0
        %1374 = vmatpush1.xpose.msra.mxu0 %v1367
        %1375 = vmatprep.subr.mxu0 0.0
        %1376 = vmatpush1.xpose.msra.mxu0 %v1369
        %1377 = vmatprep.subr.mxu0 0.0
        %1378 = vmatpush1.xpose.msra.mxu0 %v1371
        %1379 = vmatprep.subr.mxu0 0.0
        %1380 = vmatpush1.xpose.msra.mxu0 0.0
        %1381 = vmatprep.subr.mxu0 0.0
        %1382 = vmatpush1.xpose.msra.mxu0 0.0
        %1383 = vmatprep.subr.mxu0 0.0
        %1384 = vmatpush1.xpose.msra.mxu0 0.0
        %1385 = vmatprep.subr.mxu0 0.0
        %1386 = vmatpush1.xpose.msra.mxu0 0.0
        %1387 = vmatprep.subr.mxu0 0.0
        %1388 = vmatpush1.xpose.msra.mxu0 0.0
        %1389 = vmatprep.subr.mxu0 0.0
        %1390 = vmatpush1.xpose.msra.mxu0 0.0
        %1391 = vmatprep.subr.mxu0 0.0
        %1392 = vmatpush1.xpose.msra.mxu0 0.0
        %1393 = vmatprep.subr.mxu0 0.0
        %1394 = vmatpush1.xpose.msra.mxu0 0.0
        %1395 = vmatprep.subr.mxu0 0.0
        %1396 = vmatpush1.xpose.msra.mxu0 0.0
        %1397 = vmatprep.subr.mxu0 0.0
        %1398 = vmatpush1.xpose.msra.mxu0 0.0
        %1399 = vmatprep.subr.mxu0 0.0
        %1400 = vmatpush1.xpose.msra.mxu0 0.0
        %1401 = vmatprep.subr.mxu0 0.0
        %1402 = vmatpush1.xpose.msra.mxu0 0.0
        %1403 = vmatprep.subr.mxu0 0.0
        %1404 = vmatpush1.xpose.msra.mxu0 0.0
        %1405 = vmatprep.subr.mxu0 0.0
        %1406 = vmatpush1.xpose.msra.mxu0 0.0
        %1407 = vmatprep.subr.mxu0 0.0
        %1408 = vmatpush1.xpose.msra.mxu0 0.0
        %1409 = vmatprep.subr.mxu0 0.0
        %1410 = vmatpush1.xpose.msra.mxu0 0.0
        %1411 = vmatprep.subr.mxu0 0.0
        %1412 = vmatpush1.xpose.msra.mxu0 0.0
        %1413 = vmatprep.subr.mxu0 0.0
        %1414 = vmatpush1.xpose.msra.mxu0 0.0
        %1415 = vmatprep.subr.mxu0 0.0
        %1416 = vmatpush1.xpose.msra.mxu0 0.0
        %1417 = vmatprep.subr.mxu0 0.0
        %1418 = vmatpush1.xpose.msra.mxu0 0.0
        %1419 = vmatprep.subr.mxu0 0.0
        %1420 = vmatpush1.xpose.msra.mxu0 0.0
        %1421 = vmatprep.subr.mxu0 0.0
        %1422 = vmatpush1.xpose.msra.mxu0 0.0
        %1423 = vmatprep.subr.mxu0 0.0
        %1424 = vmatpush1.xpose.msra.mxu0 0.0
        %1425 = vmatprep.subr.mxu0 0.0
        %1426 = vmatpush1.xpose.msra.mxu0 0.0
        %1427 = vmatprep.subr.mxu0 0.0
        %1428 = vmatpush1.xpose.msra.mxu0 0.0
        %1429 = vmatprep.subr.mxu0 0.0
        %1430 = vmatpush1.xpose.msra.mxu0 0.0
        %1431 = vmatprep.subr.mxu0 0.0
        %1432 = vmatpush1.xpose.msra.mxu0 0.0
        %1433 = vmatprep.subr.mxu0 0.0
        %1434 = vmatpush1.xpose.msra.mxu0 0.0
        %1435 = vmatprep.subr.mxu0 0.0
        %1436 = vmatpush1.xpose.msra.mxu0 0.0
        %1437 = vmatprep.mubr.f32.mxu0 0.0
        %1438 = vmatmul.mubr.f32.gmra.mrb[0].mxu0 %v1361
        %v1439 = vpop.f32.mrb[0].mxu0
        %v1440 = vadd.f32 0.0, %v1439
        %v1441 = vpop.f32.mrb[0].mxu0
        %1442 = vmatprep.mubr.f32.mxu0 0.0
        %1443 = vmatmul.mubr.f32.gmra.mrb[0].mxu0 %v1363
        %v1444 = vpop.f32.mrb[0].mxu0
        %v1445 = vadd.f32 0.0, %v1444
        %v1446 = vpop.f32.mrb[0].mxu0
        %1447 = vmatprep.mubr.f32.mxu0 0.0
        %1448 = vmatmul.mubr.f32.gmra.mrb[0].mxu0 %v1365
        %v1449 = vpop.f32.mrb[0].mxu0
        %v1450 = vadd.f32 0.0, %v1449
        %v1451 = vpop.f32.mrb[0].mxu0
        %1452 = vdwg.mxu0
        %v1453 = vsel %vm979, %v1440, -inf
        %1454 = vmax.xlane.f32.xlu0 %v1453
        %v1455 = vpop.xlane.xlu0 %1454
        %v1456 = vsel %vm979, %v1445, -inf
        %1457 = vmax.xlane.f32.xlu0 %v1456
        %v1458 = vpop.xlane.xlu0 %1457
        %v1459 = vsel %vm986, %v1450, -inf
        %1460 = vmax.xlane.f32.xlu0 %v1459
        %v1461 = vpop.xlane.xlu0 %1460
        %v1462 = vsub.f32 %v1440, %v1455
        %v1463 = vsub.f32 %v1445, %v1458
        %v1464 = vsub.f32 %v1450, %v1461
        %v1465 = vmul.f32 %v1462, 1.442695
        %v1466 = vpow.pop %v1465
        %v1467 = vmul.f32 %v1463, 1.442695
        %v1468 = vpow.pop %v1467
        %v1469 = vmul.f32 %v1464, 1.442695
        %v1470 = vpow.pop %v1469
        %v1471 = vsel %vm979, %v1466, 0.0
        %1472 = vadd.xlane.f32.xlu0 %v1471
        %v1473 = vpop.xlane.xlu0 %1472
        %v1474 = vsel %vm979, %v1468, 0.0
        %1475 = vadd.xlane.f32.xlu0 %v1474
        %v1476 = vpop.xlane.xlu0 %1475
        %v1477 = vsel %vm986, %v1470, 0.0
        %1478 = vadd.xlane.f32.xlu0 %v1477
        %v1479 = vpop.xlane.xlu0 %1478
        %v1480 = vrcp.pop %v1473
        %v1481 = vrcp.pop %v1476
        %v1482 = vrcp.pop %v1479
        %v1483 = vmul.f32 %v1466, %v1480
        %v1484 = vmul.f32 %v1468, %v1481
        %v1485 = vmul.f32 %v1470, %v1482
        %1486 = vrot.lane.b32.xlu0 %v858, 48
        %v1487 = vpop.permute.xlu0 %1486
        %1488 = vrot.lane.b32.xlu0 %v863, 48
        %v1489 = vpop.permute.xlu0 %1488
        %1490 = vrot.lane.b32.xlu0 %v868, 48
        %v1491 = vpop.permute.xlu0 %1490
        %v1495 = vsel %vm979, %v1483, 0
        %v1498 = vsel %vm979, %v1484, 0
        %v1501 = vsel %vm979, %v1485, 0
        %v1503 = vsel %vm756, %v1491, 0
        %1505 = vmatprep.subr.mxu0 0.0
        %1506 = vmatpush1.msra.mxu0 %v1487
        %1507 = vmatprep.subr.mxu0 0.0
        %1508 = vmatpush1.msra.mxu0 %v1489
        %1509 = vmatprep.subr.mxu0 0.0
        %1510 = vmatpush1.msra.mxu0 %v1503
        %1511 = vmatprep.subr.mxu0 0.0
        %1512 = vmatpush1.msra.mxu0 0.0
        %1513 = vmatprep.subr.mxu0 0.0
        %1514 = vmatpush1.msra.mxu0 0.0
        %1515 = vmatprep.subr.mxu0 0.0
        %1516 = vmatpush1.msra.mxu0 0.0
        %1517 = vmatprep.subr.mxu0 0.0
        %1518 = vmatpush1.msra.mxu0 0.0
        %1519 = vmatprep.subr.mxu0 0.0
        %1520 = vmatpush1.msra.mxu0 0.0
        %1521 = vmatprep.subr.mxu0 0.0
        %1522 = vmatpush1.msra.mxu0 0.0
        %1523 = vmatprep.subr.mxu0 0.0
        %1524 = vmatpush1.msra.mxu0 0.0
        %1525 = vmatprep.subr.mxu0 0.0
        %1526 = vmatpush1.msra.mxu0 0.0
        %1527 = vmatprep.subr.mxu0 0.0
        %1528 = vmatpush1.msra.mxu0 0.0
        %1529 = vmatprep.subr.mxu0 0.0
        %1530 = vmatpush1.msra.mxu0 0.0
        %1531 = vmatprep.subr.mxu0 0.0
        %1532 = vmatpush1.msra.mxu0 0.0
        %1533 = vmatprep.subr.mxu0 0.0
        %1534 = vmatpush1.msra.mxu0 0.0
        %1535 = vmatprep.subr.mxu0 0.0
        %1536 = vmatpush1.msra.mxu0 0.0
        %1537 = vmatprep.subr.mxu0 0.0
        %1538 = vmatpush1.msra.mxu0 0.0
        %1539 = vmatprep.subr.mxu0 0.0
        %1540 = vmatpush1.msra.mxu0 0.0
        %1541 = vmatprep.subr.mxu0 0.0
        %1542 = vmatpush1.msra.mxu0 0.0
        %1543 = vmatprep.subr.mxu0 0.0
        %1544 = vmatpush1.msra.mxu0 0.0
        %1545 = vmatprep.subr.mxu0 0.0
        %1546 = vmatpush1.msra.mxu0 0.0
        %1547 = vmatprep.subr.mxu0 0.0
        %1548 = vmatpush1.msra.mxu0 0.0
        %1549 = vmatprep.subr.mxu0 0.0
        %1550 = vmatpush1.msra.mxu0 0.0
        %1551 = vmatprep.subr.mxu0 0.0
        %1552 = vmatpush1.msra.mxu0 0.0
        %1553 = vmatprep.subr.mxu0 0.0
        %1554 = vmatpush1.msra.mxu0 0.0
        %1555 = vmatprep.subr.mxu0 0.0
        %1556 = vmatpush1.msra.mxu0 0.0
        %1557 = vmatprep.subr.mxu0 0.0
        %1558 = vmatpush1.msra.mxu0 0.0
        %1559 = vmatprep.subr.mxu0 0.0
        %1560 = vmatpush1.msra.mxu0 0.0
        %1561 = vmatprep.subr.mxu0 0.0
        %1562 = vmatpush1.msra.mxu0 0.0
        %1563 = vmatprep.subr.mxu0 0.0
        %1564 = vmatpush1.msra.mxu0 0.0
        %1565 = vmatprep.subr.mxu0 0.0
        %1566 = vmatpush1.msra.mxu0 0.0
        %1567 = vmatprep.subr.mxu0 0.0
        %1568 = vmatpush1.msra.mxu0 0.0
        %1569 = vmatprep.mubr.f32.mxu0 0.0
        %1570 = vmatmul.mubr.f32.gmra.mrb[0].mxu0 %v1495
        %v1571 = vpop.f32.mrb[0].mxu0
        %v1572 = vadd.f32 0.0, %v1571
        %v1573 = vpop.f32.mrb[0].mxu0
        %1574 = vmatprep.mubr.f32.mxu0 0.0
        %1575 = vmatmul.mubr.f32.gmra.mrb[0].mxu0 %v1498
        %v1576 = vpop.f32.mrb[0].mxu0
        %v1577 = vadd.f32 0.0, %v1576
        %v1578 = vpop.f32.mrb[0].mxu0
        %1579 = vmatprep.mubr.f32.mxu0 0.0
        %1580 = vmatmul.mubr.f32.gmra.mrb[0].mxu0 %v1501
        %v1581 = vpop.f32.mrb[0].mxu0
        %v1582 = vadd.f32 0.0, %v1581
        %v1583 = vpop.f32.mrb[0].mxu0
        %1584 = vdwg.mxu0
        %1585 = vrot.lane.b32.xlu0 %v871, 104
        %v1586 = vpop.permute.xlu0 %1585
        %1587 = vrot.lane.b32.xlu0 %v872, 104
        %v1588 = vpop.permute.xlu0 %1587
        %1589 = vrot.lane.b32.xlu0 %v873, 104
        %v1590 = vpop.permute.xlu0 %1589
        %1591 = vrot.lane.b32.xlu0 %v858, 72
        %v1592 = vpop.permute.xlu0 %1591
        %1593 = vrot.lane.b32.xlu0 %v863, 72
        %v1594 = vpop.permute.xlu0 %1593
        %1595 = vrot.lane.b32.xlu0 %v868, 72
        %v1596 = vpop.permute.xlu0 %1595
        %v1597 = vsel %vm883, %v1586, 0
        %v1599 = vsel %vm883, %v1588, 0
        %v1601 = vsel %vm883, %v1590, 0
        %v1603 = vsel %vm883, %v1592, 0
        %v1605 = vsel %vm883, %v1594, 0
        %v1607 = vsel %vm883, %v1596, 0
        %1609 = vmatprep.subr.mxu0 0.0
        %1610 = vmatpush1.xpose.msra.mxu0 %v1603
        %1611 = vmatprep.subr.mxu0 0.0
        %1612 = vmatpush1.xpose.msra.mxu0 %v1605
        %1613 = vmatprep.subr.mxu0 0.0
        %1614 = vmatpush1.xpose.msra.mxu0 %v1607
        %1615 = vmatprep.subr.mxu0 0.0
        %1616 = vmatpush1.xpose.msra.mxu0 0.0
        %1617 = vmatprep.subr.mxu0 0.0
        %1618 = vmatpush1.xpose.msra.mxu0 0.0
        %1619 = vmatprep.subr.mxu0 0.0
        %1620 = vmatpush1.xpose.msra.mxu0 0.0
        %1621 = vmatprep.subr.mxu0 0.0
        %1622 = vmatpush1.xpose.msra.mxu0 0.0
        %1623 = vmatprep.subr.mxu0 0.0
        %1624 = vmatpush1.xpose.msra.mxu0 0.0
        %1625 = vmatprep.subr.mxu0 0.0
        %1626 = vmatpush1.xpose.msra.mxu0 0.0
        %1627 = vmatprep.subr.mxu0 0.0
        %1628 = vmatpush1.xpose.msra.mxu0 0.0
        %1629 = vmatprep.subr.mxu0 0.0
        %1630 = vmatpush1.xpose.msra.mxu0 0.0
        %1631 = vmatprep.subr.mxu0 0.0
        %1632 = vmatpush1.xpose.msra.mxu0 0.0
        %1633 = vmatprep.subr.mxu0 0.0
        %1634 = vmatpush1.xpose.msra.mxu0 0.0
        %1635 = vmatprep.subr.mxu0 0.0
        %1636 = vmatpush1.xpose.msra.mxu0 0.0
        %1637 = vmatprep.subr.mxu0 0.0
        %1638 = vmatpush1.xpose.msra.mxu0 0.0
        %1639 = vmatprep.subr.mxu0 0.0
        %1640 = vmatpush1.xpose.msra.mxu0 0.0
        %1641 = vmatprep.subr.mxu0 0.0
        %1642 = vmatpush1.xpose.msra.mxu0 0.0
        %1643 = vmatprep.subr.mxu0 0.0
        %1644 = vmatpush1.xpose.msra.mxu0 0.0
        %1645 = vmatprep.subr.mxu0 0.0
        %1646 = vmatpush1.xpose.msra.mxu0 0.0
        %1647 = vmatprep.subr.mxu0 0.0
        %1648 = vmatpush1.xpose.msra.mxu0 0.0
        %1649 = vmatprep.subr.mxu0 0.0
        %1650 = vmatpush1.xpose.msra.mxu0 0.0
        %1651 = vmatprep.subr.mxu0 0.0
        %1652 = vmatpush1.xpose.msra.mxu0 0.0
        %1653 = vmatprep.subr.mxu0 0.0
        %1654 = vmatpush1.xpose.msra.mxu0 0.0
        %1655 = vmatprep.subr.mxu0 0.0
        %1656 = vmatpush1.xpose.msra.mxu0 0.0
        %1657 = vmatprep.subr.mxu0 0.0
        %1658 = vmatpush1.xpose.msra.mxu0 0.0
        %1659 = vmatprep.subr.mxu0 0.0
        %1660 = vmatpush1.xpose.msra.mxu0 0.0
        %1661 = vmatprep.subr.mxu0 0.0
        %1662 = vmatpush1.xpose.msra.mxu0 0.0
        %1663 = vmatprep.subr.mxu0 0.0
        %1664 = vmatpush1.xpose.msra.mxu0 0.0
        %1665 = vmatprep.subr.mxu0 0.0
        %1666 = vmatpush1.xpose.msra.mxu0 0.0
        %1667 = vmatprep.subr.mxu0 0.0
        %1668 = vmatpush1.xpose.msra.mxu0 0.0
        %1669 = vmatprep.subr.mxu0 0.0
        %1670 = vmatpush1.xpose.msra.mxu0 0.0
        %1671 = vmatprep.subr.mxu0 0.0
        %1672 = vmatpush1.xpose.msra.mxu0 0.0
        %1673 = vmatprep.mubr.f32.mxu0 0.0
        %1674 = vmatmul.mubr.f32.gmra.mrb[0].mxu0 %v1597
        %v1675 = vpop.f32.mrb[0].mxu0
        %v1676 = vadd.f32 0.0, %v1675
        %v1677 = vpop.f32.mrb[0].mxu0
        %1678 = vmatprep.mubr.f32.mxu0 0.0
        %1679 = vmatmul.mubr.f32.gmra.mrb[0].mxu0 %v1599
        %v1680 = vpop.f32.mrb[0].mxu0
        %v1681 = vadd.f32 0.0, %v1680
        %v1682 = vpop.f32.mrb[0].mxu0
        %1683 = vmatprep.mubr.f32.mxu0 0.0
        %1684 = vmatmul.mubr.f32.gmra.mrb[0].mxu0 %v1601
        %v1685 = vpop.f32.mrb[0].mxu0
        %v1686 = vadd.f32 0.0, %v1685
        %v1687 = vpop.f32.mrb[0].mxu0
        %1688 = vdwg.mxu0
        %v1689 = vsel %vm979, %v1676, -inf
        %1690 = vmax.xlane.f32.xlu0 %v1689
        %v1691 = vpop.xlane.xlu0 %1690
        %v1692 = vsel %vm979, %v1681, -inf
        %1693 = vmax.xlane.f32.xlu0 %v1692
        %v1694 = vpop.xlane.xlu0 %1693
        %v1695 = vsel %vm986, %v1686, -inf
        %1696 = vmax.xlane.f32.xlu0 %v1695
        %v1697 = vpop.xlane.xlu0 %1696
        %v1698 = vsub.f32 %v1676, %v1691
        %v1699 = vsub.f32 %v1681, %v1694
        %v1700 = vsub.f32 %v1686, %v1697
        %v1701 = vmul.f32 %v1698, 1.442695
        %v1702 = vpow.pop %v1701
        %v1703 = vmul.f32 %v1699, 1.442695
        %v1704 = vpow.pop %v1703
        %v1705 = vmul.f32 %v1700, 1.442695
        %v1706 = vpow.pop %v1705
        %v1707 = vsel %vm979, %v1702, 0.0
        %1708 = vadd.xlane.f32.xlu0 %v1707
        %v1709 = vpop.xlane.xlu0 %1708
        %v1710 = vsel %vm979, %v1704, 0.0
        %1711 = vadd.xlane.f32.xlu0 %v1710
        %v1712 = vpop.xlane.xlu0 %1711
        %v1713 = vsel %vm986, %v1706, 0.0
        %1714 = vadd.xlane.f32.xlu0 %v1713
        %v1715 = vpop.xlane.xlu0 %1714
        %v1716 = vrcp.pop %v1709
        %v1717 = vrcp.pop %v1712
        %v1718 = vrcp.pop %v1715
        %v1719 = vmul.f32 %v1702, %v1716
        %v1720 = vmul.f32 %v1704, %v1717
        %v1721 = vmul.f32 %v1706, %v1718
        %1722 = vrot.lane.b32.xlu0 %v858, 40
        %v1723 = vpop.permute.xlu0 %1722
        %1724 = vrot.lane.b32.xlu0 %v863, 40
        %v1725 = vpop.permute.xlu0 %1724
        %1726 = vrot.lane.b32.xlu0 %v868, 40
        %v1727 = vpop.permute.xlu0 %1726
        %v1731 = vsel %vm979, %v1719, 0
        %v1734 = vsel %vm979, %v1720, 0
        %v1737 = vsel %vm979, %v1721, 0
        %v1739 = vsel %vm756, %v1727, 0
        %1741 = vmatprep.subr.mxu0 0.0
        %1742 = vmatpush1.msra.mxu0 %v1723
        %1743 = vmatprep.subr.mxu0 0.0
        %1744 = vmatpush1.msra.mxu0 %v1725
        %1745 = vmatprep.subr.mxu0 0.0
        %1746 = vmatpush1.msra.mxu0 %v1739
        %1747 = vmatprep.subr.mxu0 0.0
        %1748 = vmatpush1.msra.mxu0 0.0
        %1749 = vmatprep.subr.mxu0 0.0
        %1750 = vmatpush1.msra.mxu0 0.0
        %1751 = vmatprep.subr.mxu0 0.0
        %1752 = vmatpush1.msra.mxu0 0.0
        %1753 = vmatprep.subr.mxu0 0.0
        %1754 = vmatpush1.msra.mxu0 0.0
        %1755 = vmatprep.subr.mxu0 0.0
        %1756 = vmatpush1.msra.mxu0 0.0
        %1757 = vmatprep.subr.mxu0 0.0
        %1758 = vmatpush1.msra.mxu0 0.0
        %1759 = vmatprep.subr.mxu0 0.0
        %1760 = vmatpush1.msra.mxu0 0.0
        %1761 = vmatprep.subr.mxu0 0.0
        %1762 = vmatpush1.msra.mxu0 0.0
        %1763 = vmatprep.subr.mxu0 0.0
        %1764 = vmatpush1.msra.mxu0 0.0
        %1765 = vmatprep.subr.mxu0 0.0
        %1766 = vmatpush1.msra.mxu0 0.0
        %1767 = vmatprep.subr.mxu0 0.0
        %1768 = vmatpush1.msra.mxu0 0.0
        %1769 = vmatprep.subr.mxu0 0.0
        %1770 = vmatpush1.msra.mxu0 0.0
        %1771 = vmatprep.subr.mxu0 0.0
        %1772 = vmatpush1.msra.mxu0 0.0
        %1773 = vmatprep.subr.mxu0 0.0
        %1774 = vmatpush1.msra.mxu0 0.0
        %1775 = vmatprep.subr.mxu0 0.0
        %1776 = vmatpush1.msra.mxu0 0.0
        %1777 = vmatprep.subr.mxu0 0.0
        %1778 = vmatpush1.msra.mxu0 0.0
        %1779 = vmatprep.subr.mxu0 0.0
        %1780 = vmatpush1.msra.mxu0 0.0
        %1781 = vmatprep.subr.mxu0 0.0
        %1782 = vmatpush1.msra.mxu0 0.0
        %1783 = vmatprep.subr.mxu0 0.0
        %1784 = vmatpush1.msra.mxu0 0.0
        %1785 = vmatprep.subr.mxu0 0.0
        %1786 = vmatpush1.msra.mxu0 0.0
        %1787 = vmatprep.subr.mxu0 0.0
        %1788 = vmatpush1.msra.mxu0 0.0
        %1789 = vmatprep.subr.mxu0 0.0
        %1790 = vmatpush1.msra.mxu0 0.0
        %1791 = vmatprep.subr.mxu0 0.0
        %1792 = vmatpush1.msra.mxu0 0.0
        %1793 = vmatprep.subr.mxu0 0.0
        %1794 = vmatpush1.msra.mxu0 0.0
        %1795 = vmatprep.subr.mxu0 0.0
        %1796 = vmatpush1.msra.mxu0 0.0
        %1797 = vmatprep.subr.mxu0 0.0
        %1798 = vmatpush1.msra.mxu0 0.0
        %1799 = vmatprep.subr.mxu0 0.0
        %1800 = vmatpush1.msra.mxu0 0.0
        %1801 = vmatprep.subr.mxu0 0.0
        %1802 = vmatpush1.msra.mxu0 0.0
        %1803 = vmatprep.subr.mxu0 0.0
        %1804 = vmatpush1.msra.mxu0 0.0
        %1805 = vmatprep.mubr.f32.mxu0 0.0
        %1806 = vmatmul.mubr.f32.gmra.mrb[0].mxu0 %v1731
        %v1807 = vpop.f32.mrb[0].mxu0
        %v1808 = vadd.f32 0.0, %v1807
        %v1809 = vpop.f32.mrb[0].mxu0
        %1810 = vmatprep.mubr.f32.mxu0 0.0
        %1811 = vmatmul.mubr.f32.gmra.mrb[0].mxu0 %v1734
        %v1812 = vpop.f32.mrb[0].mxu0
        %v1813 = vadd.f32 0.0, %v1812
        %v1814 = vpop.f32.mrb[0].mxu0
        %1815 = vmatprep.mubr.f32.mxu0 0.0
        %1816 = vmatmul.mubr.f32.gmra.mrb[0].mxu0 %v1737
        %v1817 = vpop.f32.mrb[0].mxu0
        %v1818 = vadd.f32 0.0, %v1817
        %v1819 = vpop.f32.mrb[0].mxu0
        %1820 = vdwg.mxu0
        %1824 = vrot.lane.b32.xlu0 %v1336, 8
        %v1825 = vpop.permute.xlu0 %1824
        %1826 = vrot.lane.b32.xlu0 %v1341, 8
        %v1827 = vpop.permute.xlu0 %1826
        %1828 = vrot.lane.b32.xlu0 %v1346, 8
        %v1829 = vpop.permute.xlu0 %1828
        %1836 = vrot.lane.b32.xlu0 %v1572, 16
        %v1837 = vpop.permute.xlu0 %1836
        %1838 = vrot.lane.b32.xlu0 %v1577, 16
        %v1839 = vpop.permute.xlu0 %1838
        %1840 = vrot.lane.b32.xlu0 %v1582, 16
        %v1841 = vpop.permute.xlu0 %1840
        %1848 = vrot.lane.b32.xlu0 %v1808, 24
        %v1849 = vpop.permute.xlu0 %1848
        %1850 = vrot.lane.b32.xlu0 %v1813, 24
        %v1851 = vpop.permute.xlu0 %1850
        %1852 = vrot.lane.b32.xlu0 %v1818, 24
        %v1853 = vpop.permute.xlu0 %1852
        %v1857 = vsel %vm883, %v1100, %v1825
        %v1858 = vsel %vm883, %v1105, %v1827
        %v1859 = vsel %vm883, %v1110, %v1829
        %vm1860 = vcmask 130048
        %v1861 = vsel %vm1860, %v1857, %v1837
        %v1862 = vsel %vm1860, %v1858, %v1839
        %v1863 = vsel %vm1860, %v1859, %v1841
        %vm1864 = vcmask 195584
        %v1865 = vsel %vm1864, %v1861, %v1849
        %v1866 = vsel %vm1864, %v1862, %v1851
        %v1867 = vsel %vm1864, %v1863, %v1853
        %v1868 = vld [vmem:[%s7] sm:$0xff]
        %v1869 = vld [vmem:[%s7 + $0x8] sm:$0xff]
        %v1870 = vld [vmem:[%s7 + $0x10] sm:$0xff]
        %v1871 = vld [vmem:[%s7 + $0x18] sm:$0xff]
        %v1872 = vld [vmem:[%s8] sm:$0x1]
        %v1874 = vlaneseq
        %v1875 = vshrl.u32 %v1874, 7
        %v1876 = vsub.s32 0, %v1875
        %v1877 = vrot.slane %v1872, %v1876
        %v1880 = vsel %vm781, %v1865, 0
        %v1883 = vsel %vm781, %v1866, 0
        %v1886 = vsel %vm781, %v1867, 0
        %1888 = vmatprep.subr.mxu0 0.0
        %1889 = vmatpush1.msra.mxu0 %v1868
        %1890 = vmatprep.subr.mxu0 0.0
        %1891 = vmatpush1.msra.mxu0 %v1869
        %1892 = vmatprep.subr.mxu0 0.0
        %1893 = vmatpush1.msra.mxu0 %v1870
        %1894 = vmatprep.subr.mxu0 0.0
        %1895 = vmatpush1.msra.mxu0 %v1871
        %1896 = vmatprep.subr.mxu0 0.0
        %1897 = vmatpush1.msra.mxu0 0.0
        %1898 = vmatprep.subr.mxu0 0.0
        %1899 = vmatpush1.msra.mxu0 0.0
        %1900 = vmatprep.subr.mxu0 0.0
        %1901 = vmatpush1.msra.mxu0 0.0
        %1902 = vmatprep.subr.mxu0 0.0
        %1903 = vmatpush1.msra.mxu0 0.0
        %1904 = vmatprep.subr.mxu0 0.0
        %1905 = vmatpush1.msra.mxu0 0.0
        %1906 = vmatprep.subr.mxu0 0.0
        %1907 = vmatpush1.msra.mxu0 0.0
        %1908 = vmatprep.subr.mxu0 0.0
        %1909 = vmatpush1.msra.mxu0 0.0
        %1910 = vmatprep.subr.mxu0 0.0
        %1911 = vmatpush1.msra.mxu0 0.0
        %1912 = vmatprep.subr.mxu0 0.0
        %1913 = vmatpush1.msra.mxu0 0.0
        %1914 = vmatprep.subr.mxu0 0.0
        %1915 = vmatpush1.msra.mxu0 0.0
        %1916 = vmatprep.subr.mxu0 0.0
        %1917 = vmatpush1.msra.mxu0 0.0
        %1918 = vmatprep.subr.mxu0 0.0
        %1919 = vmatpush1.msra.mxu0 0.0
        %1920 = vmatprep.subr.mxu0 0.0
        %1921 = vmatpush1.msra.mxu0 0.0
        %1922 = vmatprep.subr.mxu0 0.0
        %1923 = vmatpush1.msra.mxu0 0.0
        %1924 = vmatprep.subr.mxu0 0.0
        %1925 = vmatpush1.msra.mxu0 0.0
        %1926 = vmatprep.subr.mxu0 0.0
        %1927 = vmatpush1.msra.mxu0 0.0
        %1928 = vmatprep.subr.mxu0 0.0
        %1929 = vmatpush1.msra.mxu0 0.0
        %1930 = vmatprep.subr.mxu0 0.0
        %1931 = vmatpush1.msra.mxu0 0.0
        %1932 = vmatprep.subr.mxu0 0.0
        %1933 = vmatpush1.msra.mxu0 0.0
        %1934 = vmatprep.subr.mxu0 0.0
        %1935 = vmatpush1.msra.mxu0 0.0
        %1936 = vmatprep.subr.mxu0 0.0
        %1937 = vmatpush1.msra.mxu0 0.0
        %1938 = vmatprep.subr.mxu0 0.0
        %1939 = vmatpush1.msra.mxu0 0.0
        %1940 = vmatprep.subr.mxu0 0.0
        %1941 = vmatpush1.msra.mxu0 0.0
        %1942 = vmatprep.subr.mxu0 0.0
        %1943 = vmatpush1.msra.mxu0 0.0
        %1944 = vmatprep.subr.mxu0 0.0
        %1945 = vmatpush1.msra.mxu0 0.0
        %1946 = vmatprep.subr.mxu0 0.0
        %1947 = vmatpush1.msra.mxu0 0.0
        %1948 = vmatprep.subr.mxu0 0.0
        %1949 = vmatpush1.msra.mxu0 0.0
        %1950 = vmatprep.subr.mxu0 0.0
        %1951 = vmatpush1.msra.mxu0 0.0
        %1952 = vmatprep.mubr.f32.mxu0 0.0
        %1953 = vmatmul.mubr.f32.gmra.mrb[0].mxu0 %v1880
        %v1954 = vpop.f32.mrb[0].mxu0
        %v1955 = vadd.f32 %v1877, %v1954
        %v1956 = vpop.f32.mrb[0].mxu0
        %1957 = vmatprep.mubr.f32.mxu0 0.0
        %1958 = vmatmul.mubr.f32.gmra.mrb[0].mxu0 %v1883
        %v1959 = vpop.f32.mrb[0].mxu0
        %v1960 = vadd.f32 %v1877, %v1959
        %v1961 = vpop.f32.mrb[0].mxu0
        %1962 = vmatprep.mubr.f32.mxu0 0.0
        %1963 = vmatmul.mubr.f32.gmra.mrb[0].mxu0 %v1886
        %v1964 = vpop.f32.mrb[0].mxu0
        %v1965 = vadd.f32 %v1877, %v1964
        %v1966 = vpop.f32.mrb[0].mxu0
        %1967 = vdwg.mxu0
        %v1968 = vadd.f32 %v767, %v1955
        %v1969 = vadd.f32 %v768, %v1960
        %v1970 = vadd.f32 %v769, %v1965
        %v1971 = vld [vmem:[%s9] sm:$0x1]
        %v1972 = vld [vmem:[%s10] sm:$0x1]
        %v1973 = vsel %vm781, %v1968, 0.0
        %1974 = vadd.xlane.f32.xlu0 %v1973
        %v1975 = vpop.xlane.xlu0 %1974
        %v1976 = vsel %vm781, %v1969, 0.0
        %1977 = vadd.xlane.f32.xlu0 %v1976
        %v1978 = vpop.xlane.xlu0 %1977
        %vm1979 = vcmask 253952
        %v1980 = vsel %vm1979, %v1970, 0.0
        %1981 = vadd.xlane.f32.xlu0 %v1980
        %v1982 = vpop.xlane.xlu0 %1981
        %v1983 = vrcp.pop 32.0
        %v1984 = vmul.f32 %v1975, %v1983
        %v1985 = vmul.f32 %v1978, %v1983
        %v1986 = vmul.f32 %v1982, %v1983
        %v1987 = vsub.f32 %v1968, %v1984
        %v1988 = vsub.f32 %v1969, %v1985
        %v1989 = vsub.f32 %v1970, %v1986
        %v1990 = vmul.f32 %v1987, %v1987
        %v1991 = vmul.f32 %v1988, %v1988
        %v1992 = vmul.f32 %v1989, %v1989
        %v1993 = vsel %vm781, %v1990, 0.0
        %1994 = vadd.xlane.f32.xlu0 %v1993
        %v1995 = vpop.xlane.xlu0 %1994
        %v1996 = vsel %vm781, %v1991, 0.0
        %1997 = vadd.xlane.f32.xlu0 %v1996
        %v1998 = vpop.xlane.xlu0 %1997
        %v1999 = vsel %vm1979, %v1992, 0.0
        %2000 = vadd.xlane.f32.xlu0 %v1999
        %v2001 = vpop.xlane.xlu0 %2000
        %v2002 = vmul.f32 %v1995, %v1983
        %v2003 = vmul.f32 %v1998, %v1983
        %v2004 = vmul.f32 %v2001, %v1983
        %v2005 = vadd.f32 %v2002, 1e-05
        %v2006 = vadd.f32 %v2003, 1e-05
        %v2007 = vadd.f32 %v2004, 1e-05
        %v2008 = vrsqrt.pop %v2005
        %v2009 = vrsqrt.pop %v2006
        %v2010 = vrsqrt.pop %v2007
        %v2011 = vmul.f32 %v1987, %v2008
        %v2012 = vmul.f32 %v1988, %v2009
        %v2013 = vmul.f32 %v1989, %v2010
        %v2015 = vlaneseq
        %v2016 = vshrl.u32 %v2015, 7
        %v2017 = vsub.s32 0, %v2016
        %v2018 = vrot.slane %v1971, %v2017
        %v2020 = vmul.f32 %v2011, %v2018
        %v2021 = vmul.f32 %v2012, %v2018
        %v2022 = vmul.f32 %v2013, %v2018
        %v2024 = vlaneseq
        %v2025 = vshrl.u32 %v2024, 7
        %v2026 = vsub.s32 0, %v2025
        %v2027 = vrot.slane %v1972, %v2026
        %v2029 = vadd.f32 %v2020, %v2027
        %v2030 = vadd.f32 %v2021, %v2027
        %v2031 = vadd.f32 %v2022, %v2027
        %v2032 = vld [vmem:[%s11] sm:$0xff]
        %v2033 = vld [vmem:[%s11 + $0x8] sm:$0xff]
        %v2034 = vld [vmem:[%s11 + $0x10] sm:$0xff]
        %v2035 = vld [vmem:[%s11 + $0x18] sm:$0xff]
        %v2036 = vld [vmem:[%s12] sm:$0x1]
        %v2038 = vlaneseq
        %v2039 = vshrl.u32 %v2038, 7
        %v2040 = vsub.s32 0, %v2039
        %v2041 = vrot.slane %v2036, %v2040
        %v2044 = vsel %vm781, %v2029, 0
        %v2047 = vsel %vm781, %v2030, 0
        %v2050 = vsel %vm781, %v2031, 0
        %2052 = vmatprep.subr.mxu0 0.0
        %2053 = vmatpush1.msra.mxu0 %v2032
        %2054 = vmatprep.subr.mxu0 0.0
        %2055 = vmatpush1.msra.mxu0 %v2033
        %2056 = vmatprep.subr.mxu0 0.0
        %2057 = vmatpush1.msra.mxu0 %v2034
        %2058 = vmatprep.subr.mxu0 0.0
        %2059 = vmatpush1.msra.mxu0 %v2035
        %2060 = vmatprep.subr.mxu0 0.0
        %2061 = vmatpush1.msra.mxu0 0.0
        %2062 = vmatprep.subr.mxu0 0.0
        %2063 = vmatpush1.msra.mxu0 0.0
        %2064 = vmatprep.subr.mxu0 0.0
        %2065 = vmatpush1.msra.mxu0 0.0
        %2066 = vmatprep.subr.mxu0 0.0
        %2067 = vmatpush1.msra.mxu0 0.0
        %2068 = vmatprep.subr.mxu0 0.0
        %2069 = vmatpush1.msra.mxu0 0.0
        %2070 = vmatprep.subr.mxu0 0.0
        %2071 = vmatpush1.msra.mxu0 0.0
        %2072 = vmatprep.subr.mxu0 0.0
        %2073 = vmatpush1.msra.mxu0 0.0
        %2074 = vmatprep.subr.mxu0 0.0
        %2075 = vmatpush1.msra.mxu0 0.0
        %2076 = vmatprep.subr.mxu0 0.0
        %2077 = vmatpush1.msra.mxu0 0.0
        %2078 = vmatprep.subr.mxu0 0.0
        %2079 = vmatpush1.msra.mxu0 0.0
        %2080 = vmatprep.subr.mxu0 0.0
        %2081 = vmatpush1.msra.mxu0 0.0
        %2082 = vmatprep.subr.mxu0 0.0
        %2083 = vmatpush1.msra.mxu0 0.0
        %2084 = vmatprep.subr.mxu0 0.0
        %2085 = vmatpush1.msra.mxu0 0.0
        %2086 = vmatprep.subr.mxu0 0.0
        %2087 = vmatpush1.msra.mxu0 0.0
        %2088 = vmatprep.subr.mxu0 0.0
        %2089 = vmatpush1.msra.mxu0 0.0
        %2090 = vmatprep.subr.mxu0 0.0
        %2091 = vmatpush1.msra.mxu0 0.0
        %2092 = vmatprep.subr.mxu0 0.0
        %2093 = vmatpush1.msra.mxu0 0.0
        %2094 = vmatprep.subr.mxu0 0.0
        %2095 = vmatpush1.msra.mxu0 0.0
        %2096 = vmatprep.subr.mxu0 0.0
        %2097 = vmatpush1.msra.mxu0 0.0
        %2098 = vmatprep.subr.mxu0 0.0
        %2099 = vmatpush1.msra.mxu0 0.0
        %2100 = vmatprep.subr.mxu0 0.0
        %2101 = vmatpush1.msra.mxu0 0.0
        %2102 = vmatprep.subr.mxu0 0.0
        %2103 = vmatpush1.msra.mxu0 0.0
        %2104 = vmatprep.subr.mxu0 0.0
        %2105 = vmatpush1.msra.mxu0 0.0
        %2106 = vmatprep.subr.mxu0 0.0
        %2107 = vmatpush1.msra.mxu0 0.0
        %2108 = vmatprep.subr.mxu0 0.0
        %2109 = vmatpush1.msra.mxu0 0.0
        %2110 = vmatprep.subr.mxu0 0.0
        %2111 = vmatpush1.msra.mxu0 0.0
        %2112 = vmatprep.subr.mxu0 0.0
        %2113 = vmatpush1.msra.mxu0 0.0
        %2114 = vmatprep.subr.mxu0 0.0
        %2115 = vmatpush1.msra.mxu0 0.0
        %2116 = vmatprep.mubr.f32.mxu0 0.0
        %2117 = vmatmul.mubr.f32.gmra.mrb[0].mxu0 %v2044
        %v2118 = vpop.f32.mrb[0].mxu0
        %v2119 = vadd.f32 %v2041, %v2118
        %v2120 = vpop.f32.mrb[0].mxu0
        %2121 = vmatprep.mubr.f32.mxu0 0.0
        %2122 = vmatmul.mubr.f32.gmra.mrb[0].mxu0 %v2047
        %v2123 = vpop.f32.mrb[0].mxu0
        %v2124 = vadd.f32 %v2041, %v2123
        %v2125 = vpop.f32.mrb[0].mxu0
        %2126 = vmatprep.mubr.f32.mxu0 0.0
        %2127 = vmatmul.mubr.f32.gmra.mrb[0].mxu0 %v2050
        %v2128 = vpop.f32.mrb[0].mxu0
        %v2129 = vadd.f32 %v2041, %v2128
        %v2130 = vpop.f32.mrb[0].mxu0
        %2131 = vdwg.mxu0
        %v2132 = vmul.f32 %v2119, %v2119
        %v2133 = vmul.f32 %v2124, %v2124
        %v2134 = vmul.f32 %v2129, %v2129
        %v2135 = vmul.f32 %v2119, %v2132
        %v2136 = vmul.f32 %v2124, %v2133
        %v2137 = vmul.f32 %v2129, %v2134
        %v2138 = vmul.f32 %v2135, 0.044715
        %v2139 = vmul.f32 %v2136, 0.044715
        %v2140 = vmul.f32 %v2137, 0.044715
        %v2141 = vadd.f32 %v2119, %v2138
        %v2142 = vadd.f32 %v2124, %v2139
        %v2143 = vadd.f32 %v2129, %v2140
        %v2144 = vmul.f32 %v2141, 0.7978846
        %v2145 = vmul.f32 %v2142, 0.7978846
        %v2146 = vmul.f32 %v2143, 0.7978846
        %v2147 = vtanh.pop %v2144
        %v2148 = vtanh.pop %v2145
        %v2149 = vtanh.pop %v2146
        %v2150 = vadd.f32 %v2147, 1.0
        %v2151 = vadd.f32 %v2148, 1.0
        %v2152 = vadd.f32 %v2149, 1.0
        %v2153 = vmul.f32 %v2150, 0.5
        %v2154 = vmul.f32 %v2151, 0.5
        %v2155 = vmul.f32 %v2152, 0.5
        %v2156 = vmul.f32 %v2119, %v2153
        %v2157 = vmul.f32 %v2124, %v2154
        %v2158 = vmul.f32 %v2129, %v2155
        %v2159 = vld [vmem:[%s13] sm:$0xff]
        %v2160 = vld [vmem:[%s13 + $0x8] sm:$0xff]
        %v2161 = vld [vmem:[%s13 + $0x10] sm:$0xff]
        %v2162 = vld [vmem:[%s13 + $0x18] sm:$0xff]
        %v2163 = vld [vmem:[%s13 + $0x20] sm:$0xff]
        %v2164 = vld [vmem:[%s13 + $0x28] sm:$0xff]
        %v2165 = vld [vmem:[%s13 + $0x30] sm:$0xff]
        %v2166 = vld [vmem:[%s13 + $0x38] sm:$0xff]
        %v2167 = vld [vmem:[%s13 + $0x40] sm:$0xff]
        %v2168 = vld [vmem:[%s13 + $0x48] sm:$0xff]
        %v2169 = vld [vmem:[%s13 + $0x50] sm:$0xff]
        %v2170 = vld [vmem:[%s13 + $0x58] sm:$0xff]
        %v2171 = vld [vmem:[%s13 + $0x60] sm:$0xff]
        %v2172 = vld [vmem:[%s13 + $0x68] sm:$0xff]
        %v2173 = vld [vmem:[%s13 + $0x70] sm:$0xff]
        %v2174 = vld [vmem:[%s13 + $0x78] sm:$0xff]
        %v2175 = vld [vmem:[%s14] sm:$0x1]
        %v2177 = vlaneseq
        %v2178 = vshrl.u32 %v2177, 7
        %v2179 = vsub.s32 0, %v2178
        %v2180 = vrot.slane %v2175, %v2179
        %2182 = vmatprep.subr.mxu0 0.0
        %2183 = vmatpush1.msra.mxu0 %v2159
        %2184 = vmatprep.subr.mxu0 0.0
        %2185 = vmatpush1.msra.mxu0 %v2160
        %2186 = vmatprep.subr.mxu0 0.0
        %2187 = vmatpush1.msra.mxu0 %v2161
        %2188 = vmatprep.subr.mxu0 0.0
        %2189 = vmatpush1.msra.mxu0 %v2162
        %2190 = vmatprep.subr.mxu0 0.0
        %2191 = vmatpush1.msra.mxu0 %v2163
        %2192 = vmatprep.subr.mxu0 0.0
        %2193 = vmatpush1.msra.mxu0 %v2164
        %2194 = vmatprep.subr.mxu0 0.0
        %2195 = vmatpush1.msra.mxu0 %v2165
        %2196 = vmatprep.subr.mxu0 0.0
        %2197 = vmatpush1.msra.mxu0 %v2166
        %2198 = vmatprep.subr.mxu0 0.0
        %2199 = vmatpush1.msra.mxu0 %v2167
        %2200 = vmatprep.subr.mxu0 0.0
        %2201 = vmatpush1.msra.mxu0 %v2168
        %2202 = vmatprep.subr.mxu0 0.0
        %2203 = vmatpush1.msra.mxu0 %v2169
        %2204 = vmatprep.subr.mxu0 0.0
        %2205 = vmatpush1.msra.mxu0 %v2170
        %2206 = vmatprep.subr.mxu0 0.0
        %2207 = vmatpush1.msra.mxu0 %v2171
        %2208 = vmatprep.subr.mxu0 0.0
        %2209 = vmatpush1.msra.mxu0 %v2172
        %2210 = vmatprep.subr.mxu0 0.0
        %2211 = vmatpush1.msra.mxu0 %v2173
        %2212 = vmatprep.subr.mxu0 0.0
        %2213 = vmatpush1.msra.mxu0 %v2174
        %2214 = vmatprep.subr.mxu0 0.0
        %2215 = vmatpush1.msra.mxu0 0.0
        %2216 = vmatprep.subr.mxu0 0.0
        %2217 = vmatpush1.msra.mxu0 0.0
        %2218 = vmatprep.subr.mxu0 0.0
        %2219 = vmatpush1.msra.mxu0 0.0
        %2220 = vmatprep.subr.mxu0 0.0
        %2221 = vmatpush1.msra.mxu0 0.0
        %2222 = vmatprep.subr.mxu0 0.0
        %2223 = vmatpush1.msra.mxu0 0.0
        %2224 = vmatprep.subr.mxu0 0.0
        %2225 = vmatpush1.msra.mxu0 0.0
        %2226 = vmatprep.subr.mxu0 0.0
        %2227 = vmatpush1.msra.mxu0 0.0
        %2228 = vmatprep.subr.mxu0 0.0
        %2229 = vmatpush1.msra.mxu0 0.0
        %2230 = vmatprep.subr.mxu0 0.0
        %2231 = vmatpush1.msra.mxu0 0.0
        %2232 = vmatprep.subr.mxu0 0.0
        %2233 = vmatpush1.msra.mxu0 0.0
        %2234 = vmatprep.subr.mxu0 0.0
        %2235 = vmatpush1.msra.mxu0 0.0
        %2236 = vmatprep.subr.mxu0 0.0
        %2237 = vmatpush1.msra.mxu0 0.0
        %2238 = vmatprep.subr.mxu0 0.0
        %2239 = vmatpush1.msra.mxu0 0.0
        %2240 = vmatprep.subr.mxu0 0.0
        %2241 = vmatpush1.msra.mxu0 0.0
        %2242 = vmatprep.subr.mxu0 0.0
        %2243 = vmatpush1.msra.mxu0 0.0
        %2244 = vmatprep.subr.mxu0 0.0
        %2245 = vmatpush1.msra.mxu0 0.0
        %2246 = vmatprep.mubr.f32.mxu0 0.0
        %2247 = vmatmul.mubr.f32.gmra.mrb[0].mxu0 %v2156
        %v2248 = vpop.f32.mrb[0].mxu0
        %v2249 = vadd.f32 %v2180, %v2248
        %v2250 = vpop.f32.mrb[0].mxu0
        %2251 = vmatprep.mubr.f32.mxu0 0.0
        %2252 = vmatmul.mubr.f32.gmra.mrb[0].mxu0 %v2157
        %v2253 = vpop.f32.mrb[0].mxu0
        %v2254 = vadd.f32 %v2180, %v2253
        %v2255 = vpop.f32.mrb[0].mxu0
        %2256 = vmatprep.mubr.f32.mxu0 0.0
        %2257 = vmatmul.mubr.f32.gmra.mrb[0].mxu0 %v2158
        %v2258 = vpop.f32.mrb[0].mxu0
        %v2259 = vadd.f32 %v2180, %v2258
        %v2260 = vpop.f32.mrb[0].mxu0
        %2261 = vdwg.mxu0
        %v2262 = vadd.f32 %v2029, %v2249
        %v2263 = vadd.f32 %v2030, %v2254
        %v2264 = vadd.f32 %v2031, %v2259
        %v2265 = vld [vmem:[%s15] sm:$0x1]
        %v2266 = vld [vmem:[%s16] sm:$0x1]
        %v2267 = vsel %vm781, %v2262, 0.0
        %2268 = vadd.xlane.f32.xlu0 %v2267
        %v2269 = vpop.xlane.xlu0 %2268
        %v2270 = vsel %vm781, %v2263, 0.0
        %2271 = vadd.xlane.f32.xlu0 %v2270
        %v2272 = vpop.xlane.xlu0 %2271
        %v2273 = vsel %vm1979, %v2264, 0.0
        %2274 = vadd.xlane.f32.xlu0 %v2273
        %v2275 = vpop.xlane.xlu0 %2274
        %v2276 = vmul.f32 %v2269, %v1983
        %v2277 = vmul.f32 %v2272, %v1983
        %v2278 = vmul.f32 %v2275, %v1983
        %v2279 = vsub.f32 %v2262, %v2276
        %v2280 = vsub.f32 %v2263, %v2277
        %v2281 = vsub.f32 %v2264, %v2278
        %v2282 = vmul.f32 %v2279, %v2279
        %v2283 = vmul.f32 %v2280, %v2280
        %v2284 = vmul.f32 %v2281, %v2281
        %v2285 = vsel %vm781, %v2282, 0.0
        %2286 = vadd.xlane.f32.xlu0 %v2285
        %v2287 = vpop.xlane.xlu0 %2286
        %v2288 = vsel %vm781, %v2283, 0.0
        %2289 = vadd.xlane.f32.xlu0 %v2288
        %v2290 = vpop.xlane.xlu0 %2289
        %v2291 = vsel %vm1979, %v2284, 0.0
        %2292 = vadd.xlane.f32.xlu0 %v2291
        %v2293 = vpop.xlane.xlu0 %2292
        %v2294 = vmul.f32 %v2287, %v1983
        %v2295 = vmul.f32 %v2290, %v1983
        %v2296 = vmul.f32 %v2293, %v1983
        %v2297 = vadd.f32 %v2294, 1e-05
        %v2298 = vadd.f32 %v2295, 1e-05
        %v2299 = vadd.f32 %v2296, 1e-05
        %v2300 = vrsqrt.pop %v2297
        %v2301 = vrsqrt.pop %v2298
        %v2302 = vrsqrt.pop %v2299
        %v2303 = vmul.f32 %v2279, %v2300
        %v2304 = vmul.f32 %v2280, %v2301
        %v2305 = vmul.f32 %v2281, %v2302
        %v2307 = vlaneseq
        %v2308 = vshrl.u32 %v2307, 7
        %v2309 = vsub.s32 0, %v2308
        %v2310 = vrot.slane %v2265, %v2309
        %v2312 = vmul.f32 %v2303, %v2310
        %v2313 = vmul.f32 %v2304, %v2310
        %v2314 = vmul.f32 %v2305, %v2310
        %v2316 = vlaneseq
        %v2317 = vshrl.u32 %v2316, 7
        %v2318 = vsub.s32 0, %v2317
        %v2319 = vrot.slane %v2266, %v2318
        %v2321 = vadd.f32 %v2312, %v2319
        %v2322 = vadd.f32 %v2313, %v2319
        %v2323 = vadd.f32 %v2314, %v2319
        %s2324 = scalar_lea.vmem %s5, 32
        %v2325 = vld [vmem:[%s2324] sm:$0xff]
        %v2326 = vld [vmem:[%s2324 + $0x8] sm:$0xff]
        %v2327 = vld [vmem:[%s2324 + $0x10] sm:$0xff]
        %v2328 = vld [vmem:[%s2324 + $0x18] sm:$0xff]
        %s2329 = scalar_lea.vmem %s6, 1
        %v2330 = vld [vmem:[%s2329] sm:$0x1]
        %v2332 = vlaneseq
        %v2333 = vshrl.u32 %v2332, 7
        %v2334 = vsub.s32 0, %v2333
        %v2335 = vrot.slane %v2330, %v2334
        %v2338 = vsel %vm781, %v2321, 0
        %v2341 = vsel %vm781, %v2322, 0
        %v2344 = vsel %vm781, %v2323, 0
        %2346 = vmatprep.subr.mxu0 0.0
        %2347 = vmatpush1.msra.mxu0 %v2325
        %2348 = vmatprep.subr.mxu0 0.0
        %2349 = vmatpush1.msra.mxu0 %v2326
        %2350 = vmatprep.subr.mxu0 0.0
        %2351 = vmatpush1.msra.mxu0 %v2327
        %2352 = vmatprep.subr.mxu0 0.0
        %2353 = vmatpush1.msra.mxu0 %v2328
        %2354 = vmatprep.subr.mxu0 0.0
        %2355 = vmatpush1.msra.mxu0 0.0
        %2356 = vmatprep.subr.mxu0 0.0
        %2357 = vmatpush1.msra.mxu0 0.0
        %2358 = vmatprep.subr.mxu0 0.0
        %2359 = vmatpush1.msra.mxu0 0.0
        %2360 = vmatprep.subr.mxu0 0.0
        %2361 = vmatpush1.msra.mxu0 0.0
        %2362 = vmatprep.subr.mxu0 0.0
        %2363 = vmatpush1.msra.mxu0 0.0
        %2364 = vmatprep.subr.mxu0 0.0
        %2365 = vmatpush1.msra.mxu0 0.0
        %2366 = vmatprep.subr.mxu0 0.0
        %2367 = vmatpush1.msra.mxu0 0.0
        %2368 = vmatprep.subr.mxu0 0.0
        %2369 = vmatpush1.msra.mxu0 0.0
        %2370 = vmatprep.subr.mxu0 0.0
        %2371 = vmatpush1.msra.mxu0 0.0
        %2372 = vmatprep.subr.mxu0 0.0
        %2373 = vmatpush1.msra.mxu0 0.0
        %2374 = vmatprep.subr.mxu0 0.0
        %2375 = vmatpush1.msra.mxu0 0.0
        %2376 = vmatprep.subr.mxu0 0.0
        %2377 = vmatpush1.msra.mxu0 0.0
        %2378 = vmatprep.subr.mxu0 0.0
        %2379 = vmatpush1.msra.mxu0 0.0
        %2380 = vmatprep.subr.mxu0 0.0
        %2381 = vmatpush1.msra.mxu0 0.0
        %2382 = vmatprep.subr.mxu0 0.0
        %2383 = vmatpush1.msra.mxu0 0.0
        %2384 = vmatprep.subr.mxu0 0.0
        %2385 = vmatpush1.msra.mxu0 0.0
        %2386 = vmatprep.subr.mxu0 0.0
        %2387 = vmatpush1.msra.mxu0 0.0
        %2388 = vmatprep.subr.mxu0 0.0
        %2389 = vmatpush1.msra.mxu0 0.0
        %2390 = vmatprep.subr.mxu0 0.0
        %2391 = vmatpush1.msra.mxu0 0.0
        %2392 = vmatprep.subr.mxu0 0.0
        %2393 = vmatpush1.msra.mxu0 0.0
        %2394 = vmatprep.subr.mxu0 0.0
        %2395 = vmatpush1.msra.mxu0 0.0
        %2396 = vmatprep.subr.mxu0 0.0
        %2397 = vmatpush1.msra.mxu0 0.0
        %2398 = vmatprep.subr.mxu0 0.0
        %2399 = vmatpush1.msra.mxu0 0.0
        %2400 = vmatprep.subr.mxu0 0.0
        %2401 = vmatpush1.msra.mxu0 0.0
        %2402 = vmatprep.subr.mxu0 0.0
        %2403 = vmatpush1.msra.mxu0 0.0
        %2404 = vmatprep.subr.mxu0 0.0
        %2405 = vmatpush1.msra.mxu0 0.0
        %2406 = vmatprep.subr.mxu0 0.0
        %2407 = vmatpush1.msra.mxu0 0.0
        %2408 = vmatprep.subr.mxu0 0.0
        %2409 = vmatpush1.msra.mxu0 0.0
        %2410 = vmatprep.mubr.f32.mxu0 0.0
        %2411 = vmatmul.mubr.f32.gmra.mrb[0].mxu0 %v2338
        %v2412 = vpop.f32.mrb[0].mxu0
        %v2413 = vadd.f32 %v2335, %v2412
        %v2414 = vpop.f32.mrb[0].mxu0
        %2415 = vmatprep.mubr.f32.mxu0 0.0
        %2416 = vmatmul.mubr.f32.gmra.mrb[0].mxu0 %v2341
        %v2417 = vpop.f32.mrb[0].mxu0
        %v2418 = vadd.f32 %v2335, %v2417
        %v2419 = vpop.f32.mrb[0].mxu0
        %2420 = vmatprep.mubr.f32.mxu0 0.0
        %2421 = vmatmul.mubr.f32.gmra.mrb[0].mxu0 %v2344
        %v2422 = vpop.f32.mrb[0].mxu0
        %v2423 = vadd.f32 %v2335, %v2422
        %v2424 = vpop.f32.mrb[0].mxu0
        %2425 = vdwg.mxu0
        %v2426 = vmul.f32 %v2413, 0.35355338
        %v2427 = vmul.f32 %v2418, 0.35355338
        %v2428 = vmul.f32 %v2423, 0.35355338
        %2432 = vrot.lane.b32.xlu0 %v2413, 96
        %v2433 = vpop.permute.xlu0 %2432
        %2434 = vrot.lane.b32.xlu0 %v2418, 96
        %v2435 = vpop.permute.xlu0 %2434
        %2436 = vrot.lane.b32.xlu0 %v2423, 96
        %v2437 = vpop.permute.xlu0 %2436
        %v2439 = vsel %vm883, %v2426, 0
        %v2442 = vsel %vm883, %v2427, 0
        %v2445 = vsel %vm883, %v2428, 0
        %v2447 = vsel %vm883, %v2433, 0
        %v2449 = vsel %vm883, %v2435, 0
        %v2451 = vsel %vm883, %v2437, 0
        %2453 = vmatprep.subr.mxu0 0.0
        %2454 = vmatpush1.xpose.msra.mxu0 %v2447
        %2455 = vmatprep.subr.mxu0 0.0
        %2456 = vmatpush1.xpose.msra.mxu0 %v2449
        %2457 = vmatprep.subr.mxu0 0.0
        %2458 = vmatpush1.xpose.msra.mxu0 %v2451
        %2459 = vmatprep.subr.mxu0 0.0
        %2460 = vmatpush1.xpose.msra.mxu0 0.0
        %2461 = vmatprep.subr.mxu0 0.0
        %2462 = vmatpush1.xpose.msra.mxu0 0.0
        %2463 = vmatprep.subr.mxu0 0.0
        %2464 = vmatpush1.xpose.msra.mxu0 0.0
        %2465 = vmatprep.subr.mxu0 0.0
        %2466 = vmatpush1.xpose.msra.mxu0 0.0
        %2467 = vmatprep.subr.mxu0 0.0
        %2468 = vmatpush1.xpose.msra.mxu0 0.0
        %2469 = vmatprep.subr.mxu0 0.0
        %2470 = vmatpush1.xpose.msra.mxu0 0.0
        %2471 = vmatprep.subr.mxu0 0.0
        %2472 = vmatpush1.xpose.msra.mxu0 0.0
        %2473 = vmatprep.subr.mxu0 0.0
        %2474 = vmatpush1.xpose.msra.mxu0 0.0
        %2475 = vmatprep.subr.mxu0 0.0
        %2476 = vmatpush1.xpose.msra.mxu0 0.0
        %2477 = vmatprep.subr.mxu0 0.0
        %2478 = vmatpush1.xpose.msra.mxu0 0.0
        %2479 = vmatprep.subr.mxu0 0.0
        %2480 = vmatpush1.xpose.msra.mxu0 0.0
        %2481 = vmatprep.subr.mxu0 0.0
        %2482 = vmatpush1.xpose.msra.mxu0 0.0
        %2483 = vmatprep.subr.mxu0 0.0
        %2484 = vmatpush1.xpose.msra.mxu0 0.0
        %2485 = vmatprep.subr.mxu0 0.0
        %2486 = vmatpush1.xpose.msra.mxu0 0.0
        %2487 = vmatprep.subr.mxu0 0.0
        %2488 = vmatpush1.xpose.msra.mxu0 0.0
        %2489 = vmatprep.subr.mxu0 0.0
        %2490 = vmatpush1.xpose.msra.mxu0 0.0
        %2491 = vmatprep.subr.mxu0 0.0
        %2492 = vmatpush1.xpose.msra.mxu0 0.0
        %2493 = vmatprep.subr.mxu0 0.0
        %2494 = vmatpush1.xpose.msra.mxu0 0.0
        %2495 = vmatprep.subr.mxu0 0.0
        %2496 = vmatpush1.xpose.msra.mxu0 0.0
        %2497 = vmatprep.subr.mxu0 0.0
        %2498 = vmatpush1.xpose.msra.mxu0 0.0
        %2499 = vmatprep.subr.mxu0 0.0
        %2500 = vmatpush1.xpose.msra.mxu0 0.0
        %2501 = vmatprep.subr.mxu0 0.0
        %2502 = vmatpush1.xpose.msra.mxu0 0.0
        %2503 = vmatprep.subr.mxu0 0.0
        %2504 = vmatpush1.xpose.msra.mxu0 0.0
        %2505 = vmatprep.subr.mxu0 0.0
        %2506 = vmatpush1.xpose.msra.mxu0 0.0
        %2507 = vmatprep.subr.mxu0 0.0
        %2508 = vmatpush1.xpose.msra.mxu0 0.0
        %2509 = vmatprep.subr.mxu0 0.0
        %2510 = vmatpush1.xpose.msra.mxu0 0.0
        %2511 = vmatprep.subr.mxu0 0.0
        %2512 = vmatpush1.xpose.msra.mxu0 0.0
        %2513 = vmatprep.subr.mxu0 0.0
        %2514 = vmatpush1.xpose.msra.mxu0 0.0
        %2515 = vmatprep.subr.mxu0 0.0
        %2516 = vmatpush1.xpose.msra.mxu0 0.0
        %2517 = vmatprep.mubr.f32.mxu0 0.0
        %2518 = vmatmul.mubr.f32.gmra.mrb[0].mxu0 %v2439
        %v2519 = vpop.f32.mrb[0].mxu0
        %v2520 = vadd.f32 0.0, %v2519
        %v2521 = vpop.f32.mrb[0].mxu0
        %2522 = vmatprep.mubr.f32.mxu0 0.0
        %2523 = vmatmul.mubr.f32.gmra.mrb[0].mxu0 %v2442
        %v2524 = vpop.f32.mrb[0].mxu0
        %v2525 = vadd.f32 0.0, %v2524
        %v2526 = vpop.f32.mrb[0].mxu0
        %2527 = vmatprep.mubr.f32.mxu0 0.0
        %2528 = vmatmul.mubr.f32.gmra.mrb[0].mxu0 %v2445
        %v2529 = vpop.f32.mrb[0].mxu0
        %v2530 = vadd.f32 0.0, %v2529
        %v2531 = vpop.f32.mrb[0].mxu0
        %2532 = vdwg.mxu0
        %v2533 = vsel %vm979, %v2520, -inf
        %2534 = vmax.xlane.f32.xlu0 %v2533
        %v2535 = vpop.xlane.xlu0 %2534
        %v2536 = vsel %vm979, %v2525, -inf
        %2537 = vmax.xlane.f32.xlu0 %v2536
        %v2538 = vpop.xlane.xlu0 %2537
        %v2539 = vsel %vm986, %v2530, -inf
        %2540 = vmax.xlane.f32.xlu0 %v2539
        %v2541 = vpop.xlane.xlu0 %2540
        %v2542 = vsub.f32 %v2520, %v2535
        %v2543 = vsub.f32 %v2525, %v2538
        %v2544 = vsub.f32 %v2530, %v2541
        %v2545 = vmul.f32 %v2542, 1.442695
        %v2546 = vpow.pop %v2545
        %v2547 = vmul.f32 %v2543, 1.442695
        %v2548 = vpow.pop %v2547
        %v2549 = vmul.f32 %v2544, 1.442695
        %v2550 = vpow.pop %v2549
        %v2551 = vsel %vm979, %v2546, 0.0
        %2552 = vadd.xlane.f32.xlu0 %v2551
        %v2553 = vpop.xlane.xlu0 %2552
        %v2554 = vsel %vm979, %v2548, 0.0
        %2555 = vadd.xlane.f32.xlu0 %v2554
        %v2556 = vpop.xlane.xlu0 %2555
        %v2557 = vsel %vm986, %v2550, 0.0
        %2558 = vadd.xlane.f32.xlu0 %v2557
        %v2559 = vpop.xlane.xlu0 %2558
        %v2560 = vrcp.pop %v2553
        %v2561 = vrcp.pop %v2556
        %v2562 = vrcp.pop %v2559
        %v2563 = vmul.f32 %v2546, %v2560
        %v2564 = vmul.f32 %v2548, %v2561
        %v2565 = vmul.f32 %v2550, %v2562
        %2566 = vrot.lane.b32.xlu0 %v2413, 64
        %v2567 = vpop.permute.xlu0 %2566
        %2568 = vrot.lane.b32.xlu0 %v2418, 64
        %v2569 = vpop.permute.xlu0 %2568
        %2570 = vrot.lane.b32.xlu0 %v2423, 64
        %v2571 = vpop.permute.xlu0 %2570
        %v2575 = vsel %vm979, %v2563, 0
        %v2578 = vsel %vm979, %v2564, 0
        %v2581 = vsel %vm979, %v2565, 0
        %v2583 = vsel %vm756, %v2571, 0
        %2585 = vmatprep.subr.mxu0 0.0
        %2586 = vmatpush1.msra.mxu0 %v2567
        %2587 = vmatprep.subr.mxu0 0.0
        %2588 = vmatpush1.msra.mxu0 %v2569
        %2589 = vmatprep.subr.mxu0 0.0
        %2590 = vmatpush1.msra.mxu0 %v2583
        %2591 = vmatprep.subr.mxu0 0.0
        %2592 = vmatpush1.msra.mxu0 0.0
        %2593 = vmatprep.subr.mxu0 0.0
        %2594 = vmatpush1.msra.mxu0 0.0
        %2595 = vmatprep.subr.mxu0 0.0
        %2596 = vmatpush1.msra.mxu0 0.0
        %2597 = vmatprep.subr.mxu0 0.0
        %2598 = vmatpush1.msra.mxu0 0.0
        %2599 = vmatprep.subr.mxu0 0.0
        %2600 = vmatpush1.msra.mxu0 0.0
        %2601 = vmatprep.subr.mxu0 0.0
        %2602 = vmatpush1.msra.mxu0 0.0
        %2603 = vmatprep.subr.mxu0 0.0
        %2604 = vmatpush1.msra.mxu0 0.0
        %2605 = vmatprep.subr.mxu0 0.0
        %2606 = vmatpush1.msra.mxu0 0.0
        %2607 = vmatprep.subr.mxu0 0.0
        %2608 = vmatpush1.msra.mxu0 0.0
        %2609 = vmatprep.subr.mxu0 0.0
        %2610 = vmatpush1.msra.mxu0 0.0
        %2611 = vmatprep.subr.mxu0 0.0
        %2612 = vmatpush1.msra.mxu0 0.0
        %2613 = vmatprep.subr.mxu0 0.0
        %2614 = vmatpush1.msra.mxu0 0.0
        %2615 = vmatprep.subr.mxu0 0.0
        %2616 = vmatpush1.msra.mxu0 0.0
        %2617 = vmatprep.subr.mxu0 0.0
        %2618 = vmatpush1.msra.mxu0 0.0
        %2619 = vmatprep.subr.mxu0 0.0
        %2620 = vmatpush1.msra.mxu0 0.0
        %2621 = vmatprep.subr.mxu0 0.0
        %2622 = vmatpush1.msra.mxu0 0.0
        %2623 = vmatprep.subr.mxu0 0.0
        %2624 = vmatpush1.msra.mxu0 0.0
        %2625 = vmatprep.subr.mxu0 0.0
        %2626 = vmatpush1.msra.mxu0 0.0
        %2627 = vmatprep.subr.mxu0 0.0
        %2628 = vmatpush1.msra.mxu0 0.0
        %2629 = vmatprep.subr.mxu0 0.0
        %2630 = vmatpush1.msra.mxu0 0.0
        %2631 = vmatprep.subr.mxu0 0.0
        %2632 = vmatpush1.msra.mxu0 0.0
        %2633 = vmatprep.subr.mxu0 0.0
        %2634 = vmatpush1.msra.mxu0 0.0
        %2635 = vmatprep.subr.mxu0 0.0
        %2636 = vmatpush1.msra.mxu0 0.0
        %2637 = vmatprep.subr.mxu0 0.0
        %2638 = vmatpush1.msra.mxu0 0.0
        %2639 = vmatprep.subr.mxu0 0.0
        %2640 = vmatpush1.msra.mxu0 0.0
        %2641 = vmatprep.subr.mxu0 0.0
        %2642 = vmatpush1.msra.mxu0 0.0
        %2643 = vmatprep.subr.mxu0 0.0
        %2644 = vmatpush1.msra.mxu0 0.0
        %2645 = vmatprep.subr.mxu0 0.0
        %2646 = vmatpush1.msra.mxu0 0.0
        %2647 = vmatprep.subr.mxu0 0.0
        %2648 = vmatpush1.msra.mxu0 0.0
        %2649 = vmatprep.mubr.f32.mxu0 0.0
        %2650 = vmatmul.mubr.f32.gmra.mrb[0].mxu0 %v2575
        %v2651 = vpop.f32.mrb[0].mxu0
        %v2652 = vadd.f32 0.0, %v2651
        %v2653 = vpop.f32.mrb[0].mxu0
        %2654 = vmatprep.mubr.f32.mxu0 0.0
        %2655 = vmatmul.mubr.f32.gmra.mrb[0].mxu0 %v2578
        %v2656 = vpop.f32.mrb[0].mxu0
        %v2657 = vadd.f32 0.0, %v2656
        %v2658 = vpop.f32.mrb[0].mxu0
        %2659 = vmatprep.mubr.f32.mxu0 0.0
        %2660 = vmatmul.mubr.f32.gmra.mrb[0].mxu0 %v2581
        %v2661 = vpop.f32.mrb[0].mxu0
        %v2662 = vadd.f32 0.0, %v2661
        %v2663 = vpop.f32.mrb[0].mxu0
        %2664 = vdwg.mxu0
        %2665 = vrot.lane.b32.xlu0 %v2426, 120
        %v2666 = vpop.permute.xlu0 %2665
        %2667 = vrot.lane.b32.xlu0 %v2427, 120
        %v2668 = vpop.permute.xlu0 %2667
        %2669 = vrot.lane.b32.xlu0 %v2428, 120
        %v2670 = vpop.permute.xlu0 %2669
        %2671 = vrot.lane.b32.xlu0 %v2413, 88
        %v2672 = vpop.permute.xlu0 %2671
        %2673 = vrot.lane.b32.xlu0 %v2418, 88
        %v2674 = vpop.permute.xlu0 %2673
        %2675 = vrot.lane.b32.xlu0 %v2423, 88
        %v2676 = vpop.permute.xlu0 %2675
        %v2677 = vsel %vm883, %v2666, 0
        %v2679 = vsel %vm883, %v2668, 0
        %v2681 = vsel %vm883, %v2670, 0
        %v2683 = vsel %vm883, %v2672, 0
        %v2685 = vsel %vm883, %v2674, 0
        %v2687 = vsel %vm883, %v2676, 0
        %2689 = vmatprep.subr.mxu0 0.0
        %2690 = vmatpush1.xpose.msra.mxu0 %v2683
        %2691 = vmatprep.subr.mxu0 0.0
        %2692 = vmatpush1.xpose.msra.mxu0 %v2685
        %2693 = vmatprep.subr.mxu0 0.0
        %2694 = vmatpush1.xpose.msra.mxu0 %v2687
        %2695 = vmatprep.subr.mxu0 0.0
        %2696 = vmatpush1.xpose.msra.mxu0 0.0
        %2697 = vmatprep.subr.mxu0 0.0
        %2698 = vmatpush1.xpose.msra.mxu0 0.0
        %2699 = vmatprep.subr.mxu0 0.0
        %2700 = vmatpush1.xpose.msra.mxu0 0.0
        %2701 = vmatprep.subr.mxu0 0.0
        %2702 = vmatpush1.xpose.msra.mxu0 0.0
        %2703 = vmatprep.subr.mxu0 0.0
        %2704 = vmatpush1.xpose.msra.mxu0 0.0
        %2705 = vmatprep.subr.mxu0 0.0
        %2706 = vmatpush1.xpose.msra.mxu0 0.0
        %2707 = vmatprep.subr.mxu0 0.0
        %2708 = vmatpush1.xpose.msra.mxu0 0.0
        %2709 = vmatprep.subr.mxu0 0.0
        %2710 = vmatpush1.xpose.msra.mxu0 0.0
        %2711 = vmatprep.subr.mxu0 0.0
        %2712 = vmatpush1.xpose.msra.mxu0 0.0
        %2713 = vmatprep.subr.mxu0 0.0
        %2714 = vmatpush1.xpose.msra.mxu0 0.0
        %2715 = vmatprep.subr.mxu0 0.0
        %2716 = vmatpush1.xpose.msra.mxu0 0.0
        %2717 = vmatprep.subr.mxu0 0.0
        %2718 = vmatpush1.xpose.msra.mxu0 0.0
        %2719 = vmatprep.subr.mxu0 0.0
        %2720 = vmatpush1.xpose.msra.mxu0 0.0
        %2721 = vmatprep.subr.mxu0 0.0
        %2722 = vmatpush1.xpose.msra.mxu0 0.0
        %2723 = vmatprep.subr.mxu0 0.0
        %2724 = vmatpush1.xpose.msra.mxu0 0.0
        %2725 = vmatprep.subr.mxu0 0.0
        %2726 = vmatpush1.xpose.msra.mxu0 0.0
        %2727 = vmatprep.subr.mxu0 0.0
        %2728 = vmatpush1.xpose.msra.mxu0 0.0
        %2729 = vmatprep.subr.mxu0 0.0
        %2730 = vmatpush1.xpose.msra.mxu0 0.0
        %2731 = vmatprep.subr.mxu0 0.0
        %2732 = vmatpush1.xpose.msra.mxu0 0.0
        %2733 = vmatprep.subr.mxu0 0.0
        %2734 = vmatpush1.xpose.msra.mxu0 0.0
        %2735 = vmatprep.subr.mxu0 0.0
        %2736 = vmatpush1.xpose.msra.mxu0 0.0
        %2737 = vmatprep.subr.mxu0 0.0
        %2738 = vmatpush1.xpose.msra.mxu0 0.0
        %2739 = vmatprep.subr.mxu0 0.0
        %2740 = vmatpush1.xpose.msra.mxu0 0.0
        %2741 = vmatprep.subr.mxu0 0.0
        %2742 = vmatpush1.xpose.msra.mxu0 0.0
        %2743 = vmatprep.subr.mxu0 0.0
        %2744 = vmatpush1.xpose.msra.mxu0 0.0
        %2745 = vmatprep.subr.mxu0 0.0
        %2746 = vmatpush1.xpose.msra.mxu0 0.0
        %2747 = vmatprep.subr.mxu0 0.0
        %2748 = vmatpush1.xpose.msra.mxu0 0.0
        %2749 = vmatprep.subr.mxu0 0.0
        %2750 = vmatpush1.xpose.msra.mxu0 0.0
        %2751 = vmatprep.subr.mxu0 0.0
        %2752 = vmatpush1.xpose.msra.mxu0 0.0
        %2753 = vmatprep.mubr.f32.mxu0 0.0
        %2754 = vmatmul.mubr.f32.gmra.mrb[0].mxu0 %v2677
        %v2755 = vpop.f32.mrb[0].mxu0
        %v2756 = vadd.f32 0.0, %v2755
        %v2757 = vpop.f32.mrb[0].mxu0
        %2758 = vmatprep.mubr.f32.mxu0 0.0
        %2759 = vmatmul.mubr.f32.gmra.mrb[0].mxu0 %v2679
        %v2760 = vpop.f32.mrb[0].mxu0
        %v2761 = vadd.f32 0.0, %v2760
        %v2762 = vpop.f32.mrb[0].mxu0
        %2763 = vmatprep.mubr.f32.mxu0 0.0
        %2764 = vmatmul.mubr.f32.gmra.mrb[0].mxu0 %v2681
        %v2765 = vpop.f32.mrb[0].mxu0
        %v2766 = vadd.f32 0.0, %v2765
        %v2767 = vpop.f32.mrb[0].mxu0
        %2768 = vdwg.mxu0
        %v2769 = vsel %vm979, %v2756, -inf
        %2770 = vmax.xlane.f32.xlu0 %v2769
        %v2771 = vpop.xlane.xlu0 %2770
        %v2772 = vsel %vm979, %v2761, -inf
        %2773 = vmax.xlane.f32.xlu0 %v2772
        %v2774 = vpop.xlane.xlu0 %2773
        %v2775 = vsel %vm986, %v2766, -inf
        %2776 = vmax.xlane.f32.xlu0 %v2775
        %v2777 = vpop.xlane.xlu0 %2776
        %v2778 = vsub.f32 %v2756, %v2771
        %v2779 = vsub.f32 %v2761, %v2774
        %v2780 = vsub.f32 %v2766, %v2777
        %v2781 = vmul.f32 %v2778, 1.442695
        %v2782 = vpow.pop %v2781
        %v2783 = vmul.f32 %v2779, 1.442695
        %v2784 = vpow.pop %v2783
        %v2785 = vmul.f32 %v2780, 1.442695
        %v2786 = vpow.pop %v2785
        %v2787 = vsel %vm979, %v2782, 0.0
        %2788 = vadd.xlane.f32.xlu0 %v2787
        %v2789 = vpop.xlane.xlu0 %2788
        %v2790 = vsel %vm979, %v2784, 0.0
        %2791 = vadd.xlane.f32.xlu0 %v2790
        %v2792 = vpop.xlane.xlu0 %2791
        %v2793 = vsel %vm986, %v2786, 0.0
        %2794 = vadd.xlane.f32.xlu0 %v2793
        %v2795 = vpop.xlane.xlu0 %2794
        %v2796 = vrcp.pop %v2789
        %v2797 = vrcp.pop %v2792
        %v2798 = vrcp.pop %v2795
        %v2799 = vmul.f32 %v2782, %v2796
        %v2800 = vmul.f32 %v2784, %v2797
        %v2801 = vmul.f32 %v2786, %v2798
        %2802 = vrot.lane.b32.xlu0 %v2413, 56
        %v2803 = vpop.permute.xlu0 %2802
        %2804 = vrot.lane.b32.xlu0 %v2418, 56
        %v2805 = vpop.permute.xlu0 %2804
        %2806 = vrot.lane.b32.xlu0 %v2423, 56
        %v2807 = vpop.permute.xlu0 %2806
        %v2811 = vsel %vm979, %v2799, 0
        %v2814 = vsel %vm979, %v2800, 0
        %v2817 = vsel %vm979, %v2801, 0
        %v2819 = vsel %vm756, %v2807, 0
        %2821 = vmatprep.subr.mxu0 0.0
        %2822 = vmatpush1.msra.mxu0 %v2803
        %2823 = vmatprep.subr.mxu0 0.0
        %2824 = vmatpush1.msra.mxu0 %v2805
        %2825 = vmatprep.subr.mxu0 0.0
        %2826 = vmatpush1.msra.mxu0 %v2819
        %2827 = vmatprep.subr.mxu0 0.0
        %2828 = vmatpush1.msra.mxu0 0.0
        %2829 = vmatprep.subr.mxu0 0.0
        %2830 = vmatpush1.msra.mxu0 0.0
        %2831 = vmatprep.subr.mxu0 0.0
        %2832 = vmatpush1.msra.mxu0 0.0
        %2833 = vmatprep.subr.mxu0 0.0
        %2834 = vmatpush1.msra.mxu0 0.0
        %2835 = vmatprep.subr.mxu0 0.0
        %2836 = vmatpush1.msra.mxu0 0.0
        %2837 = vmatprep.subr.mxu0 0.0
        %2838 = vmatpush1.msra.mxu0 0.0
        %2839 = vmatprep.subr.mxu0 0.0
        %2840 = vmatpush1.msra.mxu0 0.0
        %2841 = vmatprep.subr.mxu0 0.0
        %2842 = vmatpush1.msra.mxu0 0.0
        %2843 = vmatprep.subr.mxu0 0.0
        %2844 = vmatpush1.msra.mxu0 0.0
        %2845 = vmatprep.subr.mxu0 0.0
        %2846 = vmatpush1.msra.mxu0 0.0
        %2847 = vmatprep.subr.mxu0 0.0
        %2848 = vmatpush1.msra.mxu0 0.0
        %2849 = vmatprep.subr.mxu0 0.0
        %2850 = vmatpush1.msra.mxu0 0.0
        %2851 = vmatprep.subr.mxu0 0.0
        %2852 = vmatpush1.msra.mxu0 0.0
        %2853 = vmatprep.subr.mxu0 0.0
        %2854 = vmatpush1.msra.mxu0 0.0
        %2855 = vmatprep.subr.mxu0 0.0
        %2856 = vmatpush1.msra.mxu0 0.0
        %2857 = vmatprep.subr.mxu0 0.0
        %2858 = vmatpush1.msra.mxu0 0.0
        %2859 = vmatprep.subr.mxu0 0.0
        %2860 = vmatpush1.msra.mxu0 0.0
        %2861 = vmatprep.subr.mxu0 0.0
        %2862 = vmatpush1.msra.mxu0 0.0
        %2863 = vmatprep.subr.mxu0 0.0
        %2864 = vmatpush1.msra.mxu0 0.0
        %2865 = vmatprep.subr.mxu0 0.0
        %2866 = vmatpush1.msra.mxu0 0.0
        %2867 = vmatprep.subr.mxu0 0.0
        %2868 = vmatpush1.msra.mxu0 0.0
        %2869 = vmatprep.subr.mxu0 0.0
        %2870 = vmatpush1.msra.mxu0 0.0
        %2871 = vmatprep.subr.mxu0 0.0
        %2872 = vmatpush1.msra.mxu0 0.0
        %2873 = vmatprep.subr.mxu0 0.0
        %2874 = vmatpush1.msra.mxu0 0.0
        %2875 = vmatprep.subr.mxu0 0.0
        %2876 = vmatpush1.msra.mxu0 0.0
        %2877 = vmatprep.subr.mxu0 0.0
        %2878 = vmatpush1.msra.mxu0 0.0
        %2879 = vmatprep.subr.mxu0 0.0
        %2880 = vmatpush1.msra.mxu0 0.0
        %2881 = vmatprep.subr.mxu0 0.0
        %2882 = vmatpush1.msra.mxu0 0.0
        %2883 = vmatprep.subr.mxu0 0.0
        %2884 = vmatpush1.msra.mxu0 0.0
        %2885 = vmatprep.mubr.f32.mxu0 0.0
        %2886 = vmatmul.mubr.f32.gmra.mrb[0].mxu0 %v2811
        %v2887 = vpop.f32.mrb[0].mxu0
        %v2888 = vadd.f32 0.0, %v2887
        %v2889 = vpop.f32.mrb[0].mxu0
        %2890 = vmatprep.mubr.f32.mxu0 0.0
        %2891 = vmatmul.mubr.f32.gmra.mrb[0].mxu0 %v2814
        %v2892 = vpop.f32.mrb[0].mxu0
        %v2893 = vadd.f32 0.0, %v2892
        %v2894 = vpop.f32.mrb[0].mxu0
        %2895 = vmatprep.mubr.f32.mxu0 0.0
        %2896 = vmatmul.mubr.f32.gmra.mrb[0].mxu0 %v2817
        %v2897 = vpop.f32.mrb[0].mxu0
        %v2898 = vadd.f32 0.0, %v2897
        %v2899 = vpop.f32.mrb[0].mxu0
        %2900 = vdwg.mxu0
        %2901 = vrot.lane.b32.xlu0 %v2426, 112
        %v2902 = vpop.permute.xlu0 %2901
        %2903 = vrot.lane.b32.xlu0 %v2427, 112
        %v2904 = vpop.permute.xlu0 %2903
        %2905 = vrot.lane.b32.xlu0 %v2428, 112
        %v2906 = vpop.permute.xlu0 %2905
        %2907 = vrot.lane.b32.xlu0 %v2413, 80
        %v2908 = vpop.permute.xlu0 %2907
        %2909 = vrot.lane.b32.xlu0 %v2418, 80
        %v2910 = vpop.permute.xlu0 %2909
        %2911 = vrot.lane.b32.xlu0 %v2423, 80
        %v2912 = vpop.permute.xlu0 %2911
        %v2913 = vsel %vm883, %v2902, 0
        %v2915 = vsel %vm883, %v2904, 0
        %v2917 = vsel %vm883, %v2906, 0
        %v2919 = vsel %vm883, %v2908, 0
        %v2921 = vsel %vm883, %v2910, 0
        %v2923 = vsel %vm883, %v2912, 0
        %2925 = vmatprep.subr.mxu0 0.0
        %2926 = vmatpush1.xpose.msra.mxu0 %v2919
        %2927 = vmatprep.subr.mxu0 0.0
        %2928 = vmatpush1.xpose.msra.mxu0 %v2921
        %2929 = vmatprep.subr.mxu0 0.0
        %2930 = vmatpush1.xpose.msra.mxu0 %v2923
        %2931 = vmatprep.subr.mxu0 0.0
        %2932 = vmatpush1.xpose.msra.mxu0 0.0
        %2933 = vmatprep.subr.mxu0 0.0
        %2934 = vmatpush1.xpose.msra.mxu0 0.0
        %2935 = vmatprep.subr.mxu0 0.0
        %2936 = vmatpush1.xpose.msra.mxu0 0.0
        %2937 = vmatprep.subr.mxu0 0.0
        %2938 = vmatpush1.xpose.msra.mxu0 0.0
        %2939 = vmatprep.subr.mxu0 0.0
        %2940 = vmatpush1.xpose.msra.mxu0 0.0
        %2941 = vmatprep.subr.mxu0 0.0
        %2942 = vmatpush1.xpose.msra.mxu0 0.0
        %2943 = vmatprep.subr.mxu0 0.0
        %2944 = vmatpush1.xpose.msra.mxu0 0.0
        %2945 = vmatprep.subr.mxu0 0.0
        %2946 = vmatpush1.xpose.msra.mxu0 0.0
        %2947 = vmatprep.subr.mxu0 0.0
        %2948 = vmatpush1.xpose.msra.mxu0 0.0
        %2949 = vmatprep.subr.mxu0 0.0
        %2950 = vmatpush1.xpose.msra.mxu0 0.0
        %2951 = vmatprep.subr.mxu0 0.0
        %2952 = vmatpush1.xpose.msra.mxu0 0.0
        %2953 = vmatprep.subr.mxu0 0.0
        %2954 = vmatpush1.xpose.msra.mxu0 0.0
        %2955 = vmatprep.subr.mxu0 0.0
        %2956 = vmatpush1.xpose.msra.mxu0 0.0
        %2957 = vmatprep.subr.mxu0 0.0
        %2958 = vmatpush1.xpose.msra.mxu0 0.0
        %2959 = vmatprep.subr.mxu0 0.0
        %2960 = vmatpush1.xpose.msra.mxu0 0.0
        %2961 = vmatprep.subr.mxu0 0.0
        %2962 = vmatpush1.xpose.msra.mxu0 0.0
        %2963 = vmatprep.subr.mxu0 0.0
        %2964 = vmatpush1.xpose.msra.mxu0 0.0
        %2965 = vmatprep.subr.mxu0 0.0
        %2966 = vmatpush1.xpose.msra.mxu0 0.0
        %2967 = vmatprep.subr.mxu0 0.0
        %2968 = vmatpush1.xpose.msra.mxu0 0.0
        %2969 = vmatprep.subr.mxu0 0.0
        %2970 = vmatpush1.xpose.msra.mxu0 0.0
        %2971 = vmatprep.subr.mxu0 0.0
        %2972 = vmatpush1.xpose.msra.mxu0 0.0
        %2973 = vmatprep.subr.mxu0 0.0
        %2974 = vmatpush1.xpose.msra.mxu0 0.0
        %2975 = vmatprep.subr.mxu0 0.0
        %2976 = vmatpush1.xpose.msra.mxu0 0.0
        %2977 = vmatprep.subr.mxu0 0.0
        %2978 = vmatpush1.xpose.msra.mxu0 0.0
        %2979 = vmatprep.subr.mxu0 0.0
        %2980 = vmatpush1.xpose.msra.mxu0 0.0
        %2981 = vmatprep.subr.mxu0 0.0
        %2982 = vmatpush1.xpose.msra.mxu0 0.0
        %2983 = vmatprep.subr.mxu0 0.0
        %2984 = vmatpush1.xpose.msra.mxu0 0.0
        %2985 = vmatprep.subr.mxu0 0.0
        %2986 = vmatpush1.xpose.msra.mxu0 0.0
        %2987 = vmatprep.subr.mxu0 0.0
        %2988 = vmatpush1.xpose.msra.mxu0 0.0
        %2989 = vmatprep.mubr.f32.mxu0 0.0
        %2990 = vmatmul.mubr.f32.gmra.mrb[0].mxu0 %v2913
        %v2991 = vpop.f32.mrb[0].mxu0
        %v2992 = vadd.f32 0.0, %v2991
        %v2993 = vpop.f32.mrb[0].mxu0
        %2994 = vmatprep.mubr.f32.mxu0 0.0
        %2995 = vmatmul.mubr.f32.gmra.mrb[0].mxu0 %v2915
        %v2996 = vpop.f32.mrb[0].mxu0
        %v2997 = vadd.f32 0.0, %v2996
        %v2998 = vpop.f32.mrb[0].mxu0
        %2999 = vmatprep.mubr.f32.mxu0 0.0
        %3000 = vmatmul.mubr.f32.gmra.mrb[0].mxu0 %v2917
        %v3001 = vpop.f32.mrb[0].mxu0
        %v3002 = vadd.f32 0.0, %v3001
        %v3003 = vpop.f32.mrb[0].mxu0
        %3004 = vdwg.mxu0
        %v3005 = vsel %vm979, %v2992, -inf
        %3006 = vmax.xlane.f32.xlu0 %v3005
        %v3007 = vpop.xlane.xlu0 %3006
        %v3008 = vsel %vm979, %v2997, -inf
        %3009 = vmax.xlane.f32.xlu0 %v3008
        %v3010 = vpop.xlane.xlu0 %3009
        %v3011 = vsel %vm986, %v3002, -inf
        %3012 = vmax.xlane.f32.xlu0 %v3011
        %v3013 = vpop.xlane.xlu0 %3012
        %v3014 = vsub.f32 %v2992, %v3007
        %v3015 = vsub.f32 %v2997, %v3010
        %v3016 = vsub.f32 %v3002, %v3013
        %v3017 = vmul.f32 %v3014, 1.442695
        %v3018 = vpow.pop %v3017
        %v3019 = vmul.f32 %v3015, 1.442695
        %v3020 = vpow.pop %v3019
        %v3021 = vmul.f32 %v3016, 1.442695
        %v3022 = vpow.pop %v3021
        %v3023 = vsel %vm979, %v3018, 0.0
        %3024 = vadd.xlane.f32.xlu0 %v3023
        %v3025 = vpop.xlane.xlu0 %3024
        %v3026 = vsel %vm979, %v3020, 0.0
        %3027 = vadd.xlane.f32.xlu0 %v3026
        %v3028 = vpop.xlane.xlu0 %3027
        %v3029 = vsel %vm986, %v3022, 0.0
        %3030 = vadd.xlane.f32.xlu0 %v3029
        %v3031 = vpop.xlane.xlu0 %3030
        %v3032 = vrcp.pop %v3025
        %v3033 = vrcp.pop %v3028
        %v3034 = vrcp.pop %v3031
        %v3035 = vmul.f32 %v3018, %v3032
        %v3036 = vmul.f32 %v3020, %v3033
        %v3037 = vmul.f32 %v3022, %v3034
        %3038 = vrot.lane.b32.xlu0 %v2413, 48
        %v3039 = vpop.permute.xlu0 %3038
        %3040 = vrot.lane.b32.xlu0 %v2418, 48
        %v3041 = vpop.permute.xlu0 %3040
        %3042 = vrot.lane.b32.xlu0 %v2423, 48
        %v3043 = vpop.permute.xlu0 %3042
        %v3047 = vsel %vm979, %v3035, 0
        %v3050 = vsel %vm979, %v3036, 0
        %v3053 = vsel %vm979, %v3037, 0
        %v3055 = vsel %vm756, %v3043, 0
        %3057 = vmatprep.subr.mxu0 0.0
        %3058 = vmatpush1.msra.mxu0 %v3039
        %3059 = vmatprep.subr.mxu0 0.0
        %3060 = vmatpush1.msra.mxu0 %v3041
        %3061 = vmatprep.subr.mxu0 0.0
        %3062 = vmatpush1.msra.mxu0 %v3055
        %3063 = vmatprep.subr.mxu0 0.0
        %3064 = vmatpush1.msra.mxu0 0.0
        %3065 = vmatprep.subr.mxu0 0.0
        %3066 = vmatpush1.msra.mxu0 0.0
        %3067 = vmatprep.subr.mxu0 0.0
        %3068 = vmatpush1.msra.mxu0 0.0
        %3069 = vmatprep.subr.mxu0 0.0
        %3070 = vmatpush1.msra.mxu0 0.0
        %3071 = vmatprep.subr.mxu0 0.0
        %3072 = vmatpush1.msra.mxu0 0.0
        %3073 = vmatprep.subr.mxu0 0.0
        %3074 = vmatpush1.msra.mxu0 0.0
        %3075 = vmatprep.subr.mxu0 0.0
        %3076 = vmatpush1.msra.mxu0 0.0
        %3077 = vmatprep.subr.mxu0 0.0
        %3078 = vmatpush1.msra.mxu0 0.0
        %3079 = vmatprep.subr.mxu0 0.0
        %3080 = vmatpush1.msra.mxu0 0.0
        %3081 = vmatprep.subr.mxu0 0.0
        %3082 = vmatpush1.msra.mxu0 0.0
        %3083 = vmatprep.subr.mxu0 0.0
        %3084 = vmatpush1.msra.mxu0 0.0
        %3085 = vmatprep.subr.mxu0 0.0
        %3086 = vmatpush1.msra.mxu0 0.0
        %3087 = vmatprep.subr.mxu0 0.0
        %3088 = vmatpush1.msra.mxu0 0.0
        %3089 = vmatprep.subr.mxu0 0.0
        %3090 = vmatpush1.msra.mxu0 0.0
        %3091 = vmatprep.subr.mxu0 0.0
        %3092 = vmatpush1.msra.mxu0 0.0
        %3093 = vmatprep.subr.mxu0 0.0
        %3094 = vmatpush1.msra.mxu0 0.0
        %3095 = vmatprep.subr.mxu0 0.0
        %3096 = vmatpush1.msra.mxu0 0.0
        %3097 = vmatprep.subr.mxu0 0.0
        %3098 = vmatpush1.msra.mxu0 0.0
        %3099 = vmatprep.subr.mxu0 0.0
        %3100 = vmatpush1.msra.mxu0 0.0
        %3101 = vmatprep.subr.mxu0 0.0
        %3102 = vmatpush1.msra.mxu0 0.0
        %3103 = vmatprep.subr.mxu0 0.0
        %3104 = vmatpush1.msra.mxu0 0.0
        %3105 = vmatprep.subr.mxu0 0.0
        %3106 = vmatpush1.msra.mxu0 0.0
        %3107 = vmatprep.subr.mxu0 0.0
        %3108 = vmatpush1.msra.mxu0 0.0
        %3109 = vmatprep.subr.mxu0 0.0
        %3110 = vmatpush1.msra.mxu0 0.0
        %3111 = vmatprep.subr.mxu0 0.0
        %3112 = vmatpush1.msra.mxu0 0.0
        %3113 = vmatprep.subr.mxu0 0.0
        %3114 = vmatpush1.msra.mxu0 0.0
        %3115 = vmatprep.subr.mxu0 0.0
        %3116 = vmatpush1.msra.mxu0 0.0
        %3117 = vmatprep.subr.mxu0 0.0
        %3118 = vmatpush1.msra.mxu0 0.0
        %3119 = vmatprep.subr.mxu0 0.0
        %3120 = vmatpush1.msra.mxu0 0.0
        %3121 = vmatprep.mubr.f32.mxu0 0.0
        %3122 = vmatmul.mubr.f32.gmra.mrb[0].mxu0 %v3047
        %v3123 = vpop.f32.mrb[0].mxu0
        %v3124 = vadd.f32 0.0, %v3123
        %v3125 = vpop.f32.mrb[0].mxu0
        %3126 = vmatprep.mubr.f32.mxu0 0.0
        %3127 = vmatmul.mubr.f32.gmra.mrb[0].mxu0 %v3050
        %v3128 = vpop.f32.mrb[0].mxu0
        %v3129 = vadd.f32 0.0, %v3128
        %v3130 = vpop.f32.mrb[0].mxu0
        %3131 = vmatprep.mubr.f32.mxu0 0.0
        %3132 = vmatmul.mubr.f32.gmra.mrb[0].mxu0 %v3053
        %v3133 = vpop.f32.mrb[0].mxu0
        %v3134 = vadd.f32 0.0, %v3133
        %v3135 = vpop.f32.mrb[0].mxu0
        %3136 = vdwg.mxu0
        %3137 = vrot.lane.b32.xlu0 %v2426, 104
        %v3138 = vpop.permute.xlu0 %3137
        %3139 = vrot.lane.b32.xlu0 %v2427, 104
        %v3140 = vpop.permute.xlu0 %3139
        %3141 = vrot.lane.b32.xlu0 %v2428, 104
        %v3142 = vpop.permute.xlu0 %3141
        %3143 = vrot.lane.b32.xlu0 %v2413, 72
        %v3144 = vpop.permute.xlu0 %3143
        %3145 = vrot.lane.b32.xlu0 %v2418, 72
        %v3146 = vpop.permute.xlu0 %3145
        %3147 = vrot.lane.b32.xlu0 %v2423, 72
        %v3148 = vpop.permute.xlu0 %3147
        %v3149 = vsel %vm883, %v3138, 0
        %v3151 = vsel %vm883, %v3140, 0
        %v3153 = vsel %vm883, %v3142, 0
        %v3155 = vsel %vm883, %v3144, 0
        %v3157 = vsel %vm883, %v3146, 0
        %v3159 = vsel %vm883, %v3148, 0
        %3161 = vmatprep.subr.mxu0 0.0
        %3162 = vmatpush1.xpose.msra.mxu0 %v3155
        %3163 = vmatprep.subr.mxu0 0.0
        %3164 = vmatpush1.xpose.msra.mxu0 %v3157
        %3165 = vmatprep.subr.mxu0 0.0
        %3166 = vmatpush1.xpose.msra.mxu0 %v3159
        %3167 = vmatprep.subr.mxu0 0.0
        %3168 = vmatpush1.xpose.msra.mxu0 0.0
        %3169 = vmatprep.subr.mxu0 0.0
        %3170 = vmatpush1.xpose.msra.mxu0 0.0
        %3171 = vmatprep.subr.mxu0 0.0
        %3172 = vmatpush1.xpose.msra.mxu0 0.0
        %3173 = vmatprep.subr.mxu0 0.0
        %3174 = vmatpush1.xpose.msra.mxu0 0.0
        %3175 = vmatprep.subr.mxu0 0.0
        %3176 = vmatpush1.xpose.msra.mxu0 0.0
        %3177 = vmatprep.subr.mxu0 0.0
        %3178 = vmatpush1.xpose.msra.mxu0 0.0
        %3179 = vmatprep.subr.mxu0 0.0
        %3180 = vmatpush1.xpose.msra.mxu0 0.0
        %3181 = vmatprep.subr.mxu0 0.0
        %3182 = vmatpush1.xpose.msra.mxu0 0.0
        %3183 = vmatprep.subr.mxu0 0.0
        %3184 = vmatpush1.xpose.msra.mxu0 0.0
        %3185 = vmatprep.subr.mxu0 0.0
        %3186 = vmatpush1.xpose.msra.mxu0 0.0
        %3187 = vmatprep.subr.mxu0 0.0
        %3188 = vmatpush1.xpose.msra.mxu0 0.0
        %3189 = vmatprep.subr.mxu0 0.0
        %3190 = vmatpush1.xpose.msra.mxu0 0.0
        %3191 = vmatprep.subr.mxu0 0.0
        %3192 = vmatpush1.xpose.msra.mxu0 0.0
        %3193 = vmatprep.subr.mxu0 0.0
        %3194 = vmatpush1.xpose.msra.mxu0 0.0
        %3195 = vmatprep.subr.mxu0 0.0
        %3196 = vmatpush1.xpose.msra.mxu0 0.0
        %3197 = vmatprep.subr.mxu0 0.0
        %3198 = vmatpush1.xpose.msra.mxu0 0.0
        %3199 = vmatprep.subr.mxu0 0.0
        %3200 = vmatpush1.xpose.msra.mxu0 0.0
        %3201 = vmatprep.subr.mxu0 0.0
        %3202 = vmatpush1.xpose.msra.mxu0 0.0
        %3203 = vmatprep.subr.mxu0 0.0
        %3204 = vmatpush1.xpose.msra.mxu0 0.0
        %3205 = vmatprep.subr.mxu0 0.0
        %3206 = vmatpush1.xpose.msra.mxu0 0.0
        %3207 = vmatprep.subr.mxu0 0.0
        %3208 = vmatpush1.xpose.msra.mxu0 0.0
        %3209 = vmatprep.subr.mxu0 0.0
        %3210 = vmatpush1.xpose.msra.mxu0 0.0
        %3211 = vmatprep.subr.mxu0 0.0
        %3212 = vmatpush1.xpose.msra.mxu0 0.0
        %3213 = vmatprep.subr.mxu0 0.0
        %3214 = vmatpush1.xpose.msra.mxu0 0.0
        %3215 = vmatprep.subr.mxu0 0.0
        %3216 = vmatpush1.xpose.msra.mxu0 0.0
        %3217 = vmatprep.subr.mxu0 0.0
        %3218 = vmatpush1.xpose.msra.mxu0 0.0
        %3219 = vmatprep.subr.mxu0 0.0
        %3220 = vmatpush1.xpose.msra.mxu0 0.0
        %3221 = vmatprep.subr.mxu0 0.0
        %3222 = vmatpush1.xpose.msra.mxu0 0.0
        %3223 = vmatprep.subr.mxu0 0.0
        %3224 = vmatpush1.xpose.msra.mxu0 0.0
        %3225 = vmatprep.mubr.f32.mxu0 0.0
        %3226 = vmatmul.mubr.f32.gmra.mrb[0].mxu0 %v3149
        %v3227 = vpop.f32.mrb[0].mxu0
        %v3228 = vadd.f32 0.0, %v3227
        %v3229 = vpop.f32.mrb[0].mxu0
        %3230 = vmatprep.mubr.f32.mxu0 0.0
        %3231 = vmatmul.mubr.f32.gmra.mrb[0].mxu0 %v3151
        %v3232 = vpop.f32.mrb[0].mxu0
        %v3233 = vadd.f32 0.0, %v3232
        %v3234 = vpop.f32.mrb[0].mxu0
        %3235 = vmatprep.mubr.f32.mxu0 0.0
        %3236 = vmatmul.mubr.f32.gmra.mrb[0].mxu0 %v3153
        %v3237 = vpop.f32.mrb[0].mxu0
        %v3238 = vadd.f32 0.0, %v3237
        %v3239 = vpop.f32.mrb[0].mxu0
        %3240 = vdwg.mxu0
        %v3241 = vsel %vm979, %v3228, -inf
        %3242 = vmax.xlane.f32.xlu0 %v3241
        %v3243 = vpop.xlane.xlu0 %3242
        %v3244 = vsel %vm979, %v3233, -inf
        %3245 = vmax.xlane.f32.xlu0 %v3244
        %v3246 = vpop.xlane.xlu0 %3245
        %v3247 = vsel %vm986, %v3238, -inf
        %3248 = vmax.xlane.f32.xlu0 %v3247
        %v3249 = vpop.xlane.xlu0 %3248
        %v3250 = vsub.f32 %v3228, %v3243
        %v3251 = vsub.f32 %v3233, %v3246
        %v3252 = vsub.f32 %v3238, %v3249
        %v3253 = vmul.f32 %v3250, 1.442695
        %v3254 = vpow.pop %v3253
        %v3255 = vmul.f32 %v3251, 1.442695
        %v3256 = vpow.pop %v3255
        %v3257 = vmul.f32 %v3252, 1.442695
        %v3258 = vpow.pop %v3257
        %v3259 = vsel %vm979, %v3254, 0.0
        %3260 = vadd.xlane.f32.xlu0 %v3259
        %v3261 = vpop.xlane.xlu0 %3260
        %v3262 = vsel %vm979, %v3256, 0.0
        %3263 = vadd.xlane.f32.xlu0 %v3262
        %v3264 = vpop.xlane.xlu0 %3263
        %v3265 = vsel %vm986, %v3258, 0.0
        %3266 = vadd.xlane.f32.xlu0 %v3265
        %v3267 = vpop.xlane.xlu0 %3266
        %v3268 = vrcp.pop %v3261
        %v3269 = vrcp.pop %v3264
        %v3270 = vrcp.pop %v3267
        %v3271 = vmul.f32 %v3254, %v3268
        %v3272 = vmul.f32 %v3256, %v3269
        %v3273 = vmul.f32 %v3258, %v3270
        %3274 = vrot.lane.b32.xlu0 %v2413, 40
        %v3275 = vpop.permute.xlu0 %3274
        %3276 = vrot.lane.b32.xlu0 %v2418, 40
        %v3277 = vpop.permute.xlu0 %3276
        %3278 = vrot.lane.b32.xlu0 %v2423, 40
        %v3279 = vpop.permute.xlu0 %3278
        %v3283 = vsel %vm979, %v3271, 0
        %v3286 = vsel %vm979, %v3272, 0
        %v3289 = vsel %vm979, %v3273, 0
        %v3291 = vsel %vm756, %v3279, 0
        %3293 = vmatprep.subr.mxu0 0.0
        %3294 = vmatpush1.msra.mxu0 %v3275
        %3295 = vmatprep.subr.mxu0 0.0
        %3296 = vmatpush1.msra.mxu0 %v3277
        %3297 = vmatprep.subr.mxu0 0.0
        %3298 = vmatpush1.msra.mxu0 %v3291
        %3299 = vmatprep.subr.mxu0 0.0
        %3300 = vmatpush1.msra.mxu0 0.0
        %3301 = vmatprep.subr.mxu0 0.0
        %3302 = vmatpush1.msra.mxu0 0.0
        %3303 = vmatprep.subr.mxu0 0.0
        %3304 = vmatpush1.msra.mxu0 0.0
        %3305 = vmatprep.subr.mxu0 0.0
        %3306 = vmatpush1.msra.mxu0 0.0
        %3307 = vmatprep.subr.mxu0 0.0
        %3308 = vmatpush1.msra.mxu0 0.0
        %3309 = vmatprep.subr.mxu0 0.0
        %3310 = vmatpush1.msra.mxu0 0.0
        %3311 = vmatprep.subr.mxu0 0.0
        %3312 = vmatpush1.msra.mxu0 0.0
        %3313 = vmatprep.subr.mxu0 0.0
        %3314 = vmatpush1.msra.mxu0 0.0
        %3315 = vmatprep.subr.mxu0 0.0
        %3316 = vmatpush1.msra.mxu0 0.0
        %3317 = vmatprep.subr.mxu0 0.0
        %3318 = vmatpush1.msra.mxu0 0.0
        %3319 = vmatprep.subr.mxu0 0.0
        %3320 = vmatpush1.msra.mxu0 0.0
        %3321 = vmatprep.subr.mxu0 0.0
        %3322 = vmatpush1.msra.mxu0 0.0
        %3323 = vmatprep.subr.mxu0 0.0
        %3324 = vmatpush1.msra.mxu0 0.0
        %3325 = vmatprep.subr.mxu0 0.0
        %3326 = vmatpush1.msra.mxu0 0.0
        %3327 = vmatprep.subr.mxu0 0.0
        %3328 = vmatpush1.msra.mxu0 0.0
        %3329 = vmatprep.subr.mxu0 0.0
        %3330 = vmatpush1.msra.mxu0 0.0
        %3331 = vmatprep.subr.mxu0 0.0
        %3332 = vmatpush1.msra.mxu0 0.0
        %3333 = vmatprep.subr.mxu0 0.0
        %3334 = vmatpush1.msra.mxu0 0.0
        %3335 = vmatprep.subr.mxu0 0.0
        %3336 = vmatpush1.msra.mxu0 0.0
        %3337 = vmatprep.subr.mxu0 0.0
        %3338 = vmatpush1.msra.mxu0 0.0
        %3339 = vmatprep.subr.mxu0 0.0
        %3340 = vmatpush1.msra.mxu0 0.0
        %3341 = vmatprep.subr.mxu0 0.0
        %3342 = vmatpush1.msra.mxu0 0.0
        %3343 = vmatprep.subr.mxu0 0.0
        %3344 = vmatpush1.msra.mxu0 0.0
        %3345 = vmatprep.subr.mxu0 0.0
        %3346 = vmatpush1.msra.mxu0 0.0
        %3347 = vmatprep.subr.mxu0 0.0
        %3348 = vmatpush1.msra.mxu0 0.0
        %3349 = vmatprep.subr.mxu0 0.0
        %3350 = vmatpush1.msra.mxu0 0.0
        %3351 = vmatprep.subr.mxu0 0.0
        %3352 = vmatpush1.msra.mxu0 0.0
        %3353 = vmatprep.subr.mxu0 0.0
        %3354 = vmatpush1.msra.mxu0 0.0
        %3355 = vmatprep.subr.mxu0 0.0
        %3356 = vmatpush1.msra.mxu0 0.0
        %3357 = vmatprep.mubr.f32.mxu0 0.0
        %3358 = vmatmul.mubr.f32.gmra.mrb[0].mxu0 %v3283
        %v3359 = vpop.f32.mrb[0].mxu0
        %v3360 = vadd.f32 0.0, %v3359
        %v3361 = vpop.f32.mrb[0].mxu0
        %3362 = vmatprep.mubr.f32.mxu0 0.0
        %3363 = vmatmul.mubr.f32.gmra.mrb[0].mxu0 %v3286
        %v3364 = vpop.f32.mrb[0].mxu0
        %v3365 = vadd.f32 0.0, %v3364
        %v3366 = vpop.f32.mrb[0].mxu0
        %3367 = vmatprep.mubr.f32.mxu0 0.0
        %3368 = vmatmul.mubr.f32.gmra.mrb[0].mxu0 %v3289
        %v3369 = vpop.f32.mrb[0].mxu0
        %v3370 = vadd.f32 0.0, %v3369
        %v3371 = vpop.f32.mrb[0].mxu0
        %3372 = vdwg.mxu0
        %3376 = vrot.lane.b32.xlu0 %v2888, 8
        %v3377 = vpop.permute.xlu0 %3376
        %3378 = vrot.lane.b32.xlu0 %v2893, 8
        %v3379 = vpop.permute.xlu0 %3378
        %3380 = vrot.lane.b32.xlu0 %v2898, 8
        %v3381 = vpop.permute.xlu0 %3380
        %3388 = vrot.lane.b32.xlu0 %v3124, 16
        %v3389 = vpop.permute.xlu0 %3388
        %3390 = vrot.lane.b32.xlu0 %v3129, 16
        %v3391 = vpop.permute.xlu0 %3390
        %3392 = vrot.lane.b32.xlu0 %v3134, 16
        %v3393 = vpop.permute.xlu0 %3392
        %3400 = vrot.lane.b32.xlu0 %v3360, 24
        %v3401 = vpop.permute.xlu0 %3400
        %3402 = vrot.lane.b32.xlu0 %v3365, 24
        %v3403 = vpop.permute.xlu0 %3402
        %3404 = vrot.lane.b32.xlu0 %v3370, 24
        %v3405 = vpop.permute.xlu0 %3404
        %v3409 = vsel %vm883, %v2652, %v3377
        %v3410 = vsel %vm883, %v2657, %v3379
        %v3411 = vsel %vm883, %v2662, %v3381
        %v3412 = vsel %vm1860, %v3409, %v3389
        %v3413 = vsel %vm1860, %v3410, %v3391
        %v3414 = vsel %vm1860, %v3411, %v3393
        %v3415 = vsel %vm1864, %v3412, %v3401
        %v3416 = vsel %vm1864, %v3413, %v3403
        %v3417 = vsel %vm1864, %v3414, %v3405
        %s3418 = scalar_lea.vmem %s7, 32
        %v3419 = vld [vmem:[%s3418] sm:$0xff]
        %v3420 = vld [vmem:[%s3418 + $0x8] sm:$0xff]
        %v3421 = vld [vmem:[%s3418 + $0x10] sm:$0xff]
        %v3422 = vld [vmem:[%s3418 + $0x18] sm:$0xff]
        %s3423 = scalar_lea.vmem %s8, 1
        %v3424 = vld [vmem:[%s3423] sm:$0x1]
        %v3426 = vlaneseq
        %v3427 = vshrl.u32 %v3426, 7
        %v3428 = vsub.s32 0, %v3427
        %v3429 = vrot.slane %v3424, %v3428
        %v3432 = vsel %vm781, %v3415, 0
        %v3435 = vsel %vm781, %v3416, 0
        %v3438 = vsel %vm781, %v3417, 0
        %3440 = vmatprep.subr.mxu0 0.0
        %3441 = vmatpush1.msra.mxu0 %v3419
        %3442 = vmatprep.subr.mxu0 0.0
        %3443 = vmatpush1.msra.mxu0 %v3420
        %3444 = vmatprep.subr.mxu0 0.0
        %3445 = vmatpush1.msra.mxu0 %v3421
        %3446 = vmatprep.subr.mxu0 0.0
        %3447 = vmatpush1.msra.mxu0 %v3422
        %3448 = vmatprep.subr.mxu0 0.0
        %3449 = vmatpush1.msra.mxu0 0.0
        %3450 = vmatprep.subr.mxu0 0.0
        %3451 = vmatpush1.msra.mxu0 0.0
        %3452 = vmatprep.subr.mxu0 0.0
        %3453 = vmatpush1.msra.mxu0 0.0
        %3454 = vmatprep.subr.mxu0 0.0
        %3455 = vmatpush1.msra.mxu0 0.0
        %3456 = vmatprep.subr.mxu0 0.0
        %3457 = vmatpush1.msra.mxu0 0.0
        %3458 = vmatprep.subr.mxu0 0.0
        %3459 = vmatpush1.msra.mxu0 0.0
        %3460 = vmatprep.subr.mxu0 0.0
        %3461 = vmatpush1.msra.mxu0 0.0
        %3462 = vmatprep.subr.mxu0 0.0
        %3463 = vmatpush1.msra.mxu0 0.0
        %3464 = vmatprep.subr.mxu0 0.0
        %3465 = vmatpush1.msra.mxu0 0.0
        %3466 = vmatprep.subr.mxu0 0.0
        %3467 = vmatpush1.msra.mxu0 0.0
        %3468 = vmatprep.subr.mxu0 0.0
        %3469 = vmatpush1.msra.mxu0 0.0
        %3470 = vmatprep.subr.mxu0 0.0
        %3471 = vmatpush1.msra.mxu0 0.0
        %3472 = vmatprep.subr.mxu0 0.0
        %3473 = vmatpush1.msra.mxu0 0.0
        %3474 = vmatprep.subr.mxu0 0.0
        %3475 = vmatpush1.msra.mxu0 0.0
        %3476 = vmatprep.subr.mxu0 0.0
        %3477 = vmatpush1.msra.mxu0 0.0
        %3478 = vmatprep.subr.mxu0 0.0
        %3479 = vmatpush1.msra.mxu0 0.0
        %3480 = vmatprep.subr.mxu0 0.0
        %3481 = vmatpush1.msra.mxu0 0.0
        %3482 = vmatprep.subr.mxu0 0.0
        %3483 = vmatpush1.msra.mxu0 0.0
        %3484 = vmatprep.subr.mxu0 0.0
        %3485 = vmatpush1.msra.mxu0 0.0
        %3486 = vmatprep.subr.mxu0 0.0
        %3487 = vmatpush1.msra.mxu0 0.0
        %3488 = vmatprep.subr.mxu0 0.0
        %3489 = vmatpush1.msra.mxu0 0.0
        %3490 = vmatprep.subr.mxu0 0.0
        %3491 = vmatpush1.msra.mxu0 0.0
        %3492 = vmatprep.subr.mxu0 0.0
        %3493 = vmatpush1.msra.mxu0 0.0
        %3494 = vmatprep.subr.mxu0 0.0
        %3495 = vmatpush1.msra.mxu0 0.0
        %3496 = vmatprep.subr.mxu0 0.0
        %3497 = vmatpush1.msra.mxu0 0.0
        %3498 = vmatprep.subr.mxu0 0.0
        %3499 = vmatpush1.msra.mxu0 0.0
        %3500 = vmatprep.subr.mxu0 0.0
        %3501 = vmatpush1.msra.mxu0 0.0
        %3502 = vmatprep.subr.mxu0 0.0
        %3503 = vmatpush1.msra.mxu0 0.0
        %3504 = vmatprep.mubr.f32.mxu0 0.0
        %3505 = vmatmul.mubr.f32.gmra.mrb[0].mxu0 %v3432
        %v3506 = vpop.f32.mrb[0].mxu0
        %v3507 = vadd.f32 %v3429, %v3506
        %v3508 = vpop.f32.mrb[0].mxu0
        %3509 = vmatprep.mubr.f32.mxu0 0.0
        %3510 = vmatmul.mubr.f32.gmra.mrb[0].mxu0 %v3435
        %v3511 = vpop.f32.mrb[0].mxu0
        %v3512 = vadd.f32 %v3429, %v3511
        %v3513 = vpop.f32.mrb[0].mxu0
        %3514 = vmatprep.mubr.f32.mxu0 0.0
        %3515 = vmatmul.mubr.f32.gmra.mrb[0].mxu0 %v3438
        %v3516 = vpop.f32.mrb[0].mxu0
        %v3517 = vadd.f32 %v3429, %v3516
        %v3518 = vpop.f32.mrb[0].mxu0
        %3519 = vdwg.mxu0
        %v3520 = vadd.f32 %v2321, %v3507
        %v3521 = vadd.f32 %v2322, %v3512
        %v3522 = vadd.f32 %v2323, %v3517
        %s3523 = scalar_lea.vmem %s9, 1
        %v3524 = vld [vmem:[%s3523] sm:$0x1]
        %s3525 = scalar_lea.vmem %s10, 1
        %v3526 = vld [vmem:[%s3525] sm:$0x1]
        %v3527 = vsel %vm781, %v3520, 0.0
        %3528 = vadd.xlane.f32.xlu0 %v3527
        %v3529 = vpop.xlane.xlu0 %3528
        %v3530 = vsel %vm781, %v3521, 0.0
        %3531 = vadd.xlane.f32.xlu0 %v3530
        %v3532 = vpop.xlane.xlu0 %3531
        %v3533 = vsel %vm1979, %v3522, 0.0
        %3534 = vadd.xlane.f32.xlu0 %v3533
        %v3535 = vpop.xlane.xlu0 %3534
        %v3536 = vmul.f32 %v3529, %v1983
        %v3537 = vmul.f32 %v3532, %v1983
        %v3538 = vmul.f32 %v3535, %v1983
        %v3539 = vsub.f32 %v3520, %v3536
        %v3540 = vsub.f32 %v3521, %v3537
        %v3541 = vsub.f32 %v3522, %v3538
        %v3542 = vmul.f32 %v3539, %v3539
        %v3543 = vmul.f32 %v3540, %v3540
        %v3544 = vmul.f32 %v3541, %v3541
        %v3545 = vsel %vm781, %v3542, 0.0
        %3546 = vadd.xlane.f32.xlu0 %v3545
        %v3547 = vpop.xlane.xlu0 %3546
        %v3548 = vsel %vm781, %v3543, 0.0
        %3549 = vadd.xlane.f32.xlu0 %v3548
        %v3550 = vpop.xlane.xlu0 %3549
        %v3551 = vsel %vm1979, %v3544, 0.0
        %3552 = vadd.xlane.f32.xlu0 %v3551
        %v3553 = vpop.xlane.xlu0 %3552
        %v3554 = vmul.f32 %v3547, %v1983
        %v3555 = vmul.f32 %v3550, %v1983
        %v3556 = vmul.f32 %v3553, %v1983
        %v3557 = vadd.f32 %v3554, 1e-05
        %v3558 = vadd.f32 %v3555, 1e-05
        %v3559 = vadd.f32 %v3556, 1e-05
        %v3560 = vrsqrt.pop %v3557
        %v3561 = vrsqrt.pop %v3558
        %v3562 = vrsqrt.pop %v3559
        %v3563 = vmul.f32 %v3539, %v3560
        %v3564 = vmul.f32 %v3540, %v3561
        %v3565 = vmul.f32 %v3541, %v3562
        %v3567 = vlaneseq
        %v3568 = vshrl.u32 %v3567, 7
        %v3569 = vsub.s32 0, %v3568
        %v3570 = vrot.slane %v3524, %v3569
        %v3572 = vmul.f32 %v3563, %v3570
        %v3573 = vmul.f32 %v3564, %v3570
        %v3574 = vmul.f32 %v3565, %v3570
        %v3576 = vlaneseq
        %v3577 = vshrl.u32 %v3576, 7
        %v3578 = vsub.s32 0, %v3577
        %v3579 = vrot.slane %v3526, %v3578
        %v3581 = vadd.f32 %v3572, %v3579
        %v3582 = vadd.f32 %v3573, %v3579
        %v3583 = vadd.f32 %v3574, %v3579
        %s3584 = scalar_lea.vmem %s11, 32
        %v3585 = vld [vmem:[%s3584] sm:$0xff]
        %v3586 = vld [vmem:[%s3584 + $0x8] sm:$0xff]
        %v3587 = vld [vmem:[%s3584 + $0x10] sm:$0xff]
        %v3588 = vld [vmem:[%s3584 + $0x18] sm:$0xff]
        %s3589 = scalar_lea.vmem %s12, 1
        %v3590 = vld [vmem:[%s3589] sm:$0x1]
        %v3592 = vlaneseq
        %v3593 = vshrl.u32 %v3592, 7
        %v3594 = vsub.s32 0, %v3593
        %v3595 = vrot.slane %v3590, %v3594
        %v3598 = vsel %vm781, %v3581, 0
        %v3601 = vsel %vm781, %v3582, 0
        %v3604 = vsel %vm781, %v3583, 0
        %3606 = vmatprep.subr.mxu0 0.0
        %3607 = vmatpush1.msra.mxu0 %v3585
        %3608 = vmatprep.subr.mxu0 0.0
        %3609 = vmatpush1.msra.mxu0 %v3586
        %3610 = vmatprep.subr.mxu0 0.0
        %3611 = vmatpush1.msra.mxu0 %v3587
        %3612 = vmatprep.subr.mxu0 0.0
        %3613 = vmatpush1.msra.mxu0 %v3588
        %3614 = vmatprep.subr.mxu0 0.0
        %3615 = vmatpush1.msra.mxu0 0.0
        %3616 = vmatprep.subr.mxu0 0.0
        %3617 = vmatpush1.msra.mxu0 0.0
        %3618 = vmatprep.subr.mxu0 0.0
        %3619 = vmatpush1.msra.mxu0 0.0
        %3620 = vmatprep.subr.mxu0 0.0
        %3621 = vmatpush1.msra.mxu0 0.0
        %3622 = vmatprep.subr.mxu0 0.0
        %3623 = vmatpush1.msra.mxu0 0.0
        %3624 = vmatprep.subr.mxu0 0.0
        %3625 = vmatpush1.msra.mxu0 0.0
        %3626 = vmatprep.subr.mxu0 0.0
        %3627 = vmatpush1.msra.mxu0 0.0
        %3628 = vmatprep.subr.mxu0 0.0
        %3629 = vmatpush1.msra.mxu0 0.0
        %3630 = vmatprep.subr.mxu0 0.0
        %3631 = vmatpush1.msra.mxu0 0.0
        %3632 = vmatprep.subr.mxu0 0.0
        %3633 = vmatpush1.msra.mxu0 0.0
        %3634 = vmatprep.subr.mxu0 0.0
        %3635 = vmatpush1.msra.mxu0 0.0
        %3636 = vmatprep.subr.mxu0 0.0
        %3637 = vmatpush1.msra.mxu0 0.0
        %3638 = vmatprep.subr.mxu0 0.0
        %3639 = vmatpush1.msra.mxu0 0.0
        %3640 = vmatprep.subr.mxu0 0.0
        %3641 = vmatpush1.msra.mxu0 0.0
        %3642 = vmatprep.subr.mxu0 0.0
        %3643 = vmatpush1.msra.mxu0 0.0
        %3644 = vmatprep.subr.mxu0 0.0
        %3645 = vmatpush1.msra.mxu0 0.0
        %3646 = vmatprep.subr.mxu0 0.0
        %3647 = vmatpush1.msra.mxu0 0.0
        %3648 = vmatprep.subr.mxu0 0.0
        %3649 = vmatpush1.msra.mxu0 0.0
        %3650 = vmatprep.subr.mxu0 0.0
        %3651 = vmatpush1.msra.mxu0 0.0
        %3652 = vmatprep.subr.mxu0 0.0
        %3653 = vmatpush1.msra.mxu0 0.0
        %3654 = vmatprep.subr.mxu0 0.0
        %3655 = vmatpush1.msra.mxu0 0.0
        %3656 = vmatprep.subr.mxu0 0.0
        %3657 = vmatpush1.msra.mxu0 0.0
        %3658 = vmatprep.subr.mxu0 0.0
        %3659 = vmatpush1.msra.mxu0 0.0
        %3660 = vmatprep.subr.mxu0 0.0
        %3661 = vmatpush1.msra.mxu0 0.0
        %3662 = vmatprep.subr.mxu0 0.0
        %3663 = vmatpush1.msra.mxu0 0.0
        %3664 = vmatprep.subr.mxu0 0.0
        %3665 = vmatpush1.msra.mxu0 0.0
        %3666 = vmatprep.subr.mxu0 0.0
        %3667 = vmatpush1.msra.mxu0 0.0
        %3668 = vmatprep.subr.mxu0 0.0
        %3669 = vmatpush1.msra.mxu0 0.0
        %3670 = vmatprep.mubr.f32.mxu0 0.0
        %3671 = vmatmul.mubr.f32.gmra.mrb[0].mxu0 %v3598
        %v3672 = vpop.f32.mrb[0].mxu0
        %v3673 = vadd.f32 %v3595, %v3672
        %v3674 = vpop.f32.mrb[0].mxu0
        %3675 = vmatprep.mubr.f32.mxu0 0.0
        %3676 = vmatmul.mubr.f32.gmra.mrb[0].mxu0 %v3601
        %v3677 = vpop.f32.mrb[0].mxu0
        %v3678 = vadd.f32 %v3595, %v3677
        %v3679 = vpop.f32.mrb[0].mxu0
        %3680 = vmatprep.mubr.f32.mxu0 0.0
        %3681 = vmatmul.mubr.f32.gmra.mrb[0].mxu0 %v3604
        %v3682 = vpop.f32.mrb[0].mxu0
        %v3683 = vadd.f32 %v3595, %v3682
        %v3684 = vpop.f32.mrb[0].mxu0
        %3685 = vdwg.mxu0
        %v3686 = vmul.f32 %v3673, %v3673
        %v3687 = vmul.f32 %v3678, %v3678
        %v3688 = vmul.f32 %v3683, %v3683
        %v3689 = vmul.f32 %v3673, %v3686
        %v3690 = vmul.f32 %v3678, %v3687
        %v3691 = vmul.f32 %v3683, %v3688
        %v3692 = vmul.f32 %v3689, 0.044715
        %v3693 = vmul.f32 %v3690, 0.044715
        %v3694 = vmul.f32 %v3691, 0.044715
        %v3695 = vadd.f32 %v3673, %v3692
        %v3696 = vadd.f32 %v3678, %v3693
        %v3697 = vadd.f32 %v3683, %v3694
        %v3698 = vmul.f32 %v3695, 0.7978846
        %v3699 = vmul.f32 %v3696, 0.7978846
        %v3700 = vmul.f32 %v3697, 0.7978846
        %v3701 = vtanh.pop %v3698
        %v3702 = vtanh.pop %v3699
        %v3703 = vtanh.pop %v3700
        %v3704 = vadd.f32 %v3701, 1.0
        %v3705 = vadd.f32 %v3702, 1.0
        %v3706 = vadd.f32 %v3703, 1.0
        %v3707 = vmul.f32 %v3704, 0.5
        %v3708 = vmul.f32 %v3705, 0.5
        %v3709 = vmul.f32 %v3706, 0.5
        %v3710 = vmul.f32 %v3673, %v3707
        %v3711 = vmul.f32 %v3678, %v3708
        %v3712 = vmul.f32 %v3683, %v3709
        %s3713 = scalar_lea.vmem %s13, 128
        %v3714 = vld [vmem:[%s3713] sm:$0xff]
        %v3715 = vld [vmem:[%s3713 + $0x8] sm:$0xff]
        %v3716 = vld [vmem:[%s3713 + $0x10] sm:$0xff]
        %v3717 = vld [vmem:[%s3713 + $0x18] sm:$0xff]
        %v3718 = vld [vmem:[%s3713 + $0x20] sm:$0xff]
        %v3719 = vld [vmem:[%s3713 + $0x28] sm:$0xff]
        %v3720 = vld [vmem:[%s3713 + $0x30] sm:$0xff]
        %v3721 = vld [vmem:[%s3713 + $0x38] sm:$0xff]
        %v3722 = vld [vmem:[%s3713 + $0x40] sm:$0xff]
        %v3723 = vld [vmem:[%s3713 + $0x48] sm:$0xff]
        %v3724 = vld [vmem:[%s3713 + $0x50] sm:$0xff]
        %v3725 = vld [vmem:[%s3713 + $0x58] sm:$0xff]
        %v3726 = vld [vmem:[%s3713 + $0x60] sm:$0xff]
        %v3727 = vld [vmem:[%s3713 + $0x68] sm:$0xff]
        %v3728 = vld [vmem:[%s3713 + $0x70] sm:$0xff]
        %v3729 = vld [vmem:[%s3713 + $0x78] sm:$0xff]
        %s3730 = scalar_lea.vmem %s14, 1
        %v3731 = vld [vmem:[%s3730] sm:$0x1]
        %v3733 = vlaneseq
        %v3734 = vshrl.u32 %v3733, 7
        %v3735 = vsub.s32 0, %v3734
        %v3736 = vrot.slane %v3731, %v3735
        %3738 = vmatprep.subr.mxu0 0.0
        %3739 = vmatpush1.msra.mxu0 %v3714
        %3740 = vmatprep.subr.mxu0 0.0
        %3741 = vmatpush1.msra.mxu0 %v3715
        %3742 = vmatprep.subr.mxu0 0.0
        %3743 = vmatpush1.msra.mxu0 %v3716
        %3744 = vmatprep.subr.mxu0 0.0
        %3745 = vmatpush1.msra.mxu0 %v3717
        %3746 = vmatprep.subr.mxu0 0.0
        %3747 = vmatpush1.msra.mxu0 %v3718
        %3748 = vmatprep.subr.mxu0 0.0
        %3749 = vmatpush1.msra.mxu0 %v3719
        %3750 = vmatprep.subr.mxu0 0.0
        %3751 = vmatpush1.msra.mxu0 %v3720
        %3752 = vmatprep.subr.mxu0 0.0
        %3753 = vmatpush1.msra.mxu0 %v3721
        %3754 = vmatprep.subr.mxu0 0.0
        %3755 = vmatpush1.msra.mxu0 %v3722
        %3756 = vmatprep.subr.mxu0 0.0
        %3757 = vmatpush1.msra.mxu0 %v3723
        %3758 = vmatprep.subr.mxu0 0.0
        %3759 = vmatpush1.msra.mxu0 %v3724
        %3760 = vmatprep.subr.mxu0 0.0
        %3761 = vmatpush1.msra.mxu0 %v3725
        %3762 = vmatprep.subr.mxu0 0.0
        %3763 = vmatpush1.msra.mxu0 %v3726
        %3764 = vmatprep.subr.mxu0 0.0
        %3765 = vmatpush1.msra.mxu0 %v3727
        %3766 = vmatprep.subr.mxu0 0.0
        %3767 = vmatpush1.msra.mxu0 %v3728
        %3768 = vmatprep.subr.mxu0 0.0
        %3769 = vmatpush1.msra.mxu0 %v3729
        %3770 = vmatprep.subr.mxu0 0.0
        %3771 = vmatpush1.msra.mxu0 0.0
        %3772 = vmatprep.subr.mxu0 0.0
        %3773 = vmatpush1.msra.mxu0 0.0
        %3774 = vmatprep.subr.mxu0 0.0
        %3775 = vmatpush1.msra.mxu0 0.0
        %3776 = vmatprep.subr.mxu0 0.0
        %3777 = vmatpush1.msra.mxu0 0.0
        %3778 = vmatprep.subr.mxu0 0.0
        %3779 = vmatpush1.msra.mxu0 0.0
        %3780 = vmatprep.subr.mxu0 0.0
        %3781 = vmatpush1.msra.mxu0 0.0
        %3782 = vmatprep.subr.mxu0 0.0
        %3783 = vmatpush1.msra.mxu0 0.0
        %3784 = vmatprep.subr.mxu0 0.0
        %3785 = vmatpush1.msra.mxu0 0.0
        %3786 = vmatprep.subr.mxu0 0.0
        %3787 = vmatpush1.msra.mxu0 0.0
        %3788 = vmatprep.subr.mxu0 0.0
        %3789 = vmatpush1.msra.mxu0 0.0
        %3790 = vmatprep.subr.mxu0 0.0
        %3791 = vmatpush1.msra.mxu0 0.0
        %3792 = vmatprep.subr.mxu0 0.0
        %3793 = vmatpush1.msra.mxu0 0.0
        %3794 = vmatprep.subr.mxu0 0.0
        %3795 = vmatpush1.msra.mxu0 0.0
        %3796 = vmatprep.subr.mxu0 0.0
        %3797 = vmatpush1.msra.mxu0 0.0
        %3798 = vmatprep.subr.mxu0 0.0
        %3799 = vmatpush1.msra.mxu0 0.0
        %3800 = vmatprep.subr.mxu0 0.0
        %3801 = vmatpush1.msra.mxu0 0.0
        %3802 = vmatprep.mubr.f32.mxu0 0.0
        %3803 = vmatmul.mubr.f32.gmra.mrb[0].mxu0 %v3710
        %v3804 = vpop.f32.mrb[0].mxu0
        %v3805 = vadd.f32 %v3736, %v3804
        %v3806 = vpop.f32.mrb[0].mxu0
        %3807 = vmatprep.mubr.f32.mxu0 0.0
        %3808 = vmatmul.mubr.f32.gmra.mrb[0].mxu0 %v3711
        %v3809 = vpop.f32.mrb[0].mxu0
        %v3810 = vpop.f32.mrb[0].mxu0
        %3811 = vmatprep.mubr.f32.mxu0 0.0
        %3812 = vmatmul.mubr.f32.gmra.mrb[0].mxu0 %v3712
        %v3813 = vpop.f32.mrb[0].mxu0
        %v3814 = vpop.f32.mrb[0].mxu0
        %3815 = vdwg.mxu0
        %v3816 = vadd.f32 %v3581, %v3805
        %s3817 = scalar_lea.vmem %s15, 1
        %v3818 = vld [vmem:[%s3817] sm:$0x1]
        %s3819 = scalar_lea.vmem %s16, 1
        %v3820 = vld [vmem:[%s3819] sm:$0x1]
        %v3821 = vsel %vm781, %v3816, 0.0
        %3822 = vadd.xlane.f32.xlu0 %v3821
        %v3823 = vpop.xlane.xlu0 %3822
        %v3824 = vmul.f32 %v3823, %v1983
        %v3825 = vsub.f32 %v3816, %v3824
        %v3826 = vmul.f32 %v3825, %v3825
        %v3827 = vsel %vm781, %v3826, 0.0
        %3828 = vadd.xlane.f32.xlu0 %v3827
        %v3829 = vpop.xlane.xlu0 %3828
        %v3830 = vmul.f32 %v3829, %v1983
        %v3831 = vadd.f32 %v3830, 1e-05
        %v3832 = vrsqrt.pop %v3831
        %v3833 = vmul.f32 %v3825, %v3832
        %v3835 = vlaneseq
        %v3836 = vshrl.u32 %v3835, 7
        %v3837 = vsub.s32 0, %v3836
        %v3838 = vrot.slane %v3818, %v3837
        %v3840 = vmul.f32 %v3833, %v3838
        %v3842 = vlaneseq
        %v3843 = vshrl.u32 %v3842, 7
        %v3844 = vsub.s32 0, %v3843
        %v3845 = vrot.slane %v3820, %v3844
        %v3847 = vadd.f32 %v3840, %v3845
        %v3848 = vld [vmem:[%s17] sm:$0x1]
        %v3849 = vld [vmem:[%s18] sm:$0x1]
        %v3850 = vsel %vm1979, %v3847, 0.0
        %3851 = vadd.xlane.f32.xlu0 %v3850
        %v3852 = vpop.xlane.xlu0 %3851
        %v3853 = vmul.f32 %v3852, %v1983
        %v3854 = vsub.f32 %v3847, %v3853
        %v3855 = vmul.f32 %v3854, %v3854
        %v3856 = vsel %vm1979, %v3855, 0.0
        %3857 = vadd.xlane.f32.xlu0 %v3856
        %v3858 = vpop.xlane.xlu0 %3857
        %v3859 = vmul.f32 %v3858, %v1983
        %v3860 = vadd.f32 %v3859, 1e-05
        %v3861 = vrsqrt.pop %v3860
        %v3862 = vmul.f32 %v3854, %v3861
        %v3863 = vmul.f32 %v3862, %v3848
        %v3864 = vadd.f32 %v3863, %v3849
        %v3865 = vld [vmem:[%s19] sm:$0xff]
        %v3866 = vld [vmem:[%s19 + $0x8] sm:$0xff]
        %v3867 = vld [vmem:[%s19 + $0x10] sm:$0xff]
        %v3868 = vld [vmem:[%s19 + $0x18] sm:$0xff]
        %v3869 = vld [vmem:[%s20] sm:$0x1]
        %v3871 = vsel %vm781, %v3864, 0
        %3873 = vmatprep.subr.mxu0 0.0
        %3874 = vmatpush1.msra.mxu0 %v3865
        %3875 = vmatprep.subr.mxu0 0.0
        %3876 = vmatpush1.msra.mxu0 %v3866
        %3877 = vmatprep.subr.mxu0 0.0
        %3878 = vmatpush1.msra.mxu0 %v3867
        %3879 = vmatprep.subr.mxu0 0.0
        %3880 = vmatpush1.msra.mxu0 %v3868
        %3881 = vmatprep.subr.mxu0 0.0
        %3882 = vmatpush1.msra.mxu0 0.0
        %3883 = vmatprep.subr.mxu0 0.0
        %3884 = vmatpush1.msra.mxu0 0.0
        %3885 = vmatprep.subr.mxu0 0.0
        %3886 = vmatpush1.msra.mxu0 0.0
        %3887 = vmatprep.subr.mxu0 0.0
        %3888 = vmatpush1.msra.mxu0 0.0
        %3889 = vmatprep.subr.mxu0 0.0
        %3890 = vmatpush1.msra.mxu0 0.0
        %3891 = vmatprep.subr.mxu0 0.0
        %3892 = vmatpush1.msra.mxu0 0.0
        %3893 = vmatprep.subr.mxu0 0.0
        %3894 = vmatpush1.msra.mxu0 0.0
        %3895 = vmatprep.subr.mxu0 0.0
        %3896 = vmatpush1.msra.mxu0 0.0
        %3897 = vmatprep.subr.mxu0 0.0
        %3898 = vmatpush1.msra.mxu0 0.0
        %3899 = vmatprep.subr.mxu0 0.0
        %3900 = vmatpush1.msra.mxu0 0.0
        %3901 = vmatprep.subr.mxu0 0.0
        %3902 = vmatpush1.msra.mxu0 0.0
        %3903 = vmatprep.subr.mxu0 0.0
        %3904 = vmatpush1.msra.mxu0 0.0
        %3905 = vmatprep.subr.mxu0 0.0
        %3906 = vmatpush1.msra.mxu0 0.0
        %3907 = vmatprep.subr.mxu0 0.0
        %3908 = vmatpush1.msra.mxu0 0.0
        %3909 = vmatprep.subr.mxu0 0.0
        %3910 = vmatpush1.msra.mxu0 0.0
        %3911 = vmatprep.subr.mxu0 0.0
        %3912 = vmatpush1.msra.mxu0 0.0
        %3913 = vmatprep.subr.mxu0 0.0
        %3914 = vmatpush1.msra.mxu0 0.0
        %3915 = vmatprep.subr.mxu0 0.0
        %3916 = vmatpush1.msra.mxu0 0.0
        %3917 = vmatprep.subr.mxu0 0.0
        %3918 = vmatpush1.msra.mxu0 0.0
        %3919 = vmatprep.subr.mxu0 0.0
        %3920 = vmatpush1.msra.mxu0 0.0
        %3921 = vmatprep.subr.mxu0 0.0
        %3922 = vmatpush1.msra.mxu0 0.0
        %3923 = vmatprep.subr.mxu0 0.0
        %3924 = vmatpush1.msra.mxu0 0.0
        %3925 = vmatprep.subr.mxu0 0.0
        %3926 = vmatpush1.msra.mxu0 0.0
        %3927 = vmatprep.subr.mxu0 0.0
        %3928 = vmatpush1.msra.mxu0 0.0
        %3929 = vmatprep.subr.mxu0 0.0
        %3930 = vmatpush1.msra.mxu0 0.0
        %3931 = vmatprep.subr.mxu0 0.0
        %3932 = vmatpush1.msra.mxu0 0.0
        %3933 = vmatprep.subr.mxu0 0.0
        %3934 = vmatpush1.msra.mxu0 0.0
        %3935 = vmatprep.subr.mxu0 0.0
        %3936 = vmatpush1.msra.mxu0 0.0
        %3937 = vmatprep.mubr.f32.mxu0 0.0
        %3938 = vmatmul.mubr.f32.gmra.mrb[0].mxu0 %v3871
        %v3939 = vpop.f32.mrb[0].mxu0
        %v3940 = vadd.f32 %v3869, %v3939
        %v3941 = vpop.f32.mrb[0].mxu0
        %3942 = vdwg.mxu0
        %vm3943 = vcmask 8192
        %3944 = vst.msk [vmem:[%s648] sm:$0x1] %vm3943, %v3940
        %s3945 = sand.u32 %s489, 1
        %s3946 = scalar_lea.sflag [#allocation3], %s3945
        %s3947 = sand.u32 %s489, 1
        %s3948 = scalar_lea.vmem [#allocation2], %s3947
        // Predicated region
        $region105: #{vit_forward.1} parent=103 // pred_check
          %p3949 = pneg %p499
        $region106: #{vit_forward.1} parent=103 // pred_check_branch
          %3951 = sbr.rel (%p3949) target = $region108
        $region107: #{vit_forward.1} parent=103 // pred_region
          %s3953 = ssub.s32 16, 16
          %3954 = vsyncadd %s3946, %s3953
          %s3955 = smul.addr %s35, 16
          %s3956 = scalar_lea.hbm %s21, %s3955
          %s3958 = sshll.u32 %s3948, 4
          %s3959 = int_to_ptr.vmem [resolvable:$true] %s3958
          %3961 = dma.vmem_to_hbm [thread:$0]  %s3959, 16, %s3956, %s3946
        $region108: #{vit_forward.1} parent=103 // pred_fallthru
          _
      $region104: #{vit_forward.1} parent=5 // pred_fallthru
        _
      %p3962 = scmp.le.s32.totalorder 2, %s30
      // Predicated region
      $region109: #{vit_forward.1} parent=5 // pred_check
        %p3963 = pneg %p3962
      $region110: #{vit_forward.1} parent=5 // pred_check_branch
        %3965 = sbr.rel (%p3963) target = $region112
      $region111: #{vit_forward.1} parent=5 // pred_region
        %s3966 = ssub.s32 %s30, 2
        // Predicated region
        $region113: #{vit_forward.1} parent=111 // pred_check
          %p3967 = pneg %p505
        $region114: #{vit_forward.1} parent=111 // pred_check_branch
          %3969 = sbr.rel (%p3967) target = $region116
        $region115: #{vit_forward.1} parent=111 // pred_region
          %s3970 = sand.u32 %s490, 1
          %s3971 = scalar_lea.sflag [#allocation3], %s3970
          %s3972 = sand.u32 %s490, 1
          %s3973 = scalar_lea.vmem [#allocation2], %s3972
          %3974 = dma.done %s3971, 16
        $region116: #{vit_forward.1} parent=111 // pred_fallthru
          _
      $region112: #{vit_forward.1} parent=5 // pred_fallthru
        _
    $region6: #{vit_forward.1} parent=1 // loop_footer
      %s34 = sadd.s32 1, %s30
    $region7: #{vit_forward.1} parent=1 // loop_footer_branch
      %29 = sbr.rel target = $region3
    $region8: #{vit_forward.1} parent=1 // loop_exit
      _
    %3975 = vsyncpa [#allocation3], 1
    %s3976 = scalar_lea.sflag [#allocation3], 1
    %3977 = vsyncpa %s3976, 1

</llo_original>
